<compile_context>
chip_gen: v6e
topology: v6e:2x2x1
jax: 0.10.0
libtpu: 0.0.40
codegen_flags: <defaults>
</compile_context>

<pallas_src>
import jax
import jax.numpy as jnp
from jax import lax
from jax.experimental import pallas as pl
from jax.experimental.pallas import tpu as pltpu


# ----------------------------- Pallas kernel ------------------------------- #

def _disc_fused_kernel(p1_ref, w1_ref, w2_ref, shift_ref, w3_ref, o_ref):
    """Whole Discriminator forward for ONE image; activations stay in VMEM/vregs.

    p1_ref   : (1, 320, 16)  bf16  conv1 im2col patches, rows ordered as
               (phase_y, phase_x) planes of 80 rows each (64 real rows laid out
               as yblk*8+xblk plus 16 zero rows of tail padding); zero rows also
               encode conv2's spatial zero-padding (bias-free conv -> 0 output).
    w1_ref   : (16, 128)      bf16  conv1 weights (kh*kw*cin, cout).
    w2_ref   : (16, 128, 256) bf16  conv2 weights per (i,j) tap, BN scale folded.
    shift_ref: (1, 256)       f32   BN shift = beta - mean*gamma/sqrt(var+eps).
    w3_ref   : (64, 256)      f32   conv3 weights on the 8x8 grid (rows with
                                    oy==7 or ox==7 are zero -> mask scratch rows).
    o_ref    : (1, 1, 128)    f32   sigmoid output broadcast along lanes.
    """
    # ---- Conv1 (1->128, 4x4, s2, p1) + LeakyReLU(0.2); Dropout eval = id ----
    p1 = p1_ref[0]                                              # (320, 16) bf16
    y1 = jnp.dot(p1, w1_ref[...], preferred_element_type=jnp.float32)
    x1 = jnp.where(y1 > 0, y1, 0.2 * y1)                        # (320, 128) f32

    # ---- Conv2 (128->256, 4x4, s2, p1) as 16 windowed matmuls + BN + LReLU ---
    # acc row r = oy*8 + ox is conv2 output position (oy, ox); rows with oy==7
    # or ox==7 are scratch (read from plane tail padding) and are zeroed by w3.
    acc = jnp.zeros((64, 256), jnp.float32)
    for i in range(4):
        for j in range(4):
            plane = (i % 2) * 2 + (j % 2)                       # which phase plane
            off = plane * 80 + (i // 2) * 8 + (j // 2)          # pre-shifted window
            blk = x1[off:off + 64, :].astype(jnp.bfloat16)      # (64, 128)
            acc = acc + jnp.dot(blk, w2_ref[i * 4 + j],
                                preferred_element_type=jnp.float32)
    x2 = acc + shift_ref[...]                                   # BN shift (scale in w2)
    x2 = jnp.where(x2 > 0, x2, 0.2 * x2)                        # LeakyReLU(0.2)

    # ---- Conv3 (256->1, 7x7, valid) dot + Sigmoid (VPU mul + reductions) ----
    part = jnp.sum(x2 * w3_ref[...], axis=1, keepdims=True)     # (64, 1)
    val = jnp.sum(part, axis=0, keepdims=True)                  # (1, 1)
    sig = 1.0 / (1.0 + jnp.exp(-val))
    o_ref[...] = jnp.broadcast_to(sig.reshape(1, 1, 1), (1, 1, 128))


# ------------------------- One-time weight preparation ---------------------- #

def prepare_params(params, eps=1e-5):
    """Hoisted out of the per-call jit: layout transpose, BN fold, bf16 cast."""
    w1m = params["w1"].transpose(2, 3, 1, 0).reshape(16, 128).astype(jnp.bfloat16)

    inv_std = 1.0 / jnp.sqrt(params["bn_var"] + eps)
    scale = params["bn_gamma"] * inv_std                                  # (256,)
    shift = (params["bn_beta"] - params["bn_mean"] * scale).reshape(1, 256)

    w2m = params["w2"].transpose(2, 3, 1, 0) * scale                      # (4,4,128,256)
    w2m = w2m.reshape(16, 128, 256).astype(jnp.bfloat16)

    w3 = params["w3"].transpose(2, 3, 1, 0)[..., 0]                       # (7,7,256)
    w3m = jnp.zeros((8, 8, 256), jnp.float32).at[:7, :7, :].set(w3)
    w3m = w3m.reshape(64, 256)

    return {"w1m": w1m, "w2m": w2m, "shift": shift.astype(jnp.float32), "w3m": w3m}


# ---------------------------------- Forward --------------------------------- #

@jax.jit
def discriminator_forward(img, prep):
    """img: (n, 1, 28, 28) f32 -> (n, 1) f32 in [0, 1]."""
    n = img.shape[0]

    # Host/XLA-side conv1 im2col in the phase-separated row order the fused
    # kernel expects (tiny: n*320*16 bf16 = 10 KB per image).
    x = img[:, 0]                                              # (n, 28, 28)
    xp = jnp.pad(x, ((0, 0), (1, 1), (1, 1)))                  # conv1 pad=1
    cols = [xp[:, i:i + 27:2, j:j + 27:2]                      # (n, 14, 14) each
            for i in range(4) for j in range(4)]
    p = jnp.stack(cols, axis=-1)                               # (n, 14, 14, 16)
    # One extra conv1-output ring on each side = conv2's zero padding; zero
    # patches -> zero conv1 activations (bias-free conv + LeakyReLU(0)=0).
    p = jnp.pad(p, ((0, 0), (1, 1), (1, 1), (0, 0)))           # (n, 16, 16, 16)
    # Row r = 2*kblk + phase -> split and reorder to (p_y, p_x, k_y, k_x).
    p = p.reshape(n, 8, 2, 8, 2, 16).transpose(0, 2, 4, 1, 3, 5)
    p = p.reshape(n, 4, 64, 16)                                # 4 phase planes
    p = jnp.pad(p, ((0, 0), (0, 0), (0, 16), (0, 0)))          # 80-row plane pitch
    p = p.reshape(n, 320, 16).astype(jnp.bfloat16)

    out = pl.pallas_call(
        _disc_fused_kernel,
        out_shape=jax.ShapeDtypeStruct((n, 1, 128), jnp.float32),
        grid=(n,),
        in_specs=[
            pl.BlockSpec((1, 320, 16), lambda i: (i, 0, 0)),     # per-image patches
            pl.BlockSpec((16, 128), lambda i: (0, 0)),           # weights stay
            pl.BlockSpec((16, 128, 256), lambda i: (0, 0, 0)),   # VMEM-resident
            pl.BlockSpec((1, 256), lambda i: (0, 0)),
            pl.BlockSpec((64, 256), lambda i: (0, 0)),
        ],
        out_specs=pl.BlockSpec((1, 1, 128), lambda i: (i, 0, 0)),
        compiler_params=pltpu.CompilerParams(
            dimension_semantics=("parallel",)),                  # megacore on v7x
    )(p, prep["w1m"], prep["w2m"], prep["shift"], prep["w3m"])

    return out[:, 0, :1]                                         # (n, 1)


# --------------------------- Params / reference ----------------------------- #

def init_params(key):
    ks = jax.random.split(key, 6)
    p = {}
    # Conv weights in PyTorch layout (Cout, Cin, kh, kw); bias=False per spec.
    p["w1"] = 0.02 * jax.random.normal(ks[0], (128, 1, 4, 4), jnp.float32)
    p["w2"] = 0.02 * jax.random.normal(ks[1], (256, 128, 4, 4), jnp.float32)
    p["w3"] = 0.02 * jax.random.normal(ks[2], (1, 256, 7, 7), jnp.float32)
    # BatchNorm2d(256) parameters / running stats (eval mode).
    p["bn_gamma"] = 1.0 + 0.1 * jax.random.normal(ks[3], (256,), jnp.float32)
    p["bn_beta"] = 0.1 * jax.random.normal(ks[4], (256,), jnp.float32)
    p["bn_mean"] = 0.1 * jax.random.normal(ks[5], (256,), jnp.float32)
    p["bn_var"] = jnp.ones((256,), jnp.float32)
    return p


def reference_forward(img, params, eps=1e-5):
    """Pure-JAX f32 reference (eval-mode BN, identity dropout)."""
    dn = ("NCHW", "OIHW", "NCHW")
    x = lax.conv_general_dilated(img, params["w1"], (2, 2), ((1, 1), (1, 1)),
                                 dimension_numbers=dn)
    x = jnp.where(x > 0, x, 0.2 * x)
    x = lax.conv_general_dilated(x, params["w2"], (2, 2), ((1, 1), (1, 1)),
                                 dimension_numbers=dn)
    g = params["bn_gamma"] / jnp.sqrt(params["bn_var"] + eps)
    x = (x - params["bn_mean"][None, :, None, None]) * g[None, :, None, None] \
        + params["bn_beta"][None, :, None, None]
    x = jnp.where(x > 0, x, 0.2 * x)
    x = lax.conv_general_dilated(x, params["w3"], (1, 1), ((0, 0), (0, 0)),
                                 dimension_numbers=dn)
    return jax.nn.sigmoid(x.reshape(-1, 1))


if __name__ == "__main__":
    key = jax.random.PRNGKey(0)
    k_img, k_par = jax.random.split(key)
    # MNIST-like input implied by the architecture: (batch, 1, 28, 28).
    img = jax.random.normal(k_img, (2, 1, 28, 28), jnp.float32)
    params = init_params(k_par)
    prep = prepare_params(params)                       # one-time weight prep

    out = jax.block_until_ready(discriminator_forward(img, prep))
    assert out.shape == (2, 1), out.shape
    assert bool(jnp.all((out >= 0.0) & (out <= 1.0)))

    ref = jax.block_until_ready(reference_forward(img, params))
    assert bool(jnp.all(jnp.abs(out - ref) < 1e-2)), (out, ref)   # bf16 drift tol
    print("KERNEL_OK")
</pallas_src>

<mosaic_0001>
module attributes {stable_mosaic.version = 11 : i64} {
  func.func @_disc_fused_kernel(%arg0: i32, %arg1: memref<1x320x16xbf16, #tpu.memory_space<vmem>>, %arg2: memref<16x128xbf16, #tpu.memory_space<vmem>>, %arg3: memref<16x128x256xbf16, #tpu.memory_space<vmem>>, %arg4: memref<1x256xf32, #tpu.memory_space<vmem>>, %arg5: memref<64x256xf32, #tpu.memory_space<vmem>>, %arg6: memref<1x1x128xf32, #tpu.memory_space<vmem>>) attributes {dimension_semantics = [#tpu.dimension_semantics<parallel>], iteration_bounds = array<i64: 2>, scalar_prefetch = 0 : i64, scratch_operands = 0 : i64, tpu.core_type = #tpu.core_type<tc>, window_params = [{transform_indices = @transform_0, window_bounds = array<i64: 1, 320, 16>}, {pipeline_mode = #tpu.pipeline_mode<synchronous>, transform_indices = @transform_1, window_bounds = array<i64: 16, 128>}, {pipeline_mode = #tpu.pipeline_mode<synchronous>, transform_indices = @transform_2, window_bounds = array<i64: 16, 128, 256>}, {pipeline_mode = #tpu.pipeline_mode<synchronous>, transform_indices = @transform_3, window_bounds = array<i64: 1, 256>}, {pipeline_mode = #tpu.pipeline_mode<synchronous>, transform_indices = @transform_4, window_bounds = array<i64: 64, 256>}, {transform_indices = @transform_5, window_bounds = array<i64: 1, 1, 128>}]} {
    %c0 = arith.constant 0 : index
    %c0_0 = arith.constant 0 : index
    %c0_1 = arith.constant 0 : index
    %0 = vector.load %arg1[%c0, %c0_0, %c0_1] : memref<1x320x16xbf16, #tpu.memory_space<vmem>>, vector<1x320x16xbf16>
    %1 = vector.shape_cast %0 : vector<1x320x16xbf16> to vector<320x16xbf16>
    %c0_2 = arith.constant 0 : index
    %c0_3 = arith.constant 0 : index
    %2 = vector.load %arg2[%c0_2, %c0_3] : memref<16x128xbf16, #tpu.memory_space<vmem>>, vector<16x128xbf16>
    %cst = arith.constant dense<0.000000e+00> : vector<320x128xf32>
    %3 = tpu.matmul %1, %2, %cst {dimension_numbers = #tpu.dot_dimension_numbers<[1], [0], [0], [1], [0, 0, 1, 1], [], []>} : vector<320x16xbf16>, vector<16x128xbf16>, vector<320x128xf32> -> vector<320x128xf32>
    %cst_4 = arith.constant 0.000000e+00 : f32
    %4 = vector.broadcast %cst_4 : f32 to vector<320x128xf32>
    %5 = arith.cmpf ogt, %3, %4 : vector<320x128xf32>
    %cst_5 = arith.constant 2.000000e-01 : f32
    %6 = vector.broadcast %cst_5 : f32 to vector<320x128xf32>
    %7 = arith.mulf %6, %3 : vector<320x128xf32>
    %8 = arith.select %5, %3, %7 : vector<320x128xi1>, vector<320x128xf32>
    %cst_6 = arith.constant 0.000000e+00 : f32
    %9 = vector.broadcast %cst_6 : f32 to vector<64x256xf32>
    %10 = vector.extract_strided_slice %8 {offsets = [0, 0], sizes = [64, 128], strides = [1, 1]} : vector<320x128xf32> to vector<64x128xf32>
    %11 = arith.truncf %10 : vector<64x128xf32> to vector<64x128xbf16>
    %c0_7 = arith.constant 0 : index
    %c0_8 = arith.constant 0 : index
    %c0_9 = arith.constant 0 : index
    %12 = vector.load %arg3[%c0_7, %c0_8, %c0_9] : memref<16x128x256xbf16, #tpu.memory_space<vmem>>, vector<1x128x256xbf16>
    %13 = vector.shape_cast %12 : vector<1x128x256xbf16> to vector<128x256xbf16>
    %cst_10 = arith.constant dense<0.000000e+00> : vector<64x256xf32>
    %14 = tpu.matmul %11, %13, %cst_10 {dimension_numbers = #tpu.dot_dimension_numbers<[1], [0], [0], [1], [0, 0, 1, 1], [], []>} : vector<64x128xbf16>, vector<128x256xbf16>, vector<64x256xf32> -> vector<64x256xf32>
    %15 = arith.addf %9, %14 : vector<64x256xf32>
    %16 = vector.extract_strided_slice %8 {offsets = [80, 0], sizes = [64, 128], strides = [1, 1]} : vector<320x128xf32> to vector<64x128xf32>
    %17 = arith.truncf %16 : vector<64x128xf32> to vector<64x128xbf16>
    %c1 = arith.constant 1 : index
    %c0_11 = arith.constant 0 : index
    %c0_12 = arith.constant 0 : index
    %18 = vector.load %arg3[%c1, %c0_11, %c0_12] : memref<16x128x256xbf16, #tpu.memory_space<vmem>>, vector<1x128x256xbf16>
    %19 = vector.shape_cast %18 : vector<1x128x256xbf16> to vector<128x256xbf16>
    %cst_13 = arith.constant dense<0.000000e+00> : vector<64x256xf32>
    %20 = tpu.matmul %17, %19, %cst_13 {dimension_numbers = #tpu.dot_dimension_numbers<[1], [0], [0], [1], [0, 0, 1, 1], [], []>} : vector<64x128xbf16>, vector<128x256xbf16>, vector<64x256xf32> -> vector<64x256xf32>
    %21 = arith.addf %15, %20 : vector<64x256xf32>
    %22 = vector.extract_strided_slice %8 {offsets = [1, 0], sizes = [64, 128], strides = [1, 1]} : vector<320x128xf32> to vector<64x128xf32>
    %23 = arith.truncf %22 : vector<64x128xf32> to vector<64x128xbf16>
    %c2 = arith.constant 2 : index
    %c0_14 = arith.constant 0 : index
    %c0_15 = arith.constant 0 : index
    %24 = vector.load %arg3[%c2, %c0_14, %c0_15] : memref<16x128x256xbf16, #tpu.memory_space<vmem>>, vector<1x128x256xbf16>
    %25 = vector.shape_cast %24 : vector<1x128x256xbf16> to vector<128x256xbf16>
    %cst_16 = arith.constant dense<0.000000e+00> : vector<64x256xf32>
    %26 = tpu.matmul %23, %25, %cst_16 {dimension_numbers = #tpu.dot_dimension_numbers<[1], [0], [0], [1], [0, 0, 1, 1], [], []>} : vector<64x128xbf16>, vector<128x256xbf16>, vector<64x256xf32> -> vector<64x256xf32>
    %27 = arith.addf %21, %26 : vector<64x256xf32>
    %28 = vector.extract_strided_slice %8 {offsets = [81, 0], sizes = [64, 128], strides = [1, 1]} : vector<320x128xf32> to vector<64x128xf32>
    %29 = arith.truncf %28 : vector<64x128xf32> to vector<64x128xbf16>
    %c3 = arith.constant 3 : index
    %c0_17 = arith.constant 0 : index
    %c0_18 = arith.constant 0 : index
    %30 = vector.load %arg3[%c3, %c0_17, %c0_18] : memref<16x128x256xbf16, #tpu.memory_space<vmem>>, vector<1x128x256xbf16>
    %31 = vector.shape_cast %30 : vector<1x128x256xbf16> to vector<128x256xbf16>
    %cst_19 = arith.constant dense<0.000000e+00> : vector<64x256xf32>
    %32 = tpu.matmul %29, %31, %cst_19 {dimension_numbers = #tpu.dot_dimension_numbers<[1], [0], [0], [1], [0, 0, 1, 1], [], []>} : vector<64x128xbf16>, vector<128x256xbf16>, vector<64x256xf32> -> vector<64x256xf32>
    %33 = arith.addf %27, %32 : vector<64x256xf32>
    %34 = vector.extract_strided_slice %8 {offsets = [160, 0], sizes = [64, 128], strides = [1, 1]} : vector<320x128xf32> to vector<64x128xf32>
    %35 = arith.truncf %34 : vector<64x128xf32> to vector<64x128xbf16>
    %c4 = arith.constant 4 : index
    %c0_20 = arith.constant 0 : index
    %c0_21 = arith.constant 0 : index
    %36 = vector.load %arg3[%c4, %c0_20, %c0_21] : memref<16x128x256xbf16, #tpu.memory_space<vmem>>, vector<1x128x256xbf16>
    %37 = vector.shape_cast %36 : vector<1x128x256xbf16> to vector<128x256xbf16>
    %cst_22 = arith.constant dense<0.000000e+00> : vector<64x256xf32>
    %38 = tpu.matmul %35, %37, %cst_22 {dimension_numbers = #tpu.dot_dimension_numbers<[1], [0], [0], [1], [0, 0, 1, 1], [], []>} : vector<64x128xbf16>, vector<128x256xbf16>, vector<64x256xf32> -> vector<64x256xf32>
    %39 = arith.addf %33, %38 : vector<64x256xf32>
    %40 = vector.extract_strided_slice %8 {offsets = [240, 0], sizes = [64, 128], strides = [1, 1]} : vector<320x128xf32> to vector<64x128xf32>
    %41 = arith.truncf %40 : vector<64x128xf32> to vector<64x128xbf16>
    %c5 = arith.constant 5 : index
    %c0_23 = arith.constant 0 : index
    %c0_24 = arith.constant 0 : index
    %42 = vector.load %arg3[%c5, %c0_23, %c0_24] : memref<16x128x256xbf16, #tpu.memory_space<vmem>>, vector<1x128x256xbf16>
    %43 = vector.shape_cast %42 : vector<1x128x256xbf16> to vector<128x256xbf16>
    %cst_25 = arith.constant dense<0.000000e+00> : vector<64x256xf32>
    %44 = tpu.matmul %41, %43, %cst_25 {dimension_numbers = #tpu.dot_dimension_numbers<[1], [0], [0], [1], [0, 0, 1, 1], [], []>} : vector<64x128xbf16>, vector<128x256xbf16>, vector<64x256xf32> -> vector<64x256xf32>
    %45 = arith.addf %39, %44 : vector<64x256xf32>
    %46 = vector.extract_strided_slice %8 {offsets = [161, 0], sizes = [64, 128], strides = [1, 1]} : vector<320x128xf32> to vector<64x128xf32>
    %47 = arith.truncf %46 : vector<64x128xf32> to vector<64x128xbf16>
    %c6 = arith.constant 6 : index
    %c0_26 = arith.constant 0 : index
    %c0_27 = arith.constant 0 : index
    %48 = vector.load %arg3[%c6, %c0_26, %c0_27] : memref<16x128x256xbf16, #tpu.memory_space<vmem>>, vector<1x128x256xbf16>
    %49 = vector.shape_cast %48 : vector<1x128x256xbf16> to vector<128x256xbf16>
    %cst_28 = arith.constant dense<0.000000e+00> : vector<64x256xf32>
    %50 = tpu.matmul %47, %49, %cst_28 {dimension_numbers = #tpu.dot_dimension_numbers<[1], [0], [0], [1], [0, 0, 1, 1], [], []>} : vector<64x128xbf16>, vector<128x256xbf16>, vector<64x256xf32> -> vector<64x256xf32>
    %51 = arith.addf %45, %50 : vector<64x256xf32>
    %52 = vector.extract_strided_slice %8 {offsets = [241, 0], sizes = [64, 128], strides = [1, 1]} : vector<320x128xf32> to vector<64x128xf32>
    %53 = arith.truncf %52 : vector<64x128xf32> to vector<64x128xbf16>
    %c7 = arith.constant 7 : index
    %c0_29 = arith.constant 0 : index
    %c0_30 = arith.constant 0 : index
    %54 = vector.load %arg3[%c7, %c0_29, %c0_30] : memref<16x128x256xbf16, #tpu.memory_space<vmem>>, vector<1x128x256xbf16>
    %55 = vector.shape_cast %54 : vector<1x128x256xbf16> to vector<128x256xbf16>
    %cst_31 = arith.constant dense<0.000000e+00> : vector<64x256xf32>
    %56 = tpu.matmul %53, %55, %cst_31 {dimension_numbers = #tpu.dot_dimension_numbers<[1], [0], [0], [1], [0, 0, 1, 1], [], []>} : vector<64x128xbf16>, vector<128x256xbf16>, vector<64x256xf32> -> vector<64x256xf32>
    %57 = arith.addf %51, %56 : vector<64x256xf32>
    %58 = vector.extract_strided_slice %8 {offsets = [8, 0], sizes = [64, 128], strides = [1, 1]} : vector<320x128xf32> to vector<64x128xf32>
    %59 = arith.truncf %58 : vector<64x128xf32> to vector<64x128xbf16>
    %c8 = arith.constant 8 : index
    %c0_32 = arith.constant 0 : index
    %c0_33 = arith.constant 0 : index
    %60 = vector.load %arg3[%c8, %c0_32, %c0_33] : memref<16x128x256xbf16, #tpu.memory_space<vmem>>, vector<1x128x256xbf16>
    %61 = vector.shape_cast %60 : vector<1x128x256xbf16> to vector<128x256xbf16>
    %cst_34 = arith.constant dense<0.000000e+00> : vector<64x256xf32>
    %62 = tpu.matmul %59, %61, %cst_34 {dimension_numbers = #tpu.dot_dimension_numbers<[1], [0], [0], [1], [0, 0, 1, 1], [], []>} : vector<64x128xbf16>, vector<128x256xbf16>, vector<64x256xf32> -> vector<64x256xf32>
    %63 = arith.addf %57, %62 : vector<64x256xf32>
    %64 = vector.extract_strided_slice %8 {offsets = [88, 0], sizes = [64, 128], strides = [1, 1]} : vector<320x128xf32> to vector<64x128xf32>
    %65 = arith.truncf %64 : vector<64x128xf32> to vector<64x128xbf16>
    %c9 = arith.constant 9 : index
    %c0_35 = arith.constant 0 : index
    %c0_36 = arith.constant 0 : index
    %66 = vector.load %arg3[%c9, %c0_35, %c0_36] : memref<16x128x256xbf16, #tpu.memory_space<vmem>>, vector<1x128x256xbf16>
    %67 = vector.shape_cast %66 : vector<1x128x256xbf16> to vector<128x256xbf16>
    %cst_37 = arith.constant dense<0.000000e+00> : vector<64x256xf32>
    %68 = tpu.matmul %65, %67, %cst_37 {dimension_numbers = #tpu.dot_dimension_numbers<[1], [0], [0], [1], [0, 0, 1, 1], [], []>} : vector<64x128xbf16>, vector<128x256xbf16>, vector<64x256xf32> -> vector<64x256xf32>
    %69 = arith.addf %63, %68 : vector<64x256xf32>
    %70 = vector.extract_strided_slice %8 {offsets = [9, 0], sizes = [64, 128], strides = [1, 1]} : vector<320x128xf32> to vector<64x128xf32>
    %71 = arith.truncf %70 : vector<64x128xf32> to vector<64x128xbf16>
    %c10 = arith.constant 10 : index
    %c0_38 = arith.constant 0 : index
    %c0_39 = arith.constant 0 : index
    %72 = vector.load %arg3[%c10, %c0_38, %c0_39] : memref<16x128x256xbf16, #tpu.memory_space<vmem>>, vector<1x128x256xbf16>
    %73 = vector.shape_cast %72 : vector<1x128x256xbf16> to vector<128x256xbf16>
    %cst_40 = arith.constant dense<0.000000e+00> : vector<64x256xf32>
    %74 = tpu.matmul %71, %73, %cst_40 {dimension_numbers = #tpu.dot_dimension_numbers<[1], [0], [0], [1], [0, 0, 1, 1], [], []>} : vector<64x128xbf16>, vector<128x256xbf16>, vector<64x256xf32> -> vector<64x256xf32>
    %75 = arith.addf %69, %74 : vector<64x256xf32>
    %76 = vector.extract_strided_slice %8 {offsets = [89, 0], sizes = [64, 128], strides = [1, 1]} : vector<320x128xf32> to vector<64x128xf32>
    %77 = arith.truncf %76 : vector<64x128xf32> to vector<64x128xbf16>
    %c11 = arith.constant 11 : index
    %c0_41 = arith.constant 0 : index
    %c0_42 = arith.constant 0 : index
    %78 = vector.load %arg3[%c11, %c0_41, %c0_42] : memref<16x128x256xbf16, #tpu.memory_space<vmem>>, vector<1x128x256xbf16>
    %79 = vector.shape_cast %78 : vector<1x128x256xbf16> to vector<128x256xbf16>
    %cst_43 = arith.constant dense<0.000000e+00> : vector<64x256xf32>
    %80 = tpu.matmul %77, %79, %cst_43 {dimension_numbers = #tpu.dot_dimension_numbers<[1], [0], [0], [1], [0, 0, 1, 1], [], []>} : vector<64x128xbf16>, vector<128x256xbf16>, vector<64x256xf32> -> vector<64x256xf32>
    %81 = arith.addf %75, %80 : vector<64x256xf32>
    %82 = vector.extract_strided_slice %8 {offsets = [168, 0], sizes = [64, 128], strides = [1, 1]} : vector<320x128xf32> to vector<64x128xf32>
    %83 = arith.truncf %82 : vector<64x128xf32> to vector<64x128xbf16>
    %c12 = arith.constant 12 : index
    %c0_44 = arith.constant 0 : index
    %c0_45 = arith.constant 0 : index
    %84 = vector.load %arg3[%c12, %c0_44, %c0_45] : memref<16x128x256xbf16, #tpu.memory_space<vmem>>, vector<1x128x256xbf16>
    %85 = vector.shape_cast %84 : vector<1x128x256xbf16> to vector<128x256xbf16>
    %cst_46 = arith.constant dense<0.000000e+00> : vector<64x256xf32>
    %86 = tpu.matmul %83, %85, %cst_46 {dimension_numbers = #tpu.dot_dimension_numbers<[1], [0], [0], [1], [0, 0, 1, 1], [], []>} : vector<64x128xbf16>, vector<128x256xbf16>, vector<64x256xf32> -> vector<64x256xf32>
    %87 = arith.addf %81, %86 : vector<64x256xf32>
    %88 = vector.extract_strided_slice %8 {offsets = [248, 0], sizes = [64, 128], strides = [1, 1]} : vector<320x128xf32> to vector<64x128xf32>
    %89 = arith.truncf %88 : vector<64x128xf32> to vector<64x128xbf16>
    %c13 = arith.constant 13 : index
    %c0_47 = arith.constant 0 : index
    %c0_48 = arith.constant 0 : index
    %90 = vector.load %arg3[%c13, %c0_47, %c0_48] : memref<16x128x256xbf16, #tpu.memory_space<vmem>>, vector<1x128x256xbf16>
    %91 = vector.shape_cast %90 : vector<1x128x256xbf16> to vector<128x256xbf16>
    %cst_49 = arith.constant dense<0.000000e+00> : vector<64x256xf32>
    %92 = tpu.matmul %89, %91, %cst_49 {dimension_numbers = #tpu.dot_dimension_numbers<[1], [0], [0], [1], [0, 0, 1, 1], [], []>} : vector<64x128xbf16>, vector<128x256xbf16>, vector<64x256xf32> -> vector<64x256xf32>
    %93 = arith.addf %87, %92 : vector<64x256xf32>
    %94 = vector.extract_strided_slice %8 {offsets = [169, 0], sizes = [64, 128], strides = [1, 1]} : vector<320x128xf32> to vector<64x128xf32>
    %95 = arith.truncf %94 : vector<64x128xf32> to vector<64x128xbf16>
    %c14 = arith.constant 14 : index
    %c0_50 = arith.constant 0 : index
    %c0_51 = arith.constant 0 : index
    %96 = vector.load %arg3[%c14, %c0_50, %c0_51] : memref<16x128x256xbf16, #tpu.memory_space<vmem>>, vector<1x128x256xbf16>
    %97 = vector.shape_cast %96 : vector<1x128x256xbf16> to vector<128x256xbf16>
    %cst_52 = arith.constant dense<0.000000e+00> : vector<64x256xf32>
    %98 = tpu.matmul %95, %97, %cst_52 {dimension_numbers = #tpu.dot_dimension_numbers<[1], [0], [0], [1], [0, 0, 1, 1], [], []>} : vector<64x128xbf16>, vector<128x256xbf16>, vector<64x256xf32> -> vector<64x256xf32>
    %99 = arith.addf %93, %98 : vector<64x256xf32>
    %100 = vector.extract_strided_slice %8 {offsets = [249, 0], sizes = [64, 128], strides = [1, 1]} : vector<320x128xf32> to vector<64x128xf32>
    %101 = arith.truncf %100 : vector<64x128xf32> to vector<64x128xbf16>
    %c15 = arith.constant 15 : index
    %c0_53 = arith.constant 0 : index
    %c0_54 = arith.constant 0 : index
    %102 = vector.load %arg3[%c15, %c0_53, %c0_54] : memref<16x128x256xbf16, #tpu.memory_space<vmem>>, vector<1x128x256xbf16>
    %103 = vector.shape_cast %102 : vector<1x128x256xbf16> to vector<128x256xbf16>
    %cst_55 = arith.constant dense<0.000000e+00> : vector<64x256xf32>
    %104 = tpu.matmul %101, %103, %cst_55 {dimension_numbers = #tpu.dot_dimension_numbers<[1], [0], [0], [1], [0, 0, 1, 1], [], []>} : vector<64x128xbf16>, vector<128x256xbf16>, vector<64x256xf32> -> vector<64x256xf32>
    %105 = arith.addf %99, %104 : vector<64x256xf32>
    %c0_56 = arith.constant 0 : index
    %c0_57 = arith.constant 0 : index
    %106 = vector.load %arg4[%c0_56, %c0_57] : memref<1x256xf32, #tpu.memory_space<vmem>>, vector<1x256xf32>
    %107 = vector.broadcast %106 : vector<1x256xf32> to vector<64x256xf32>
    %108 = arith.addf %105, %107 : vector<64x256xf32>
    %cst_58 = arith.constant 0.000000e+00 : f32
    %109 = vector.broadcast %cst_58 : f32 to vector<64x256xf32>
    %110 = arith.cmpf ogt, %108, %109 : vector<64x256xf32>
    %cst_59 = arith.constant 2.000000e-01 : f32
    %111 = vector.broadcast %cst_59 : f32 to vector<64x256xf32>
    %112 = arith.mulf %111, %108 : vector<64x256xf32>
    %113 = arith.select %110, %108, %112 : vector<64x256xi1>, vector<64x256xf32>
    %c0_60 = arith.constant 0 : index
    %c0_61 = arith.constant 0 : index
    %114 = vector.load %arg5[%c0_60, %c0_61] : memref<64x256xf32, #tpu.memory_space<vmem>>, vector<64x256xf32>
    %115 = arith.mulf %113, %114 : vector<64x256xf32>
    %cst_62 = arith.constant dense<0.000000e+00> : vector<64xf32>
    %116 = vector.multi_reduction <add>, %115, %cst_62 [1] : vector<64x256xf32> to vector<64xf32>
    %117 = vector.shape_cast %116 : vector<64xf32> to vector<64x1xf32>
    %cst_63 = arith.constant dense<0.000000e+00> : vector<1xf32>
    %118 = vector.multi_reduction <add>, %117, %cst_63 [0] : vector<64x1xf32> to vector<1xf32>
    %119 = vector.shape_cast %118 : vector<1xf32> to vector<1x1xf32>
    %cst_64 = arith.constant 0.000000e+00 : f32
    %120 = vector.broadcast %cst_64 : f32 to vector<1x1xf32>
    %121 = arith.subf %120, %119 : vector<1x1xf32>
    %122 = math.exp %121 : vector<1x1xf32>
    %cst_65 = arith.constant 1.000000e+00 : f32
    %123 = vector.broadcast %cst_65 : f32 to vector<1x1xf32>
    %124 = arith.addf %123, %122 : vector<1x1xf32>
    %cst_66 = arith.constant 1.000000e+00 : f32
    %125 = vector.broadcast %cst_66 : f32 to vector<1x1xf32>
    %126 = arith.divf %125, %124 : vector<1x1xf32>
    %127 = vector.shape_cast %126 : vector<1x1xf32> to vector<1x1x1xf32>
    %128 = vector.shape_cast %127 : vector<1x1x1xf32> to vector<1x1x1xf32>
    %129 = vector.broadcast %128 : vector<1x1x1xf32> to vector<1x1x128xf32>
    %c0_67 = arith.constant 0 : index
    %c0_68 = arith.constant 0 : index
    %c0_69 = arith.constant 0 : index
    %130 = vector.load %arg6[%c0_67, %c0_68, %c0_69] : memref<1x1x128xf32, #tpu.memory_space<vmem>>, vector<1x1x128xf32>
    tpu.vector_store %arg6[%c0_67, %c0_68, %c0_69], %129 {strides = array<i32>} : memref<1x1x128xf32, #tpu.memory_space<vmem>>, vector<1x1x128xf32>,
    return
  }
  func.func @transform_0(%arg0: i32) -> (i32, i32, i32) {
    %c0_i32 = arith.constant 0 : i32
    %c0_i32_0 = arith.constant 0 : i32
    %c0_i32_1 = arith.constant 0 : i32
    return %arg0, %c0_i32, %c0_i32_0 : i32, i32, i32
  }
  func.func @transform_1(%arg0: i32) -> (i32, i32) {
    %c0_i32 = arith.constant 0 : i32
    %c0_i32_0 = arith.constant 0 : i32
    %c0_i32_1 = arith.constant 0 : i32
    return %c0_i32, %c0_i32_0 : i32, i32
  }
  func.func @transform_2(%arg0: i32) -> (i32, i32, i32) {
    %c0_i32 = arith.constant 0 : i32
    %c0_i32_0 = arith.constant 0 : i32
    %c0_i32_1 = arith.constant 0 : i32
    %c0_i32_2 = arith.constant 0 : i32
    return %c0_i32, %c0_i32_0, %c0_i32_1 : i32, i32, i32
  }
  func.func @transform_3(%arg0: i32) -> (i32, i32) {
    %c0_i32 = arith.constant 0 : i32
    %c0_i32_0 = arith.constant 0 : i32
    %c0_i32_1 = arith.constant 0 : i32
    return %c0_i32, %c0_i32_0 : i32, i32
  }
  func.func @transform_4(%arg0: i32) -> (i32, i32) {
    %c0_i32 = arith.constant 0 : i32
    %c0_i32_0 = arith.constant 0 : i32
    %c0_i32_1 = arith.constant 0 : i32
    return %c0_i32, %c0_i32_0 : i32, i32
  }
  func.func @transform_5(%arg0: i32) -> (i32, i32, i32) {
    %c0_i32 = arith.constant 0 : i32
    %c0_i32_0 = arith.constant 0 : i32
    %c0_i32_1 = arith.constant 0 : i32
    return %arg0, %c0_i32, %c0_i32_0 : i32, i32, i32
  }
}

</mosaic_0001>

<llo_original>
// kernel: discriminator_forward.1
$region0: #{discriminator_forward.1}
  #allocation0 [shape = 'u32[]', space=smem, size = 0x4, offset = 0x4, fixed_abs, tag = 'smem constant byte address 0x4 - core index']
  #allocation1 [shape = 'u32[144,128]{1,0:T(1,128)}', space=vmem, size = 0x12000, scoped, tag = 'internal scratch']
  %s0 = inlined_call_operand.vmem [shape: bf16[2,320,16], index: 0, kind: input, shape index: {}]
  %s1 = inlined_call_operand.vmem [shape: bf16[16,128], index: 1, kind: input, shape index: {}]
  %s2 = inlined_call_operand.vmem [shape: bf16[16,128,256], index: 2, kind: input, shape index: {}]
  %s3 = inlined_call_operand.vmem [shape: f32[1,256], index: 3, kind: input, shape index: {}]
  %s4 = inlined_call_operand.vmem [shape: f32[64,256], index: 4, kind: input, shape index: {}]
  %s5 = inlined_call_operand.vmem [shape: f32[2,1,128], index: 5, kind: output, shape index: {}]
  %s6 = sld [smem:[#allocation0]]
  $region53: #{discriminator_forward.1} parent=0
    _
  %s8 = ssub.s32 1, %s6
  %s9 = scalar_select 0, %s8, %s6
  loop: start=0, step=1, limit=4
  $region2: #{discriminator_forward.1} parent=0 // loop_pre_header
    _
  $region3: #{discriminator_forward.1} parent=0 // loop_header
    %s11 = sphi 0, %s15
    %p12 = scmp.ge.s32.totalorder %s11, 4
    %s21 = sphi 0, %s23
    %s24 = sphi 0, %s21
    %s25 = sphi 0, %s24
    %s41 = sphi 0, %s25
    %s45 = sphi 0, %s45
    %s47 = sphi 0, %s45
    %s48 = sphi 0, %s47
    %s62 = sphi 0, %s48
    %s66 = sphi 0, %s66
    %s68 = sphi 0, %s66
    %s69 = sphi 0, %s68
    %s83 = sphi 0, %s69
    %s87 = sphi 0, %s87
    %s89 = sphi 0, %s87
    %s90 = sphi 0, %s89
    %s104 = sphi 0, %s90
    %s108 = sphi 0, %s108
    %s110 = sphi 0, %s108
    %s111 = sphi 0, %s110
    %s125 = sphi 0, %s111
    %s131 = sphi 0, %s133
    %s134 = sphi 0, %s131
    %s135 = sphi 0, %s134
    %s151 = sphi 0, %s135
  $region4: #{discriminator_forward.1} parent=0 // loop_header_branch
    %14 = sbr.rel (%p12) target = $region8
  $region5: #{discriminator_forward.1} parent=0 // loop_body
    %s16 = ssub.s32 %s11, 1
    %s17 = ssub.s32 %s11, 2
    %s18 = sadd.s32 %s11, 1
    %s19 = ssub.s32 %s11, %s18
    %p20 = scmp.eq.s32.totalorder %s19, 0
    %s22 = sadd.s32 %s21, 1
    %s23 = scalar_select %p20, %s21, %s22
    %p26 = pneg %p20
    %p27 = scmp.eq.s32.totalorder %s11, 1
    %p28 = por %p26, %p27
    %p29 = scmp.ne.s32.totalorder %s21, %s24
    %p30 = scmp.eq.s32.totalorder %s11, 0
    %p31 = por %p29, %p30
    %p32 = scmp.ne.s32.totalorder %s21, %s24
    %p33 = scmp.eq.s32.totalorder %s16, 1
    %p34 = por %p32, %p33
    %p35 = scmp.ne.s32.totalorder %s24, %s25
    %p36 = scmp.eq.s32.totalorder %s16, 0
    %p37 = por %p35, %p36
    %p38 = scmp.ne.s32.totalorder %s24, %s25
    %p39 = scmp.eq.s32.totalorder %s17, 1
    %p40 = por %p38, %p39
    %p42 = scmp.ne.s32.totalorder %s25, %s41
    %p43 = scmp.eq.s32.totalorder %s17, 0
    %p44 = por %p42, %p43
    %s46 = sadd.s32 %s45, 1
    %p49 = scmp.eq.s32.totalorder %s11, 1
    %p50 = scmp.ne.s32.totalorder %s45, %s47
    %p51 = scmp.eq.s32.totalorder %s11, 0
    %p52 = por %p50, %p51
    %p53 = scmp.ne.s32.totalorder %s45, %s47
    %p54 = scmp.eq.s32.totalorder %s16, 1
    %p55 = por %p53, %p54
    %p56 = scmp.ne.s32.totalorder %s47, %s48
    %p57 = scmp.eq.s32.totalorder %s16, 0
    %p58 = por %p56, %p57
    %p59 = scmp.ne.s32.totalorder %s47, %s48
    %p60 = scmp.eq.s32.totalorder %s17, 1
    %p61 = por %p59, %p60
    %p63 = scmp.ne.s32.totalorder %s48, %s62
    %p64 = scmp.eq.s32.totalorder %s17, 0
    %p65 = por %p63, %p64
    %s67 = sadd.s32 %s66, 1
    %p70 = scmp.eq.s32.totalorder %s11, 1
    %p71 = scmp.ne.s32.totalorder %s66, %s68
    %p72 = scmp.eq.s32.totalorder %s11, 0
    %p73 = por %p71, %p72
    %p74 = scmp.ne.s32.totalorder %s66, %s68
    %p75 = scmp.eq.s32.totalorder %s16, 1
    %p76 = por %p74, %p75
    %p77 = scmp.ne.s32.totalorder %s68, %s69
    %p78 = scmp.eq.s32.totalorder %s16, 0
    %p79 = por %p77, %p78
    %p80 = scmp.ne.s32.totalorder %s68, %s69
    %p81 = scmp.eq.s32.totalorder %s17, 1
    %p82 = por %p80, %p81
    %p84 = scmp.ne.s32.totalorder %s69, %s83
    %p85 = scmp.eq.s32.totalorder %s17, 0
    %p86 = por %p84, %p85
    %s88 = sadd.s32 %s87, 1
    %p91 = scmp.eq.s32.totalorder %s11, 1
    %p92 = scmp.ne.s32.totalorder %s87, %s89
    %p93 = scmp.eq.s32.totalorder %s11, 0
    %p94 = por %p92, %p93
    %p95 = scmp.ne.s32.totalorder %s87, %s89
    %p96 = scmp.eq.s32.totalorder %s16, 1
    %p97 = por %p95, %p96
    %p98 = scmp.ne.s32.totalorder %s89, %s90
    %p99 = scmp.eq.s32.totalorder %s16, 0
    %p100 = por %p98, %p99
    %p101 = scmp.ne.s32.totalorder %s89, %s90
    %p102 = scmp.eq.s32.totalorder %s17, 1
    %p103 = por %p101, %p102
    %p105 = scmp.ne.s32.totalorder %s90, %s104
    %p106 = scmp.eq.s32.totalorder %s17, 0
    %p107 = por %p105, %p106
    %s109 = sadd.s32 %s108, 1
    %p112 = scmp.eq.s32.totalorder %s11, 1
    %p113 = scmp.ne.s32.totalorder %s108, %s110
    %p114 = scmp.eq.s32.totalorder %s11, 0
    %p115 = por %p113, %p114
    %p116 = scmp.ne.s32.totalorder %s108, %s110
    %p117 = scmp.eq.s32.totalorder %s16, 1
    %p118 = por %p116, %p117
    %p119 = scmp.ne.s32.totalorder %s110, %s111
    %p120 = scmp.eq.s32.totalorder %s16, 0
    %p121 = por %p119, %p120
    %p122 = scmp.ne.s32.totalorder %s110, %s111
    %p123 = scmp.eq.s32.totalorder %s17, 1
    %p124 = por %p122, %p123
    %p126 = scmp.ne.s32.totalorder %s111, %s125
    %p127 = scmp.eq.s32.totalorder %s17, 0
    %p128 = por %p126, %p127
    %s129 = ssub.s32 %s11, %s18
    %p130 = scmp.eq.s32.totalorder %s129, 0
    %s132 = sadd.s32 %s131, 1
    %s133 = scalar_select %p130, %s131, %s132
    %p136 = pneg %p130
    %p137 = scmp.eq.s32.totalorder %s11, 1
    %p138 = por %p136, %p137
    %p139 = scmp.ne.s32.totalorder %s131, %s134
    %p140 = scmp.eq.s32.totalorder %s11, 0
    %p141 = por %p139, %p140
    %p142 = scmp.ne.s32.totalorder %s131, %s134
    %p143 = scmp.eq.s32.totalorder %s16, 1
    %p144 = por %p142, %p143
    %p145 = scmp.ne.s32.totalorder %s134, %s135
    %p146 = scmp.eq.s32.totalorder %s16, 0
    %p147 = por %p145, %p146
    %p148 = scmp.ne.s32.totalorder %s134, %s135
    %p149 = scmp.eq.s32.totalorder %s17, 1
    %p150 = por %p148, %p149
    %p152 = scmp.ne.s32.totalorder %s135, %s151
    %p153 = scmp.eq.s32.totalorder %s17, 0
    %p154 = por %p152, %p153
    %p155 = scmp.le.s32.totalorder 1, %s11
    %p156 = scmp.lt.s32.totalorder %s11, 3
    %p157 = pnand %p155, %p156
    %p158 = pneg %p157
    // Predicated region
    $region9: #{discriminator_forward.1} parent=5 // pred_check
      _
    $region10: #{discriminator_forward.1} parent=5 // pred_check_branch
      %160 = sbr.rel (%p157) target = $region12
    $region11: #{discriminator_forward.1} parent=5 // pred_region
      %s161 = ssub.s32 %s11, 1
      // Predicated region
      $region13: #{discriminator_forward.1} parent=11 // pred_check
        %p162 = pneg %p58
      $region14: #{discriminator_forward.1} parent=11 // pred_check_branch
        %164 = sbr.rel (%p162) target = $region16
      $region15: #{discriminator_forward.1} parent=11 // pred_region
        _
      $region16: #{discriminator_forward.1} parent=11 // pred_fallthru
        _
      // Predicated region
      $region17: #{discriminator_forward.1} parent=11 // pred_check
        %p165 = pneg %p79
      $region18: #{discriminator_forward.1} parent=11 // pred_check_branch
        %167 = sbr.rel (%p165) target = $region20
      $region19: #{discriminator_forward.1} parent=11 // pred_region
        _
      $region20: #{discriminator_forward.1} parent=11 // pred_fallthru
        _
      // Predicated region
      $region21: #{discriminator_forward.1} parent=11 // pred_check
        %p168 = pneg %p100
      $region22: #{discriminator_forward.1} parent=11 // pred_check_branch
        %170 = sbr.rel (%p168) target = $region24
      $region23: #{discriminator_forward.1} parent=11 // pred_region
        _
      $region24: #{discriminator_forward.1} parent=11 // pred_fallthru
        _
      // Predicated region
      $region25: #{discriminator_forward.1} parent=11 // pred_check
        %p171 = pneg %p121
      $region26: #{discriminator_forward.1} parent=11 // pred_check_branch
        %173 = sbr.rel (%p171) target = $region28
      $region27: #{discriminator_forward.1} parent=11 // pred_region
        _
      $region28: #{discriminator_forward.1} parent=11 // pred_fallthru
        _
    $region12: #{discriminator_forward.1} parent=5 // pred_fallthru
      _
    %p174 = scmp.lt.s32.totalorder %s11, 2
    // Predicated region
    $region29: #{discriminator_forward.1} parent=5 // pred_check
      %p175 = pneg %p174
    $region30: #{discriminator_forward.1} parent=5 // pred_check_branch
      %177 = sbr.rel (%p175) target = $region32
    $region31: #{discriminator_forward.1} parent=5 // pred_region
      // Predicated region
      $region33: #{discriminator_forward.1} parent=31 // pred_check
        %p178 = pneg %p31
      $region34: #{discriminator_forward.1} parent=31 // pred_check_branch
        %180 = sbr.rel (%p178) target = $region36
      $region35: #{discriminator_forward.1} parent=31 // pred_region
        %p181 = scmp.lt.s32.totalorder %s11, 1
        %s182 = scalar_select %p181, %s11, 1
        %s183 = smul.addr %s182, 40
        %s184 = smul.addr %s183, 4
        %s185 = scalar_lea.vmem %s0, %s184
      $region36: #{discriminator_forward.1} parent=31 // pred_fallthru
        _
    $region32: #{discriminator_forward.1} parent=5 // pred_fallthru
      _
    %p186 = scmp.le.s32.totalorder 1, %s11
    %p187 = scmp.lt.s32.totalorder %s11, 3
    %p188 = pnand %p186, %p187
    %p189 = pneg %p188
    // Predicated region
    $region37: #{discriminator_forward.1} parent=5 // pred_check
      _
    $region38: #{discriminator_forward.1} parent=5 // pred_check_branch
      %191 = sbr.rel (%p188) target = $region40
    $region39: #{discriminator_forward.1} parent=5 // pred_region
      %s192 = ssub.s32 %s11, 1
      %p193 = scmp.lt.s32.totalorder %s16, 1
      %s194 = scalar_select %p193, %s16, 1
      %s195 = smul.addr %s194, 40
      %s196 = smul.addr %s195, 4
      %s197 = scalar_lea.vmem %s0, %s196
      %p198 = pneg %p37
      %p199 = pneg %p34
      %p200 = pneg %p58
      %p201 = pneg %p55
      %p202 = pneg %p79
      %p203 = pneg %p76
      %p204 = pneg %p100
      %p205 = pneg %p97
      %p206 = pneg %p121
      %p207 = pneg %p118
      %p208 = pneg %p147
      %p209 = pneg %p144
      %p210 = scmp.lt.s32.totalorder %s16, 1
      %s211 = scalar_select %p210, %s16, 1
      %s212 = scalar_lea.vmem %s5, %s211
      %p213 = scmp.lt.s32.totalorder %s16, 1
      %s214 = scalar_select %p213, %s16, 1
      %s215 = smul.addr %s214, 40
      %s216 = smul.addr %s215, 4
      %s217 = scalar_lea.vmem %s0, %s216
      %p218 = scmp.lt.s32.totalorder %s16, 1
      %s219 = scalar_select %p218, %s16, 1
      %s220 = scalar_lea.vmem %s5, %s219
      %v222 = vld [vmem:[%s217] sm:$0xf]
      %v223 = vld [vmem:[%s217 + $0x4] sm:$0xf]
      %v224 = vld [vmem:[%s217 + $0x8] sm:$0xf]
      %v225 = vld [vmem:[%s217 + $0xc] sm:$0xf]
      %v226 = vld [vmem:[%s217 + $0x10] sm:$0xf]
      %v227 = vld [vmem:[%s217 + $0x14] sm:$0xf]
      %v228 = vld [vmem:[%s217 + $0x18] sm:$0xf]
      %v229 = vld [vmem:[%s217 + $0x1c] sm:$0xf]
      %v230 = vld [vmem:[%s217 + $0x20] sm:$0xf]
      %v231 = vld [vmem:[%s217 + $0x24] sm:$0xf]
      %v232 = vld [vmem:[%s217 + $0x28] sm:$0xf]
      %v233 = vld [vmem:[%s217 + $0x2c] sm:$0xf]
      %v234 = vld [vmem:[%s217 + $0x30] sm:$0xf]
      %v235 = vld [vmem:[%s217 + $0x34] sm:$0xf]
      %v236 = vld [vmem:[%s217 + $0x38] sm:$0xf]
      %v237 = vld [vmem:[%s217 + $0x3c] sm:$0xf]
      %v238 = vld [vmem:[%s217 + $0x40] sm:$0xf]
      %v239 = vld [vmem:[%s217 + $0x44] sm:$0xf]
      %v240 = vld [vmem:[%s217 + $0x48] sm:$0xf]
      %v241 = vld [vmem:[%s217 + $0x4c] sm:$0xf]
      %v242 = vld [vmem:[%s217 + $0x50] sm:$0xf]
      %v243 = vld [vmem:[%s217 + $0x54] sm:$0xf]
      %v244 = vld [vmem:[%s217 + $0x58] sm:$0xf]
      %v245 = vld [vmem:[%s217 + $0x5c] sm:$0xf]
      %v246 = vld [vmem:[%s217 + $0x60] sm:$0xf]
      %v247 = vld [vmem:[%s217 + $0x64] sm:$0xf]
      %v248 = vld [vmem:[%s217 + $0x68] sm:$0xf]
      %v249 = vld [vmem:[%s217 + $0x6c] sm:$0xf]
      %v250 = vld [vmem:[%s217 + $0x70] sm:$0xf]
      %v251 = vld [vmem:[%s217 + $0x74] sm:$0xf]
      %v252 = vld [vmem:[%s217 + $0x78] sm:$0xf]
      %v253 = vld [vmem:[%s217 + $0x7c] sm:$0xf]
      %v254 = vld [vmem:[%s217 + $0x80] sm:$0xf]
      %v255 = vld [vmem:[%s217 + $0x84] sm:$0xf]
      %v256 = vld [vmem:[%s217 + $0x88] sm:$0xf]
      %v257 = vld [vmem:[%s217 + $0x8c] sm:$0xf]
      %v258 = vld [vmem:[%s217 + $0x90] sm:$0xf]
      %v259 = vld [vmem:[%s217 + $0x94] sm:$0xf]
      %v260 = vld [vmem:[%s217 + $0x98] sm:$0xf]
      %v261 = vld [vmem:[%s217 + $0x9c] sm:$0xf]
      %v262 = vld [vmem:[%s1] sm:$0xf]
      %v263 = vld [vmem:[%s1 + $0x4] sm:$0xf]
      %v304 = vunpack.c.l.b16 %v222
      %v305 = vunpack.c.l.b16 %v223
      %v306 = vunpack.c.l.b16 %v224
      %v307 = vunpack.c.l.b16 %v225
      %v308 = vunpack.c.l.b16 %v226
      %v309 = vunpack.c.l.b16 %v227
      %v310 = vunpack.c.l.b16 %v228
      %v311 = vunpack.c.l.b16 %v229
      %v312 = vunpack.c.l.b16 %v230
      %v313 = vunpack.c.l.b16 %v231
      %v314 = vunpack.c.l.b16 %v232
      %v315 = vunpack.c.l.b16 %v233
      %v316 = vunpack.c.l.b16 %v234
      %v317 = vunpack.c.l.b16 %v235
      %v318 = vunpack.c.l.b16 %v236
      %v319 = vunpack.c.l.b16 %v237
      %v320 = vunpack.c.l.b16 %v238
      %v321 = vunpack.c.l.b16 %v239
      %v322 = vunpack.c.l.b16 %v240
      %v323 = vunpack.c.l.b16 %v241
      %v324 = vunpack.c.l.b16 %v242
      %v325 = vunpack.c.l.b16 %v243
      %v326 = vunpack.c.l.b16 %v244
      %v327 = vunpack.c.l.b16 %v245
      %v328 = vunpack.c.l.b16 %v246
      %v329 = vunpack.c.l.b16 %v247
      %v330 = vunpack.c.l.b16 %v248
      %v331 = vunpack.c.l.b16 %v249
      %v332 = vunpack.c.l.b16 %v250
      %v333 = vunpack.c.l.b16 %v251
      %v334 = vunpack.c.l.b16 %v252
      %v335 = vunpack.c.l.b16 %v253
      %v336 = vunpack.c.l.b16 %v254
      %v337 = vunpack.c.l.b16 %v255
      %v338 = vunpack.c.l.b16 %v256
      %v339 = vunpack.c.l.b16 %v257
      %v340 = vunpack.c.l.b16 %v258
      %v341 = vunpack.c.l.b16 %v259
      %v342 = vunpack.c.l.b16 %v260
      %v343 = vunpack.c.l.b16 %v261
      %v344 = vpack.c.b16 %v305, %v304
      %v345 = vpack.c.b16 %v307, %v306
      %v346 = vpack.c.b16 %v309, %v308
      %v347 = vpack.c.b16 %v311, %v310
      %v348 = vpack.c.b16 %v313, %v312
      %v349 = vpack.c.b16 %v315, %v314
      %v350 = vpack.c.b16 %v317, %v316
      %v351 = vpack.c.b16 %v319, %v318
      %v352 = vpack.c.b16 %v321, %v320
      %v353 = vpack.c.b16 %v323, %v322
      %v354 = vpack.c.b16 %v325, %v324
      %v355 = vpack.c.b16 %v327, %v326
      %v356 = vpack.c.b16 %v329, %v328
      %v357 = vpack.c.b16 %v331, %v330
      %v358 = vpack.c.b16 %v333, %v332
      %v359 = vpack.c.b16 %v335, %v334
      %v360 = vpack.c.b16 %v337, %v336
      %v361 = vpack.c.b16 %v339, %v338
      %v362 = vpack.c.b16 %v341, %v340
      %v363 = vpack.c.b16 %v343, %v342
      %v366 = vunpack.c.l.b16 %v262
      %v367 = vunpack.c.l.b16 %v263
      %v368 = vpack.c.b16 %v367, %v366
      %vm370 = vcmask 130048
      %v372 = vsel %vm370, %v344, 0
      %v375 = vsel %vm370, %v345, 0
      %v378 = vsel %vm370, %v346, 0
      %v381 = vsel %vm370, %v347, 0
      %v384 = vsel %vm370, %v348, 0
      %v387 = vsel %vm370, %v349, 0
      %v390 = vsel %vm370, %v350, 0
      %v393 = vsel %vm370, %v351, 0
      %v396 = vsel %vm370, %v352, 0
      %v399 = vsel %vm370, %v353, 0
      %v402 = vsel %vm370, %v354, 0
      %v405 = vsel %vm370, %v355, 0
      %v408 = vsel %vm370, %v356, 0
      %v411 = vsel %vm370, %v357, 0
      %v414 = vsel %vm370, %v358, 0
      %v417 = vsel %vm370, %v359, 0
      %v420 = vsel %vm370, %v360, 0
      %v423 = vsel %vm370, %v361, 0
      %v426 = vsel %vm370, %v362, 0
      %v429 = vsel %vm370, %v363, 0
      %431 = vmatprep.subr.bf16.mxu0 0
      %432 = vmatpush1.bf16.msra.mxu0 0
      %433 = vmatprep.subr.bf16.mxu0 0
      %434 = vmatpush1.bf16.msra.mxu0 0
      %435 = vmatprep.subr.bf16.mxu0 0
      %436 = vmatpush1.bf16.msra.mxu0 0
      %437 = vmatprep.subr.bf16.mxu0 0
      %438 = vmatpush1.bf16.msra.mxu0 0
      %439 = vmatprep.subr.bf16.mxu0 0
      %440 = vmatpush1.bf16.msra.mxu0 0
      %441 = vmatprep.subr.bf16.mxu0 0
      %442 = vmatpush1.bf16.msra.mxu0 0
      %443 = vmatprep.subr.bf16.mxu0 0
      %444 = vmatpush1.bf16.msra.mxu0 0
      %445 = vmatprep.subr.bf16.mxu0 0
      %446 = vmatpush1.bf16.msra.mxu0 %v368
      %447 = vmatprep.subr.bf16.mxu0 0
      %448 = vmatpush2.bf16.msra.mxu0 0
      %449 = vmatprep.subr.bf16.mxu0 0
      %450 = vmatpush2.bf16.msra.mxu0 0
      %451 = vmatprep.subr.bf16.mxu0 0
      %452 = vmatpush2.bf16.msra.mxu0 0
      %453 = vmatprep.subr.bf16.mxu0 0
      %454 = vmatpush2.bf16.msra.mxu0 0
      %455 = vmatprep.subr.bf16.mxu0 0
      %456 = vmatpush2.bf16.msra.mxu0 0
      %457 = vmatprep.subr.bf16.mxu0 0
      %458 = vmatpush2.bf16.msra.mxu0 0
      %459 = vmatprep.subr.bf16.mxu0 0
      %460 = vmatpush2.bf16.msra.mxu0 0
      %461 = vmatprep.subr.bf16.mxu0 0
      %462 = vmatpush2.bf16.msra.mxu0 0
      %463 = vmatprep.mubr.bf16.mxu0 0
      %464 = vmatmul.mubr.bf16.gmra.mxu0 %v372
      %v465 = vpop.f32.mrf.mxu0
      %v466 = vadd.f32 0.0, %v465
      %v467 = vpop.f32.mrf.mxu0
      %v468 = vpop.f32.mrf.mxu0
      %v469 = vadd.f32 0.0, %v468
      %v470 = vpop.f32.mrf.mxu0
      %471 = vmatprep.mubr.bf16.mxu0 0
      %472 = vmatmul.mubr.bf16.gmra.mxu0 %v375
      %v473 = vpop.f32.mrf.mxu0
      %v474 = vadd.f32 0.0, %v473
      %v475 = vpop.f32.mrf.mxu0
      %v476 = vpop.f32.mrf.mxu0
      %v477 = vadd.f32 0.0, %v476
      %v478 = vpop.f32.mrf.mxu0
      %479 = vmatprep.mubr.bf16.mxu0 0
      %480 = vmatmul.mubr.bf16.gmra.mxu0 %v378
      %v481 = vpop.f32.mrf.mxu0
      %v482 = vadd.f32 0.0, %v481
      %v483 = vpop.f32.mrf.mxu0
      %v484 = vpop.f32.mrf.mxu0
      %v485 = vadd.f32 0.0, %v484
      %v486 = vpop.f32.mrf.mxu0
      %487 = vmatprep.mubr.bf16.mxu0 0
      %488 = vmatmul.mubr.bf16.gmra.mxu0 %v381
      %v489 = vpop.f32.mrf.mxu0
      %v490 = vadd.f32 0.0, %v489
      %v491 = vpop.f32.mrf.mxu0
      %v492 = vpop.f32.mrf.mxu0
      %v493 = vadd.f32 0.0, %v492
      %v494 = vpop.f32.mrf.mxu0
      %495 = vmatprep.mubr.bf16.mxu0 0
      %496 = vmatmul.mubr.bf16.gmra.mxu0 %v384
      %v497 = vpop.f32.mrf.mxu0
      %v498 = vadd.f32 0.0, %v497
      %v499 = vpop.f32.mrf.mxu0
      %v500 = vpop.f32.mrf.mxu0
      %v501 = vadd.f32 0.0, %v500
      %v502 = vpop.f32.mrf.mxu0
      %503 = vmatprep.mubr.bf16.mxu0 0
      %504 = vmatmul.mubr.bf16.gmra.mxu0 %v387
      %v505 = vpop.f32.mrf.mxu0
      %v506 = vadd.f32 0.0, %v505
      %v507 = vpop.f32.mrf.mxu0
      %v508 = vpop.f32.mrf.mxu0
      %v509 = vadd.f32 0.0, %v508
      %v510 = vpop.f32.mrf.mxu0
      %511 = vmatprep.mubr.bf16.mxu0 0
      %512 = vmatmul.mubr.bf16.gmra.mxu0 %v390
      %v513 = vpop.f32.mrf.mxu0
      %v514 = vadd.f32 0.0, %v513
      %v515 = vpop.f32.mrf.mxu0
      %v516 = vpop.f32.mrf.mxu0
      %v517 = vadd.f32 0.0, %v516
      %v518 = vpop.f32.mrf.mxu0
      %519 = vmatprep.mubr.bf16.mxu0 0
      %520 = vmatmul.mubr.bf16.gmra.mxu0 %v393
      %v521 = vpop.f32.mrf.mxu0
      %v522 = vadd.f32 0.0, %v521
      %v523 = vpop.f32.mrf.mxu0
      %v524 = vpop.f32.mrf.mxu0
      %v525 = vadd.f32 0.0, %v524
      %v526 = vpop.f32.mrf.mxu0
      %527 = vmatprep.mubr.bf16.mxu0 0
      %528 = vmatmul.mubr.bf16.gmra.mxu0 %v396
      %v529 = vpop.f32.mrf.mxu0
      %v530 = vadd.f32 0.0, %v529
      %v531 = vpop.f32.mrf.mxu0
      %v532 = vpop.f32.mrf.mxu0
      %v533 = vadd.f32 0.0, %v532
      %v534 = vpop.f32.mrf.mxu0
      %535 = vmatprep.mubr.bf16.mxu0 0
      %536 = vmatmul.mubr.bf16.gmra.mxu0 %v399
      %v537 = vpop.f32.mrf.mxu0
      %v538 = vadd.f32 0.0, %v537
      %v539 = vpop.f32.mrf.mxu0
      %v540 = vpop.f32.mrf.mxu0
      %v541 = vadd.f32 0.0, %v540
      %v542 = vpop.f32.mrf.mxu0
      %543 = vmatprep.mubr.bf16.mxu0 0
      %544 = vmatmul.mubr.bf16.gmra.mxu0 %v402
      %v545 = vpop.f32.mrf.mxu0
      %v546 = vadd.f32 0.0, %v545
      %v547 = vpop.f32.mrf.mxu0
      %v548 = vpop.f32.mrf.mxu0
      %v549 = vadd.f32 0.0, %v548
      %v550 = vpop.f32.mrf.mxu0
      %551 = vmatprep.mubr.bf16.mxu0 0
      %552 = vmatmul.mubr.bf16.gmra.mxu0 %v405
      %v553 = vpop.f32.mrf.mxu0
      %v554 = vadd.f32 0.0, %v553
      %v555 = vpop.f32.mrf.mxu0
      %v556 = vpop.f32.mrf.mxu0
      %v557 = vadd.f32 0.0, %v556
      %v558 = vpop.f32.mrf.mxu0
      %559 = vmatprep.mubr.bf16.mxu0 0
      %560 = vmatmul.mubr.bf16.gmra.mxu0 %v408
      %v561 = vpop.f32.mrf.mxu0
      %v562 = vadd.f32 0.0, %v561
      %v563 = vpop.f32.mrf.mxu0
      %v564 = vpop.f32.mrf.mxu0
      %v565 = vadd.f32 0.0, %v564
      %v566 = vpop.f32.mrf.mxu0
      %567 = vmatprep.mubr.bf16.mxu0 0
      %568 = vmatmul.mubr.bf16.gmra.mxu0 %v411
      %v569 = vpop.f32.mrf.mxu0
      %v570 = vadd.f32 0.0, %v569
      %v571 = vpop.f32.mrf.mxu0
      %v572 = vpop.f32.mrf.mxu0
      %v573 = vadd.f32 0.0, %v572
      %v574 = vpop.f32.mrf.mxu0
      %575 = vmatprep.mubr.bf16.mxu0 0
      %576 = vmatmul.mubr.bf16.gmra.mxu0 %v414
      %v577 = vpop.f32.mrf.mxu0
      %v578 = vadd.f32 0.0, %v577
      %v579 = vpop.f32.mrf.mxu0
      %v580 = vpop.f32.mrf.mxu0
      %v581 = vadd.f32 0.0, %v580
      %v582 = vpop.f32.mrf.mxu0
      %583 = vmatprep.mubr.bf16.mxu0 0
      %584 = vmatmul.mubr.bf16.gmra.mxu0 %v417
      %v585 = vpop.f32.mrf.mxu0
      %v586 = vadd.f32 0.0, %v585
      %v587 = vpop.f32.mrf.mxu0
      %v588 = vpop.f32.mrf.mxu0
      %v589 = vadd.f32 0.0, %v588
      %v590 = vpop.f32.mrf.mxu0
      %591 = vmatprep.mubr.bf16.mxu0 0
      %592 = vmatmul.mubr.bf16.gmra.mxu0 %v420
      %v593 = vpop.f32.mrf.mxu0
      %v594 = vadd.f32 0.0, %v593
      %v595 = vpop.f32.mrf.mxu0
      %v596 = vpop.f32.mrf.mxu0
      %v597 = vadd.f32 0.0, %v596
      %v598 = vpop.f32.mrf.mxu0
      %599 = vmatprep.mubr.bf16.mxu0 0
      %600 = vmatmul.mubr.bf16.gmra.mxu0 %v423
      %v601 = vpop.f32.mrf.mxu0
      %v602 = vadd.f32 0.0, %v601
      %v603 = vpop.f32.mrf.mxu0
      %v604 = vpop.f32.mrf.mxu0
      %v605 = vadd.f32 0.0, %v604
      %v606 = vpop.f32.mrf.mxu0
      %607 = vmatprep.mubr.bf16.mxu0 0
      %608 = vmatmul.mubr.bf16.gmra.mxu0 %v426
      %v609 = vpop.f32.mrf.mxu0
      %v610 = vadd.f32 0.0, %v609
      %v611 = vpop.f32.mrf.mxu0
      %v612 = vpop.f32.mrf.mxu0
      %v613 = vadd.f32 0.0, %v612
      %v614 = vpop.f32.mrf.mxu0
      %615 = vmatprep.mubr.bf16.mxu0 0
      %616 = vmatmul.mubr.bf16.gmra.mxu0 %v429
      %v617 = vpop.f32.mrf.mxu0
      %v618 = vadd.f32 0.0, %v617
      %v619 = vpop.f32.mrf.mxu0
      %v620 = vpop.f32.mrf.mxu0
      %v621 = vadd.f32 0.0, %v620
      %v622 = vpop.f32.mrf.mxu0
      %623 = vdwg.mxu0
      %vm624 = vcmp.gt.f32.partialorder %v466, 0.0
      %vm625 = vcmp.gt.f32.partialorder %v469, 0.0
      %vm626 = vcmp.gt.f32.partialorder %v474, 0.0
      %vm627 = vcmp.gt.f32.partialorder %v477, 0.0
      %vm628 = vcmp.gt.f32.partialorder %v482, 0.0
      %vm629 = vcmp.gt.f32.partialorder %v485, 0.0
      %vm630 = vcmp.gt.f32.partialorder %v490, 0.0
      %vm631 = vcmp.gt.f32.partialorder %v493, 0.0
      %vm632 = vcmp.gt.f32.partialorder %v498, 0.0
      %vm633 = vcmp.gt.f32.partialorder %v501, 0.0
      %vm634 = vcmp.gt.f32.partialorder %v506, 0.0
      %vm635 = vcmp.gt.f32.partialorder %v509, 0.0
      %vm636 = vcmp.gt.f32.partialorder %v514, 0.0
      %vm637 = vcmp.gt.f32.partialorder %v517, 0.0
      %vm638 = vcmp.gt.f32.partialorder %v522, 0.0
      %vm639 = vcmp.gt.f32.partialorder %v525, 0.0
      %vm640 = vcmp.gt.f32.partialorder %v530, 0.0
      %vm641 = vcmp.gt.f32.partialorder %v533, 0.0
      %vm642 = vcmp.gt.f32.partialorder %v538, 0.0
      %vm643 = vcmp.gt.f32.partialorder %v541, 0.0
      %vm644 = vcmp.gt.f32.partialorder %v546, 0.0
      %vm645 = vcmp.gt.f32.partialorder %v549, 0.0
      %vm646 = vcmp.gt.f32.partialorder %v554, 0.0
      %vm647 = vcmp.gt.f32.partialorder %v557, 0.0
      %vm648 = vcmp.gt.f32.partialorder %v562, 0.0
      %vm649 = vcmp.gt.f32.partialorder %v565, 0.0
      %vm650 = vcmp.gt.f32.partialorder %v570, 0.0
      %vm651 = vcmp.gt.f32.partialorder %v573, 0.0
      %vm652 = vcmp.gt.f32.partialorder %v578, 0.0
      %vm653 = vcmp.gt.f32.partialorder %v581, 0.0
      %vm654 = vcmp.gt.f32.partialorder %v586, 0.0
      %vm655 = vcmp.gt.f32.partialorder %v589, 0.0
      %vm656 = vcmp.gt.f32.partialorder %v594, 0.0
      %vm657 = vcmp.gt.f32.partialorder %v597, 0.0
      %vm658 = vcmp.gt.f32.partialorder %v602, 0.0
      %vm659 = vcmp.gt.f32.partialorder %v605, 0.0
      %vm660 = vcmp.gt.f32.partialorder %v610, 0.0
      %vm661 = vcmp.gt.f32.partialorder %v613, 0.0
      %vm662 = vcmp.gt.f32.partialorder %v618, 0.0
      %vm663 = vcmp.gt.f32.partialorder %v621, 0.0
      %v664 = vmul.f32 %v466, 0.2
      %v665 = vmul.f32 %v469, 0.2
      %v666 = vmul.f32 %v474, 0.2
      %v667 = vmul.f32 %v477, 0.2
      %v668 = vmul.f32 %v482, 0.2
      %v669 = vmul.f32 %v485, 0.2
      %v670 = vmul.f32 %v490, 0.2
      %v671 = vmul.f32 %v493, 0.2
      %v672 = vmul.f32 %v498, 0.2
      %v673 = vmul.f32 %v501, 0.2
      %v674 = vmul.f32 %v506, 0.2
      %v675 = vmul.f32 %v509, 0.2
      %v676 = vmul.f32 %v514, 0.2
      %v677 = vmul.f32 %v517, 0.2
      %v678 = vmul.f32 %v522, 0.2
      %v679 = vmul.f32 %v525, 0.2
      %v680 = vmul.f32 %v530, 0.2
      %v681 = vmul.f32 %v533, 0.2
      %v682 = vmul.f32 %v538, 0.2
      %v683 = vmul.f32 %v541, 0.2
      %v684 = vmul.f32 %v546, 0.2
      %v685 = vmul.f32 %v549, 0.2
      %v686 = vmul.f32 %v554, 0.2
      %v687 = vmul.f32 %v557, 0.2
      %v688 = vmul.f32 %v562, 0.2
      %v689 = vmul.f32 %v565, 0.2
      %v690 = vmul.f32 %v570, 0.2
      %v691 = vmul.f32 %v573, 0.2
      %v692 = vmul.f32 %v578, 0.2
      %v693 = vmul.f32 %v581, 0.2
      %v694 = vmul.f32 %v586, 0.2
      %v695 = vmul.f32 %v589, 0.2
      %v696 = vmul.f32 %v594, 0.2
      %v697 = vmul.f32 %v597, 0.2
      %v698 = vmul.f32 %v602, 0.2
      %v699 = vmul.f32 %v605, 0.2
      %v700 = vmul.f32 %v610, 0.2
      %v701 = vmul.f32 %v613, 0.2
      %v702 = vmul.f32 %v618, 0.2
      %v703 = vmul.f32 %v621, 0.2
      %v704 = vsel %vm624, %v466, %v664
      %v705 = vsel %vm625, %v469, %v665
      %v706 = vsel %vm626, %v474, %v666
      %v707 = vsel %vm627, %v477, %v667
      %v708 = vsel %vm628, %v482, %v668
      %v709 = vsel %vm629, %v485, %v669
      %v710 = vsel %vm630, %v490, %v670
      %v711 = vsel %vm631, %v493, %v671
      %v712 = vsel %vm632, %v498, %v672
      %v713 = vsel %vm633, %v501, %v673
      %v714 = vsel %vm634, %v506, %v674
      %v715 = vsel %vm635, %v509, %v675
      %v716 = vsel %vm636, %v514, %v676
      %v717 = vsel %vm637, %v517, %v677
      %v718 = vsel %vm638, %v522, %v678
      %v719 = vsel %vm639, %v525, %v679
      %v720 = vsel %vm640, %v530, %v680
      %v721 = vsel %vm641, %v533, %v681
      %v722 = vsel %vm642, %v538, %v682
      %v723 = vsel %vm643, %v541, %v683
      %v724 = vsel %vm644, %v546, %v684
      %v725 = vsel %vm645, %v549, %v685
      %v726 = vsel %vm646, %v554, %v686
      %v727 = vsel %vm647, %v557, %v687
      %v728 = vsel %vm648, %v562, %v688
      %v729 = vsel %vm649, %v565, %v689
      %v730 = vsel %vm650, %v570, %v690
      %v731 = vsel %vm651, %v573, %v691
      %v732 = vsel %vm652, %v578, %v692
      %v733 = vsel %vm653, %v581, %v693
      %v734 = vsel %vm654, %v586, %v694
      %v735 = vsel %vm655, %v589, %v695
      %v736 = vsel %vm656, %v594, %v696
      %v737 = vsel %vm657, %v597, %v697
      %v738 = vsel %vm658, %v602, %v698
      %v739 = vsel %vm659, %v605, %v699
      %v740 = vsel %vm660, %v610, %v700
      %v741 = vsel %vm661, %v613, %v701
      %v742 = vsel %vm662, %v618, %v702
      %v743 = vsel %vm663, %v621, %v703
      %v744 = vpack.c.bf16 %v705, %v704
      %v745 = vpack.c.bf16 %v707, %v706
      %v746 = vpack.c.bf16 %v709, %v708
      %v747 = vpack.c.bf16 %v711, %v710
      %v748 = vld [vmem:[%s2] sm:$0xff]
      %v749 = vld [vmem:[%s2 + $0x8] sm:$0xff]
      %v750 = vld [vmem:[%s2 + $0x10] sm:$0xff]
      %v751 = vld [vmem:[%s2 + $0x18] sm:$0xff]
      %v752 = vld [vmem:[%s2 + $0x20] sm:$0xff]
      %v753 = vld [vmem:[%s2 + $0x28] sm:$0xff]
      %v754 = vld [vmem:[%s2 + $0x30] sm:$0xff]
      %v755 = vld [vmem:[%s2 + $0x38] sm:$0xff]
      %v756 = vld [vmem:[%s2 + $0x40] sm:$0xff]
      %v757 = vld [vmem:[%s2 + $0x48] sm:$0xff]
      %v758 = vld [vmem:[%s2 + $0x50] sm:$0xff]
      %v759 = vld [vmem:[%s2 + $0x58] sm:$0xff]
      %v760 = vld [vmem:[%s2 + $0x60] sm:$0xff]
      %v761 = vld [vmem:[%s2 + $0x68] sm:$0xff]
      %v762 = vld [vmem:[%s2 + $0x70] sm:$0xff]
      %v763 = vld [vmem:[%s2 + $0x78] sm:$0xff]
      %v764 = vpack.c.bf16 %v715, %v714
      %v765 = vpack.c.bf16 %v717, %v716
      %v766 = vpack.c.bf16 %v719, %v718
      %v767 = vpack.c.bf16 %v721, %v720
      %s768 = scalar_lea.vmem %s2, 128
      %v769 = vld [vmem:[%s768] sm:$0xff]
      %v770 = vld [vmem:[%s768 + $0x8] sm:$0xff]
      %v771 = vld [vmem:[%s768 + $0x10] sm:$0xff]
      %v772 = vld [vmem:[%s768 + $0x18] sm:$0xff]
      %v773 = vld [vmem:[%s768 + $0x20] sm:$0xff]
      %v774 = vld [vmem:[%s768 + $0x28] sm:$0xff]
      %v775 = vld [vmem:[%s768 + $0x30] sm:$0xff]
      %v776 = vld [vmem:[%s768 + $0x38] sm:$0xff]
      %v777 = vld [vmem:[%s768 + $0x40] sm:$0xff]
      %v778 = vld [vmem:[%s768 + $0x48] sm:$0xff]
      %v779 = vld [vmem:[%s768 + $0x50] sm:$0xff]
      %v780 = vld [vmem:[%s768 + $0x58] sm:$0xff]
      %v781 = vld [vmem:[%s768 + $0x60] sm:$0xff]
      %v782 = vld [vmem:[%s768 + $0x68] sm:$0xff]
      %v783 = vld [vmem:[%s768 + $0x70] sm:$0xff]
      %v784 = vld [vmem:[%s768 + $0x78] sm:$0xff]
      %v801 = vunpack.c.l.b16 %v769
      %v802 = vunpack.c.h.b16 %v769
      %v803 = vunpack.c.l.b16 %v770
      %v804 = vunpack.c.h.b16 %v770
      %v805 = vunpack.c.l.b16 %v771
      %v806 = vunpack.c.h.b16 %v771
      %v807 = vunpack.c.l.b16 %v772
      %v808 = vunpack.c.h.b16 %v772
      %v809 = vunpack.c.l.b16 %v773
      %v810 = vunpack.c.h.b16 %v773
      %v811 = vunpack.c.l.b16 %v774
      %v812 = vunpack.c.h.b16 %v774
      %v813 = vunpack.c.l.b16 %v775
      %v814 = vunpack.c.h.b16 %v775
      %v815 = vunpack.c.l.b16 %v776
      %v816 = vunpack.c.h.b16 %v776
      %v817 = vunpack.c.l.b16 %v777
      %v818 = vunpack.c.h.b16 %v777
      %v819 = vunpack.c.l.b16 %v778
      %v820 = vunpack.c.h.b16 %v778
      %v821 = vunpack.c.l.b16 %v779
      %v822 = vunpack.c.h.b16 %v779
      %v823 = vunpack.c.l.b16 %v780
      %v824 = vunpack.c.h.b16 %v780
      %v825 = vunpack.c.l.b16 %v781
      %v826 = vunpack.c.h.b16 %v781
      %v827 = vunpack.c.l.b16 %v782
      %v828 = vunpack.c.h.b16 %v782
      %v829 = vunpack.c.l.b16 %v783
      %v830 = vunpack.c.h.b16 %v783
      %v831 = vunpack.c.l.b16 %v784
      %v832 = vunpack.c.h.b16 %v784
      %v833 = vpack.c.b16 %v803, %v801
      %v834 = vpack.c.b16 %v804, %v802
      %v835 = vpack.c.b16 %v807, %v805
      %v836 = vpack.c.b16 %v808, %v806
      %v837 = vpack.c.b16 %v811, %v809
      %v838 = vpack.c.b16 %v812, %v810
      %v839 = vpack.c.b16 %v815, %v813
      %v840 = vpack.c.b16 %v816, %v814
      %v841 = vpack.c.b16 %v819, %v817
      %v842 = vpack.c.b16 %v820, %v818
      %v843 = vpack.c.b16 %v823, %v821
      %v844 = vpack.c.b16 %v824, %v822
      %v845 = vpack.c.b16 %v827, %v825
      %v846 = vpack.c.b16 %v828, %v826
      %v847 = vpack.c.b16 %v831, %v829
      %v848 = vpack.c.b16 %v832, %v830
      %865 = vmatprep.subr.bf16.mxu0 %v848
      %866 = vmatpush1.bf16.msra.mxu0 %v847
      %867 = vmatprep.subr.bf16.mxu0 %v846
      %868 = vmatpush1.bf16.msra.mxu0 %v845
      %869 = vmatprep.subr.bf16.mxu0 %v844
      %870 = vmatpush1.bf16.msra.mxu0 %v843
      %871 = vmatprep.subr.bf16.mxu0 %v842
      %872 = vmatpush1.bf16.msra.mxu0 %v841
      %873 = vmatprep.subr.bf16.mxu0 %v840
      %874 = vmatpush1.bf16.msra.mxu0 %v839
      %875 = vmatprep.subr.bf16.mxu0 %v838
      %876 = vmatpush1.bf16.msra.mxu0 %v837
      %877 = vmatprep.subr.bf16.mxu0 %v836
      %878 = vmatpush1.bf16.msra.mxu0 %v835
      %879 = vmatprep.subr.bf16.mxu0 %v834
      %880 = vmatpush1.bf16.msra.mxu0 %v833
      %881 = vmatprep.subr.bf16.mxu0 0
      %882 = vmatpush2.bf16.msra.mxu0 0
      %883 = vmatprep.subr.bf16.mxu0 0
      %884 = vmatpush2.bf16.msra.mxu0 0
      %885 = vmatprep.subr.bf16.mxu0 0
      %886 = vmatpush2.bf16.msra.mxu0 0
      %887 = vmatprep.subr.bf16.mxu0 0
      %888 = vmatpush2.bf16.msra.mxu0 0
      %889 = vmatprep.subr.bf16.mxu0 0
      %890 = vmatpush2.bf16.msra.mxu0 0
      %891 = vmatprep.subr.bf16.mxu0 0
      %892 = vmatpush2.bf16.msra.mxu0 0
      %893 = vmatprep.subr.bf16.mxu0 0
      %894 = vmatpush2.bf16.msra.mxu0 0
      %895 = vmatprep.subr.bf16.mxu0 0
      %896 = vmatpush2.bf16.msra.mxu0 0
      %897 = vmatprep.mubr.bf16.mxu0 0
      %898 = vmatmul.mubr.bf16.gmra.mxu0 %v764
      %v899 = vpop.f32.mrf.mxu0
      %v900 = vadd.f32 0.0, %v899
      %v901 = vpop.f32.mrf.mxu0
      %v902 = vadd.f32 0.0, %v901
      %v903 = vpop.f32.mrf.mxu0
      %v904 = vadd.f32 0.0, %v903
      %v905 = vpop.f32.mrf.mxu0
      %v906 = vadd.f32 0.0, %v905
      %907 = vmatprep.mubr.bf16.mxu0 0
      %908 = vmatmul.mubr.bf16.gmra.mxu0 %v765
      %v909 = vpop.f32.mrf.mxu0
      %v910 = vadd.f32 0.0, %v909
      %v911 = vpop.f32.mrf.mxu0
      %v912 = vadd.f32 0.0, %v911
      %v913 = vpop.f32.mrf.mxu0
      %v914 = vadd.f32 0.0, %v913
      %v915 = vpop.f32.mrf.mxu0
      %v916 = vadd.f32 0.0, %v915
      %917 = vmatprep.mubr.bf16.mxu0 0
      %918 = vmatmul.mubr.bf16.gmra.mxu0 %v766
      %v919 = vpop.f32.mrf.mxu0
      %v920 = vadd.f32 0.0, %v919
      %v921 = vpop.f32.mrf.mxu0
      %v922 = vadd.f32 0.0, %v921
      %v923 = vpop.f32.mrf.mxu0
      %v924 = vadd.f32 0.0, %v923
      %v925 = vpop.f32.mrf.mxu0
      %v926 = vadd.f32 0.0, %v925
      %927 = vmatprep.mubr.bf16.mxu0 0
      %928 = vmatmul.mubr.bf16.gmra.mxu0 %v767
      %v929 = vpop.f32.mrf.mxu0
      %v930 = vadd.f32 0.0, %v929
      %v931 = vpop.f32.mrf.mxu0
      %v932 = vadd.f32 0.0, %v931
      %v933 = vpop.f32.mrf.mxu0
      %v934 = vadd.f32 0.0, %v933
      %v935 = vpop.f32.mrf.mxu0
      %v936 = vadd.f32 0.0, %v935
      %937 = vdwg.mxu0
      %v954 = vunpack.c.l.b16 %v748
      %v955 = vunpack.c.h.b16 %v748
      %v956 = vunpack.c.l.b16 %v749
      %v957 = vunpack.c.h.b16 %v749
      %v958 = vunpack.c.l.b16 %v750
      %v959 = vunpack.c.h.b16 %v750
      %v960 = vunpack.c.l.b16 %v751
      %v961 = vunpack.c.h.b16 %v751
      %v962 = vunpack.c.l.b16 %v752
      %v963 = vunpack.c.h.b16 %v752
      %v964 = vunpack.c.l.b16 %v753
      %v965 = vunpack.c.h.b16 %v753
      %v966 = vunpack.c.l.b16 %v754
      %v967 = vunpack.c.h.b16 %v754
      %v968 = vunpack.c.l.b16 %v755
      %v969 = vunpack.c.h.b16 %v755
      %v970 = vunpack.c.l.b16 %v756
      %v971 = vunpack.c.h.b16 %v756
      %v972 = vunpack.c.l.b16 %v757
      %v973 = vunpack.c.h.b16 %v757
      %v974 = vunpack.c.l.b16 %v758
      %v975 = vunpack.c.h.b16 %v758
      %v976 = vunpack.c.l.b16 %v759
      %v977 = vunpack.c.h.b16 %v759
      %v978 = vunpack.c.l.b16 %v760
      %v979 = vunpack.c.h.b16 %v760
      %v980 = vunpack.c.l.b16 %v761
      %v981 = vunpack.c.h.b16 %v761
      %v982 = vunpack.c.l.b16 %v762
      %v983 = vunpack.c.h.b16 %v762
      %v984 = vunpack.c.l.b16 %v763
      %v985 = vunpack.c.h.b16 %v763
      %v986 = vpack.c.b16 %v956, %v954
      %v987 = vpack.c.b16 %v957, %v955
      %v988 = vpack.c.b16 %v960, %v958
      %v989 = vpack.c.b16 %v961, %v959
      %v990 = vpack.c.b16 %v964, %v962
      %v991 = vpack.c.b16 %v965, %v963
      %v992 = vpack.c.b16 %v968, %v966
      %v993 = vpack.c.b16 %v969, %v967
      %v994 = vpack.c.b16 %v972, %v970
      %v995 = vpack.c.b16 %v973, %v971
      %v996 = vpack.c.b16 %v976, %v974
      %v997 = vpack.c.b16 %v977, %v975
      %v998 = vpack.c.b16 %v980, %v978
      %v999 = vpack.c.b16 %v981, %v979
      %v1000 = vpack.c.b16 %v984, %v982
      %v1001 = vpack.c.b16 %v985, %v983
      %1018 = vmatprep.subr.bf16.mxu0 %v1001
      %1019 = vmatpush1.bf16.msra.mxu0 %v1000
      %1020 = vmatprep.subr.bf16.mxu0 %v999
      %1021 = vmatpush1.bf16.msra.mxu0 %v998
      %1022 = vmatprep.subr.bf16.mxu0 %v997
      %1023 = vmatpush1.bf16.msra.mxu0 %v996
      %1024 = vmatprep.subr.bf16.mxu0 %v995
      %1025 = vmatpush1.bf16.msra.mxu0 %v994
      %1026 = vmatprep.subr.bf16.mxu0 %v993
      %1027 = vmatpush1.bf16.msra.mxu0 %v992
      %1028 = vmatprep.subr.bf16.mxu0 %v991
      %1029 = vmatpush1.bf16.msra.mxu0 %v990
      %1030 = vmatprep.subr.bf16.mxu0 %v989
      %1031 = vmatpush1.bf16.msra.mxu0 %v988
      %1032 = vmatprep.subr.bf16.mxu0 %v987
      %1033 = vmatpush1.bf16.msra.mxu0 %v986
      %1034 = vmatprep.subr.bf16.mxu0 0
      %1035 = vmatpush2.bf16.msra.mxu0 0
      %1036 = vmatprep.subr.bf16.mxu0 0
      %1037 = vmatpush2.bf16.msra.mxu0 0
      %1038 = vmatprep.subr.bf16.mxu0 0
      %1039 = vmatpush2.bf16.msra.mxu0 0
      %1040 = vmatprep.subr.bf16.mxu0 0
      %1041 = vmatpush2.bf16.msra.mxu0 0
      %1042 = vmatprep.subr.bf16.mxu0 0
      %1043 = vmatpush2.bf16.msra.mxu0 0
      %1044 = vmatprep.subr.bf16.mxu0 0
      %1045 = vmatpush2.bf16.msra.mxu0 0
      %1046 = vmatprep.subr.bf16.mxu0 0
      %1047 = vmatpush2.bf16.msra.mxu0 0
      %1048 = vmatprep.subr.bf16.mxu0 0
      %1049 = vmatpush2.bf16.msra.mxu0 0
      %1050 = vmatprep.mubr.bf16.mxu0 0
      %1051 = vmatmul.mubr.bf16.gmra.mxu0 %v744
      %v1052 = vpop.f32.mrf.mxu0
      %v1053 = vadd.f32 %v900, %v1052
      %v1054 = vpop.f32.mrf.mxu0
      %v1055 = vadd.f32 %v902, %v1054
      %v1056 = vpop.f32.mrf.mxu0
      %v1057 = vadd.f32 %v904, %v1056
      %v1058 = vpop.f32.mrf.mxu0
      %v1059 = vadd.f32 %v906, %v1058
      %1060 = vmatprep.mubr.bf16.mxu0 0
      %1061 = vmatmul.mubr.bf16.gmra.mxu0 %v745
      %v1062 = vpop.f32.mrf.mxu0
      %v1063 = vadd.f32 %v910, %v1062
      %v1064 = vpop.f32.mrf.mxu0
      %v1065 = vadd.f32 %v912, %v1064
      %v1066 = vpop.f32.mrf.mxu0
      %v1067 = vadd.f32 %v914, %v1066
      %v1068 = vpop.f32.mrf.mxu0
      %v1069 = vadd.f32 %v916, %v1068
      %1070 = vmatprep.mubr.bf16.mxu0 0
      %1071 = vmatmul.mubr.bf16.gmra.mxu0 %v746
      %v1072 = vpop.f32.mrf.mxu0
      %v1073 = vadd.f32 %v920, %v1072
      %v1074 = vpop.f32.mrf.mxu0
      %v1075 = vadd.f32 %v922, %v1074
      %v1076 = vpop.f32.mrf.mxu0
      %v1077 = vadd.f32 %v924, %v1076
      %v1078 = vpop.f32.mrf.mxu0
      %v1079 = vadd.f32 %v926, %v1078
      %1080 = vmatprep.mubr.bf16.mxu0 0
      %1081 = vmatmul.mubr.bf16.gmra.mxu0 %v747
      %v1082 = vpop.f32.mrf.mxu0
      %v1083 = vadd.f32 %v930, %v1082
      %v1084 = vpop.f32.mrf.mxu0
      %v1085 = vadd.f32 %v932, %v1084
      %v1086 = vpop.f32.mrf.mxu0
      %v1087 = vadd.f32 %v934, %v1086
      %v1088 = vpop.f32.mrf.mxu0
      %v1089 = vadd.f32 %v936, %v1088
      %1090 = vdwg.mxu0
      %v1091 = vpack.c.bf16 %v712, %v712
      %s1092 = scalar_lea.vmem %s2, 256
      %v1093 = vld [vmem:[%s1092] sm:$0xff]
      %v1094 = vld [vmem:[%s1092 + $0x8] sm:$0xff]
      %v1095 = vld [vmem:[%s1092 + $0x10] sm:$0xff]
      %v1096 = vld [vmem:[%s1092 + $0x18] sm:$0xff]
      %v1097 = vld [vmem:[%s1092 + $0x20] sm:$0xff]
      %v1098 = vld [vmem:[%s1092 + $0x28] sm:$0xff]
      %v1099 = vld [vmem:[%s1092 + $0x30] sm:$0xff]
      %v1100 = vld [vmem:[%s1092 + $0x38] sm:$0xff]
      %v1101 = vld [vmem:[%s1092 + $0x40] sm:$0xff]
      %v1102 = vld [vmem:[%s1092 + $0x48] sm:$0xff]
      %v1103 = vld [vmem:[%s1092 + $0x50] sm:$0xff]
      %v1104 = vld [vmem:[%s1092 + $0x58] sm:$0xff]
      %v1105 = vld [vmem:[%s1092 + $0x60] sm:$0xff]
      %v1106 = vld [vmem:[%s1092 + $0x68] sm:$0xff]
      %v1107 = vld [vmem:[%s1092 + $0x70] sm:$0xff]
      %v1108 = vld [vmem:[%s1092 + $0x78] sm:$0xff]
      %vm1109 = vsmask.f32 7424
      %v1111 = vshrl.u32 %v744, 16
      %v1113 = vshll.u32 %v744, 16
      %v1115 = vrot.slane %v1113, 1
      %v1116 = vor.u32 %v1111, %v1115
      %v1118 = vshll.u32 %v745, 16
      %v1120 = vrot.slane %v1118, 1
      %v1121 = vsel %vm1109, %v1116, %v1120
      %v1122 = vshrl.u32 %v745, 16
      %v1124 = vor.u32 %v1122, %v1120
      %v1126 = vshll.u32 %v746, 16
      %v1128 = vrot.slane %v1126, 1
      %v1129 = vsel %vm1109, %v1124, %v1128
      %v1130 = vshrl.u32 %v746, 16
      %v1132 = vor.u32 %v1130, %v1128
      %v1134 = vshll.u32 %v747, 16
      %v1136 = vrot.slane %v1134, 1
      %v1137 = vsel %vm1109, %v1132, %v1136
      %v1138 = vshrl.u32 %v747, 16
      %v1140 = vor.u32 %v1138, %v1136
      %v1142 = vshll.u32 %v1091, 16
      %v1144 = vrot.slane %v1142, 1
      %v1145 = vsel %vm1109, %v1140, %v1144
      %v1166 = vunpack.c.l.b16 %v1093
      %v1167 = vunpack.c.h.b16 %v1093
      %v1168 = vunpack.c.l.b16 %v1094
      %v1169 = vunpack.c.h.b16 %v1094
      %v1170 = vunpack.c.l.b16 %v1095
      %v1171 = vunpack.c.h.b16 %v1095
      %v1172 = vunpack.c.l.b16 %v1096
      %v1173 = vunpack.c.h.b16 %v1096
      %v1174 = vunpack.c.l.b16 %v1097
      %v1175 = vunpack.c.h.b16 %v1097
      %v1176 = vunpack.c.l.b16 %v1098
      %v1177 = vunpack.c.h.b16 %v1098
      %v1178 = vunpack.c.l.b16 %v1099
      %v1179 = vunpack.c.h.b16 %v1099
      %v1180 = vunpack.c.l.b16 %v1100
      %v1181 = vunpack.c.h.b16 %v1100
      %v1182 = vunpack.c.l.b16 %v1101
      %v1183 = vunpack.c.h.b16 %v1101
      %v1184 = vunpack.c.l.b16 %v1102
      %v1185 = vunpack.c.h.b16 %v1102
      %v1186 = vunpack.c.l.b16 %v1103
      %v1187 = vunpack.c.h.b16 %v1103
      %v1188 = vunpack.c.l.b16 %v1104
      %v1189 = vunpack.c.h.b16 %v1104
      %v1190 = vunpack.c.l.b16 %v1105
      %v1191 = vunpack.c.h.b16 %v1105
      %v1192 = vunpack.c.l.b16 %v1106
      %v1193 = vunpack.c.h.b16 %v1106
      %v1194 = vunpack.c.l.b16 %v1107
      %v1195 = vunpack.c.h.b16 %v1107
      %v1196 = vunpack.c.l.b16 %v1108
      %v1197 = vunpack.c.h.b16 %v1108
      %v1198 = vpack.c.b16 %v1168, %v1166
      %v1199 = vpack.c.b16 %v1169, %v1167
      %v1200 = vpack.c.b16 %v1172, %v1170
      %v1201 = vpack.c.b16 %v1173, %v1171
      %v1202 = vpack.c.b16 %v1176, %v1174
      %v1203 = vpack.c.b16 %v1177, %v1175
      %v1204 = vpack.c.b16 %v1180, %v1178
      %v1205 = vpack.c.b16 %v1181, %v1179
      %v1206 = vpack.c.b16 %v1184, %v1182
      %v1207 = vpack.c.b16 %v1185, %v1183
      %v1208 = vpack.c.b16 %v1188, %v1186
      %v1209 = vpack.c.b16 %v1189, %v1187
      %v1210 = vpack.c.b16 %v1192, %v1190
      %v1211 = vpack.c.b16 %v1193, %v1191
      %v1212 = vpack.c.b16 %v1196, %v1194
      %v1213 = vpack.c.b16 %v1197, %v1195
      %1230 = vmatprep.subr.bf16.mxu0 %v1213
      %1231 = vmatpush1.bf16.msra.mxu0 %v1212
      %1232 = vmatprep.subr.bf16.mxu0 %v1211
      %1233 = vmatpush1.bf16.msra.mxu0 %v1210
      %1234 = vmatprep.subr.bf16.mxu0 %v1209
      %1235 = vmatpush1.bf16.msra.mxu0 %v1208
      %1236 = vmatprep.subr.bf16.mxu0 %v1207
      %1237 = vmatpush1.bf16.msra.mxu0 %v1206
      %1238 = vmatprep.subr.bf16.mxu0 %v1205
      %1239 = vmatpush1.bf16.msra.mxu0 %v1204
      %1240 = vmatprep.subr.bf16.mxu0 %v1203
      %1241 = vmatpush1.bf16.msra.mxu0 %v1202
      %1242 = vmatprep.subr.bf16.mxu0 %v1201
      %1243 = vmatpush1.bf16.msra.mxu0 %v1200
      %1244 = vmatprep.subr.bf16.mxu0 %v1199
      %1245 = vmatpush1.bf16.msra.mxu0 %v1198
      %1246 = vmatprep.subr.bf16.mxu0 0
      %1247 = vmatpush2.bf16.msra.mxu0 0
      %1248 = vmatprep.subr.bf16.mxu0 0
      %1249 = vmatpush2.bf16.msra.mxu0 0
      %1250 = vmatprep.subr.bf16.mxu0 0
      %1251 = vmatpush2.bf16.msra.mxu0 0
      %1252 = vmatprep.subr.bf16.mxu0 0
      %1253 = vmatpush2.bf16.msra.mxu0 0
      %1254 = vmatprep.subr.bf16.mxu0 0
      %1255 = vmatpush2.bf16.msra.mxu0 0
      %1256 = vmatprep.subr.bf16.mxu0 0
      %1257 = vmatpush2.bf16.msra.mxu0 0
      %1258 = vmatprep.subr.bf16.mxu0 0
      %1259 = vmatpush2.bf16.msra.mxu0 0
      %1260 = vmatprep.subr.bf16.mxu0 0
      %1261 = vmatpush2.bf16.msra.mxu0 0
      %1262 = vmatprep.mubr.bf16.mxu0 0
      %1263 = vmatmul.mubr.bf16.gmra.mxu0 %v1121
      %v1264 = vpop.f32.mrf.mxu0
      %v1265 = vadd.f32 0.0, %v1264
      %v1266 = vpop.f32.mrf.mxu0
      %v1267 = vadd.f32 0.0, %v1266
      %v1268 = vpop.f32.mrf.mxu0
      %v1269 = vadd.f32 0.0, %v1268
      %v1270 = vpop.f32.mrf.mxu0
      %v1271 = vadd.f32 0.0, %v1270
      %1272 = vmatprep.mubr.bf16.mxu0 0
      %1273 = vmatmul.mubr.bf16.gmra.mxu0 %v1129
      %v1274 = vpop.f32.mrf.mxu0
      %v1275 = vadd.f32 0.0, %v1274
      %v1276 = vpop.f32.mrf.mxu0
      %v1277 = vadd.f32 0.0, %v1276
      %v1278 = vpop.f32.mrf.mxu0
      %v1279 = vadd.f32 0.0, %v1278
      %v1280 = vpop.f32.mrf.mxu0
      %v1281 = vadd.f32 0.0, %v1280
      %1282 = vmatprep.mubr.bf16.mxu0 0
      %1283 = vmatmul.mubr.bf16.gmra.mxu0 %v1137
      %v1284 = vpop.f32.mrf.mxu0
      %v1285 = vadd.f32 0.0, %v1284
      %v1286 = vpop.f32.mrf.mxu0
      %v1287 = vadd.f32 0.0, %v1286
      %v1288 = vpop.f32.mrf.mxu0
      %v1289 = vadd.f32 0.0, %v1288
      %v1290 = vpop.f32.mrf.mxu0
      %v1291 = vadd.f32 0.0, %v1290
      %1292 = vmatprep.mubr.bf16.mxu0 0
      %1293 = vmatmul.mubr.bf16.gmra.mxu0 %v1145
      %v1294 = vpop.f32.mrf.mxu0
      %v1295 = vadd.f32 0.0, %v1294
      %v1296 = vpop.f32.mrf.mxu0
      %v1297 = vadd.f32 0.0, %v1296
      %v1298 = vpop.f32.mrf.mxu0
      %v1299 = vadd.f32 0.0, %v1298
      %v1300 = vpop.f32.mrf.mxu0
      %v1301 = vadd.f32 0.0, %v1300
      %1302 = vdwg.mxu0
      %v1303 = vadd.f32 %v1053, %v1265
      %v1304 = vadd.f32 %v1055, %v1267
      %v1305 = vadd.f32 %v1057, %v1269
      %v1306 = vadd.f32 %v1059, %v1271
      %v1307 = vadd.f32 %v1063, %v1275
      %v1308 = vadd.f32 %v1065, %v1277
      %v1309 = vadd.f32 %v1067, %v1279
      %v1310 = vadd.f32 %v1069, %v1281
      %v1311 = vadd.f32 %v1073, %v1285
      %v1312 = vadd.f32 %v1075, %v1287
      %v1313 = vadd.f32 %v1077, %v1289
      %v1314 = vadd.f32 %v1079, %v1291
      %v1315 = vadd.f32 %v1083, %v1295
      %v1316 = vadd.f32 %v1085, %v1297
      %v1317 = vadd.f32 %v1087, %v1299
      %v1318 = vadd.f32 %v1089, %v1301
      %v1319 = vpack.c.bf16 %v722, %v722
      %s1320 = scalar_lea.vmem %s2, 384
      %v1321 = vld [vmem:[%s1320] sm:$0xff]
      %v1322 = vld [vmem:[%s1320 + $0x8] sm:$0xff]
      %v1323 = vld [vmem:[%s1320 + $0x10] sm:$0xff]
      %v1324 = vld [vmem:[%s1320 + $0x18] sm:$0xff]
      %v1325 = vld [vmem:[%s1320 + $0x20] sm:$0xff]
      %v1326 = vld [vmem:[%s1320 + $0x28] sm:$0xff]
      %v1327 = vld [vmem:[%s1320 + $0x30] sm:$0xff]
      %v1328 = vld [vmem:[%s1320 + $0x38] sm:$0xff]
      %v1329 = vld [vmem:[%s1320 + $0x40] sm:$0xff]
      %v1330 = vld [vmem:[%s1320 + $0x48] sm:$0xff]
      %v1331 = vld [vmem:[%s1320 + $0x50] sm:$0xff]
      %v1332 = vld [vmem:[%s1320 + $0x58] sm:$0xff]
      %v1333 = vld [vmem:[%s1320 + $0x60] sm:$0xff]
      %v1334 = vld [vmem:[%s1320 + $0x68] sm:$0xff]
      %v1335 = vld [vmem:[%s1320 + $0x70] sm:$0xff]
      %v1336 = vld [vmem:[%s1320 + $0x78] sm:$0xff]
      %v1338 = vshrl.u32 %v764, 16
      %v1340 = vshll.u32 %v764, 16
      %v1342 = vrot.slane %v1340, 1
      %v1343 = vor.u32 %v1338, %v1342
      %v1345 = vshll.u32 %v765, 16
      %v1347 = vrot.slane %v1345, 1
      %v1348 = vsel %vm1109, %v1343, %v1347
      %v1349 = vshrl.u32 %v765, 16
      %v1351 = vor.u32 %v1349, %v1347
      %v1353 = vshll.u32 %v766, 16
      %v1355 = vrot.slane %v1353, 1
      %v1356 = vsel %vm1109, %v1351, %v1355
      %v1357 = vshrl.u32 %v766, 16
      %v1359 = vor.u32 %v1357, %v1355
      %v1361 = vshll.u32 %v767, 16
      %v1363 = vrot.slane %v1361, 1
      %v1364 = vsel %vm1109, %v1359, %v1363
      %v1365 = vshrl.u32 %v767, 16
      %v1367 = vor.u32 %v1365, %v1363
      %v1369 = vshll.u32 %v1319, 16
      %v1371 = vrot.slane %v1369, 1
      %v1372 = vsel %vm1109, %v1367, %v1371
      %v1393 = vunpack.c.l.b16 %v1321
      %v1394 = vunpack.c.h.b16 %v1321
      %v1395 = vunpack.c.l.b16 %v1322
      %v1396 = vunpack.c.h.b16 %v1322
      %v1397 = vunpack.c.l.b16 %v1323
      %v1398 = vunpack.c.h.b16 %v1323
      %v1399 = vunpack.c.l.b16 %v1324
      %v1400 = vunpack.c.h.b16 %v1324
      %v1401 = vunpack.c.l.b16 %v1325
      %v1402 = vunpack.c.h.b16 %v1325
      %v1403 = vunpack.c.l.b16 %v1326
      %v1404 = vunpack.c.h.b16 %v1326
      %v1405 = vunpack.c.l.b16 %v1327
      %v1406 = vunpack.c.h.b16 %v1327
      %v1407 = vunpack.c.l.b16 %v1328
      %v1408 = vunpack.c.h.b16 %v1328
      %v1409 = vunpack.c.l.b16 %v1329
      %v1410 = vunpack.c.h.b16 %v1329
      %v1411 = vunpack.c.l.b16 %v1330
      %v1412 = vunpack.c.h.b16 %v1330
      %v1413 = vunpack.c.l.b16 %v1331
      %v1414 = vunpack.c.h.b16 %v1331
      %v1415 = vunpack.c.l.b16 %v1332
      %v1416 = vunpack.c.h.b16 %v1332
      %v1417 = vunpack.c.l.b16 %v1333
      %v1418 = vunpack.c.h.b16 %v1333
      %v1419 = vunpack.c.l.b16 %v1334
      %v1420 = vunpack.c.h.b16 %v1334
      %v1421 = vunpack.c.l.b16 %v1335
      %v1422 = vunpack.c.h.b16 %v1335
      %v1423 = vunpack.c.l.b16 %v1336
      %v1424 = vunpack.c.h.b16 %v1336
      %v1425 = vpack.c.b16 %v1395, %v1393
      %v1426 = vpack.c.b16 %v1396, %v1394
      %v1427 = vpack.c.b16 %v1399, %v1397
      %v1428 = vpack.c.b16 %v1400, %v1398
      %v1429 = vpack.c.b16 %v1403, %v1401
      %v1430 = vpack.c.b16 %v1404, %v1402
      %v1431 = vpack.c.b16 %v1407, %v1405
      %v1432 = vpack.c.b16 %v1408, %v1406
      %v1433 = vpack.c.b16 %v1411, %v1409
      %v1434 = vpack.c.b16 %v1412, %v1410
      %v1435 = vpack.c.b16 %v1415, %v1413
      %v1436 = vpack.c.b16 %v1416, %v1414
      %v1437 = vpack.c.b16 %v1419, %v1417
      %v1438 = vpack.c.b16 %v1420, %v1418
      %v1439 = vpack.c.b16 %v1423, %v1421
      %v1440 = vpack.c.b16 %v1424, %v1422
      %1457 = vmatprep.subr.bf16.mxu0 %v1440
      %1458 = vmatpush1.bf16.msra.mxu0 %v1439
      %1459 = vmatprep.subr.bf16.mxu0 %v1438
      %1460 = vmatpush1.bf16.msra.mxu0 %v1437
      %1461 = vmatprep.subr.bf16.mxu0 %v1436
      %1462 = vmatpush1.bf16.msra.mxu0 %v1435
      %1463 = vmatprep.subr.bf16.mxu0 %v1434
      %1464 = vmatpush1.bf16.msra.mxu0 %v1433
      %1465 = vmatprep.subr.bf16.mxu0 %v1432
      %1466 = vmatpush1.bf16.msra.mxu0 %v1431
      %1467 = vmatprep.subr.bf16.mxu0 %v1430
      %1468 = vmatpush1.bf16.msra.mxu0 %v1429
      %1469 = vmatprep.subr.bf16.mxu0 %v1428
      %1470 = vmatpush1.bf16.msra.mxu0 %v1427
      %1471 = vmatprep.subr.bf16.mxu0 %v1426
      %1472 = vmatpush1.bf16.msra.mxu0 %v1425
      %1473 = vmatprep.subr.bf16.mxu0 0
      %1474 = vmatpush2.bf16.msra.mxu0 0
      %1475 = vmatprep.subr.bf16.mxu0 0
      %1476 = vmatpush2.bf16.msra.mxu0 0
      %1477 = vmatprep.subr.bf16.mxu0 0
      %1478 = vmatpush2.bf16.msra.mxu0 0
      %1479 = vmatprep.subr.bf16.mxu0 0
      %1480 = vmatpush2.bf16.msra.mxu0 0
      %1481 = vmatprep.subr.bf16.mxu0 0
      %1482 = vmatpush2.bf16.msra.mxu0 0
      %1483 = vmatprep.subr.bf16.mxu0 0
      %1484 = vmatpush2.bf16.msra.mxu0 0
      %1485 = vmatprep.subr.bf16.mxu0 0
      %1486 = vmatpush2.bf16.msra.mxu0 0
      %1487 = vmatprep.subr.bf16.mxu0 0
      %1488 = vmatpush2.bf16.msra.mxu0 0
      %1489 = vmatprep.mubr.bf16.mxu0 0
      %1490 = vmatmul.mubr.bf16.gmra.mxu0 %v1348
      %v1491 = vpop.f32.mrf.mxu0
      %v1492 = vadd.f32 0.0, %v1491
      %v1493 = vpop.f32.mrf.mxu0
      %v1494 = vadd.f32 0.0, %v1493
      %v1495 = vpop.f32.mrf.mxu0
      %v1496 = vadd.f32 0.0, %v1495
      %v1497 = vpop.f32.mrf.mxu0
      %v1498 = vadd.f32 0.0, %v1497
      %1499 = vmatprep.mubr.bf16.mxu0 0
      %1500 = vmatmul.mubr.bf16.gmra.mxu0 %v1356
      %v1501 = vpop.f32.mrf.mxu0
      %v1502 = vadd.f32 0.0, %v1501
      %v1503 = vpop.f32.mrf.mxu0
      %v1504 = vadd.f32 0.0, %v1503
      %v1505 = vpop.f32.mrf.mxu0
      %v1506 = vadd.f32 0.0, %v1505
      %v1507 = vpop.f32.mrf.mxu0
      %v1508 = vadd.f32 0.0, %v1507
      %1509 = vmatprep.mubr.bf16.mxu0 0
      %1510 = vmatmul.mubr.bf16.gmra.mxu0 %v1364
      %v1511 = vpop.f32.mrf.mxu0
      %v1512 = vadd.f32 0.0, %v1511
      %v1513 = vpop.f32.mrf.mxu0
      %v1514 = vadd.f32 0.0, %v1513
      %v1515 = vpop.f32.mrf.mxu0
      %v1516 = vadd.f32 0.0, %v1515
      %v1517 = vpop.f32.mrf.mxu0
      %v1518 = vadd.f32 0.0, %v1517
      %1519 = vmatprep.mubr.bf16.mxu0 0
      %1520 = vmatmul.mubr.bf16.gmra.mxu0 %v1372
      %v1521 = vpop.f32.mrf.mxu0
      %v1522 = vadd.f32 0.0, %v1521
      %v1523 = vpop.f32.mrf.mxu0
      %v1524 = vadd.f32 0.0, %v1523
      %v1525 = vpop.f32.mrf.mxu0
      %v1526 = vadd.f32 0.0, %v1525
      %v1527 = vpop.f32.mrf.mxu0
      %v1528 = vadd.f32 0.0, %v1527
      %1529 = vdwg.mxu0
      %v1530 = vadd.f32 %v1303, %v1492
      %v1531 = vadd.f32 %v1304, %v1494
      %v1532 = vadd.f32 %v1305, %v1496
      %v1533 = vadd.f32 %v1306, %v1498
      %v1534 = vadd.f32 %v1307, %v1502
      %v1535 = vadd.f32 %v1308, %v1504
      %v1536 = vadd.f32 %v1309, %v1506
      %v1537 = vadd.f32 %v1310, %v1508
      %v1538 = vadd.f32 %v1311, %v1512
      %v1539 = vadd.f32 %v1312, %v1514
      %v1540 = vadd.f32 %v1313, %v1516
      %v1541 = vadd.f32 %v1314, %v1518
      %v1542 = vadd.f32 %v1315, %v1522
      %v1543 = vadd.f32 %v1316, %v1524
      %v1544 = vadd.f32 %v1317, %v1526
      %v1545 = vadd.f32 %v1318, %v1528
      %v1546 = vpack.c.bf16 %v725, %v724
      %v1547 = vpack.c.bf16 %v727, %v726
      %v1548 = vpack.c.bf16 %v729, %v728
      %v1549 = vpack.c.bf16 %v731, %v730
      %s1550 = scalar_lea.vmem %s2, 512
      %v1551 = vld [vmem:[%s1550] sm:$0xff]
      %v1552 = vld [vmem:[%s1550 + $0x8] sm:$0xff]
      %v1553 = vld [vmem:[%s1550 + $0x10] sm:$0xff]
      %v1554 = vld [vmem:[%s1550 + $0x18] sm:$0xff]
      %v1555 = vld [vmem:[%s1550 + $0x20] sm:$0xff]
      %v1556 = vld [vmem:[%s1550 + $0x28] sm:$0xff]
      %v1557 = vld [vmem:[%s1550 + $0x30] sm:$0xff]
      %v1558 = vld [vmem:[%s1550 + $0x38] sm:$0xff]
      %v1559 = vld [vmem:[%s1550 + $0x40] sm:$0xff]
      %v1560 = vld [vmem:[%s1550 + $0x48] sm:$0xff]
      %v1561 = vld [vmem:[%s1550 + $0x50] sm:$0xff]
      %v1562 = vld [vmem:[%s1550 + $0x58] sm:$0xff]
      %v1563 = vld [vmem:[%s1550 + $0x60] sm:$0xff]
      %v1564 = vld [vmem:[%s1550 + $0x68] sm:$0xff]
      %v1565 = vld [vmem:[%s1550 + $0x70] sm:$0xff]
      %v1566 = vld [vmem:[%s1550 + $0x78] sm:$0xff]
      %v1583 = vunpack.c.l.b16 %v1551
      %v1584 = vunpack.c.h.b16 %v1551
      %v1585 = vunpack.c.l.b16 %v1552
      %v1586 = vunpack.c.h.b16 %v1552
      %v1587 = vunpack.c.l.b16 %v1553
      %v1588 = vunpack.c.h.b16 %v1553
      %v1589 = vunpack.c.l.b16 %v1554
      %v1590 = vunpack.c.h.b16 %v1554
      %v1591 = vunpack.c.l.b16 %v1555
      %v1592 = vunpack.c.h.b16 %v1555
      %v1593 = vunpack.c.l.b16 %v1556
      %v1594 = vunpack.c.h.b16 %v1556
      %v1595 = vunpack.c.l.b16 %v1557
      %v1596 = vunpack.c.h.b16 %v1557
      %v1597 = vunpack.c.l.b16 %v1558
      %v1598 = vunpack.c.h.b16 %v1558
      %v1599 = vunpack.c.l.b16 %v1559
      %v1600 = vunpack.c.h.b16 %v1559
      %v1601 = vunpack.c.l.b16 %v1560
      %v1602 = vunpack.c.h.b16 %v1560
      %v1603 = vunpack.c.l.b16 %v1561
      %v1604 = vunpack.c.h.b16 %v1561
      %v1605 = vunpack.c.l.b16 %v1562
      %v1606 = vunpack.c.h.b16 %v1562
      %v1607 = vunpack.c.l.b16 %v1563
      %v1608 = vunpack.c.h.b16 %v1563
      %v1609 = vunpack.c.l.b16 %v1564
      %v1610 = vunpack.c.h.b16 %v1564
      %v1611 = vunpack.c.l.b16 %v1565
      %v1612 = vunpack.c.h.b16 %v1565
      %v1613 = vunpack.c.l.b16 %v1566
      %v1614 = vunpack.c.h.b16 %v1566
      %v1615 = vpack.c.b16 %v1585, %v1583
      %v1616 = vpack.c.b16 %v1586, %v1584
      %v1617 = vpack.c.b16 %v1589, %v1587
      %v1618 = vpack.c.b16 %v1590, %v1588
      %v1619 = vpack.c.b16 %v1593, %v1591
      %v1620 = vpack.c.b16 %v1594, %v1592
      %v1621 = vpack.c.b16 %v1597, %v1595
      %v1622 = vpack.c.b16 %v1598, %v1596
      %v1623 = vpack.c.b16 %v1601, %v1599
      %v1624 = vpack.c.b16 %v1602, %v1600
      %v1625 = vpack.c.b16 %v1605, %v1603
      %v1626 = vpack.c.b16 %v1606, %v1604
      %v1627 = vpack.c.b16 %v1609, %v1607
      %v1628 = vpack.c.b16 %v1610, %v1608
      %v1629 = vpack.c.b16 %v1613, %v1611
      %v1630 = vpack.c.b16 %v1614, %v1612
      %1647 = vmatprep.subr.bf16.mxu0 %v1630
      %1648 = vmatpush1.bf16.msra.mxu0 %v1629
      %1649 = vmatprep.subr.bf16.mxu0 %v1628
      %1650 = vmatpush1.bf16.msra.mxu0 %v1627
      %1651 = vmatprep.subr.bf16.mxu0 %v1626
      %1652 = vmatpush1.bf16.msra.mxu0 %v1625
      %1653 = vmatprep.subr.bf16.mxu0 %v1624
      %1654 = vmatpush1.bf16.msra.mxu0 %v1623
      %1655 = vmatprep.subr.bf16.mxu0 %v1622
      %1656 = vmatpush1.bf16.msra.mxu0 %v1621
      %1657 = vmatprep.subr.bf16.mxu0 %v1620
      %1658 = vmatpush1.bf16.msra.mxu0 %v1619
      %1659 = vmatprep.subr.bf16.mxu0 %v1618
      %1660 = vmatpush1.bf16.msra.mxu0 %v1617
      %1661 = vmatprep.subr.bf16.mxu0 %v1616
      %1662 = vmatpush1.bf16.msra.mxu0 %v1615
      %1663 = vmatprep.subr.bf16.mxu0 0
      %1664 = vmatpush2.bf16.msra.mxu0 0
      %1665 = vmatprep.subr.bf16.mxu0 0
      %1666 = vmatpush2.bf16.msra.mxu0 0
      %1667 = vmatprep.subr.bf16.mxu0 0
      %1668 = vmatpush2.bf16.msra.mxu0 0
      %1669 = vmatprep.subr.bf16.mxu0 0
      %1670 = vmatpush2.bf16.msra.mxu0 0
      %1671 = vmatprep.subr.bf16.mxu0 0
      %1672 = vmatpush2.bf16.msra.mxu0 0
      %1673 = vmatprep.subr.bf16.mxu0 0
      %1674 = vmatpush2.bf16.msra.mxu0 0
      %1675 = vmatprep.subr.bf16.mxu0 0
      %1676 = vmatpush2.bf16.msra.mxu0 0
      %1677 = vmatprep.subr.bf16.mxu0 0
      %1678 = vmatpush2.bf16.msra.mxu0 0
      %1679 = vmatprep.mubr.bf16.mxu0 0
      %1680 = vmatmul.mubr.bf16.gmra.mxu0 %v1546
      %v1681 = vpop.f32.mrf.mxu0
      %v1682 = vadd.f32 0.0, %v1681
      %v1683 = vpop.f32.mrf.mxu0
      %v1684 = vadd.f32 0.0, %v1683
      %v1685 = vpop.f32.mrf.mxu0
      %v1686 = vadd.f32 0.0, %v1685
      %v1687 = vpop.f32.mrf.mxu0
      %v1688 = vadd.f32 0.0, %v1687
      %1689 = vmatprep.mubr.bf16.mxu0 0
      %1690 = vmatmul.mubr.bf16.gmra.mxu0 %v1547
      %v1691 = vpop.f32.mrf.mxu0
      %v1692 = vadd.f32 0.0, %v1691
      %v1693 = vpop.f32.mrf.mxu0
      %v1694 = vadd.f32 0.0, %v1693
      %v1695 = vpop.f32.mrf.mxu0
      %v1696 = vadd.f32 0.0, %v1695
      %v1697 = vpop.f32.mrf.mxu0
      %v1698 = vadd.f32 0.0, %v1697
      %1699 = vmatprep.mubr.bf16.mxu0 0
      %1700 = vmatmul.mubr.bf16.gmra.mxu0 %v1548
      %v1701 = vpop.f32.mrf.mxu0
      %v1702 = vadd.f32 0.0, %v1701
      %v1703 = vpop.f32.mrf.mxu0
      %v1704 = vadd.f32 0.0, %v1703
      %v1705 = vpop.f32.mrf.mxu0
      %v1706 = vadd.f32 0.0, %v1705
      %v1707 = vpop.f32.mrf.mxu0
      %v1708 = vadd.f32 0.0, %v1707
      %1709 = vmatprep.mubr.bf16.mxu0 0
      %1710 = vmatmul.mubr.bf16.gmra.mxu0 %v1549
      %v1711 = vpop.f32.mrf.mxu0
      %v1712 = vadd.f32 0.0, %v1711
      %v1713 = vpop.f32.mrf.mxu0
      %v1714 = vadd.f32 0.0, %v1713
      %v1715 = vpop.f32.mrf.mxu0
      %v1716 = vadd.f32 0.0, %v1715
      %v1717 = vpop.f32.mrf.mxu0
      %v1718 = vadd.f32 0.0, %v1717
      %1719 = vdwg.mxu0
      %v1720 = vadd.f32 %v1530, %v1682
      %v1721 = vadd.f32 %v1531, %v1684
      %v1722 = vadd.f32 %v1532, %v1686
      %v1723 = vadd.f32 %v1533, %v1688
      %v1724 = vadd.f32 %v1534, %v1692
      %v1725 = vadd.f32 %v1535, %v1694
      %v1726 = vadd.f32 %v1536, %v1696
      %v1727 = vadd.f32 %v1537, %v1698
      %v1728 = vadd.f32 %v1538, %v1702
      %v1729 = vadd.f32 %v1539, %v1704
      %v1730 = vadd.f32 %v1540, %v1706
      %v1731 = vadd.f32 %v1541, %v1708
      %v1732 = vadd.f32 %v1542, %v1712
      %v1733 = vadd.f32 %v1543, %v1714
      %v1734 = vadd.f32 %v1544, %v1716
      %v1735 = vadd.f32 %v1545, %v1718
      %v1736 = vpack.c.bf16 %v735, %v734
      %v1737 = vpack.c.bf16 %v737, %v736
      %v1738 = vpack.c.bf16 %v739, %v738
      %v1739 = vpack.c.bf16 %v741, %v740
      %s1740 = scalar_lea.vmem %s2, 640
      %v1741 = vld [vmem:[%s1740] sm:$0xff]
      %v1742 = vld [vmem:[%s1740 + $0x8] sm:$0xff]
      %v1743 = vld [vmem:[%s1740 + $0x10] sm:$0xff]
      %v1744 = vld [vmem:[%s1740 + $0x18] sm:$0xff]
      %v1745 = vld [vmem:[%s1740 + $0x20] sm:$0xff]
      %v1746 = vld [vmem:[%s1740 + $0x28] sm:$0xff]
      %v1747 = vld [vmem:[%s1740 + $0x30] sm:$0xff]
      %v1748 = vld [vmem:[%s1740 + $0x38] sm:$0xff]
      %v1749 = vld [vmem:[%s1740 + $0x40] sm:$0xff]
      %v1750 = vld [vmem:[%s1740 + $0x48] sm:$0xff]
      %v1751 = vld [vmem:[%s1740 + $0x50] sm:$0xff]
      %v1752 = vld [vmem:[%s1740 + $0x58] sm:$0xff]
      %v1753 = vld [vmem:[%s1740 + $0x60] sm:$0xff]
      %v1754 = vld [vmem:[%s1740 + $0x68] sm:$0xff]
      %v1755 = vld [vmem:[%s1740 + $0x70] sm:$0xff]
      %v1756 = vld [vmem:[%s1740 + $0x78] sm:$0xff]
      %v1773 = vunpack.c.l.b16 %v1741
      %v1774 = vunpack.c.h.b16 %v1741
      %v1775 = vunpack.c.l.b16 %v1742
      %v1776 = vunpack.c.h.b16 %v1742
      %v1777 = vunpack.c.l.b16 %v1743
      %v1778 = vunpack.c.h.b16 %v1743
      %v1779 = vunpack.c.l.b16 %v1744
      %v1780 = vunpack.c.h.b16 %v1744
      %v1781 = vunpack.c.l.b16 %v1745
      %v1782 = vunpack.c.h.b16 %v1745
      %v1783 = vunpack.c.l.b16 %v1746
      %v1784 = vunpack.c.h.b16 %v1746
      %v1785 = vunpack.c.l.b16 %v1747
      %v1786 = vunpack.c.h.b16 %v1747
      %v1787 = vunpack.c.l.b16 %v1748
      %v1788 = vunpack.c.h.b16 %v1748
      %v1789 = vunpack.c.l.b16 %v1749
      %v1790 = vunpack.c.h.b16 %v1749
      %v1791 = vunpack.c.l.b16 %v1750
      %v1792 = vunpack.c.h.b16 %v1750
      %v1793 = vunpack.c.l.b16 %v1751
      %v1794 = vunpack.c.h.b16 %v1751
      %v1795 = vunpack.c.l.b16 %v1752
      %v1796 = vunpack.c.h.b16 %v1752
      %v1797 = vunpack.c.l.b16 %v1753
      %v1798 = vunpack.c.h.b16 %v1753
      %v1799 = vunpack.c.l.b16 %v1754
      %v1800 = vunpack.c.h.b16 %v1754
      %v1801 = vunpack.c.l.b16 %v1755
      %v1802 = vunpack.c.h.b16 %v1755
      %v1803 = vunpack.c.l.b16 %v1756
      %v1804 = vunpack.c.h.b16 %v1756
      %v1805 = vpack.c.b16 %v1775, %v1773
      %v1806 = vpack.c.b16 %v1776, %v1774
      %v1807 = vpack.c.b16 %v1779, %v1777
      %v1808 = vpack.c.b16 %v1780, %v1778
      %v1809 = vpack.c.b16 %v1783, %v1781
      %v1810 = vpack.c.b16 %v1784, %v1782
      %v1811 = vpack.c.b16 %v1787, %v1785
      %v1812 = vpack.c.b16 %v1788, %v1786
      %v1813 = vpack.c.b16 %v1791, %v1789
      %v1814 = vpack.c.b16 %v1792, %v1790
      %v1815 = vpack.c.b16 %v1795, %v1793
      %v1816 = vpack.c.b16 %v1796, %v1794
      %v1817 = vpack.c.b16 %v1799, %v1797
      %v1818 = vpack.c.b16 %v1800, %v1798
      %v1819 = vpack.c.b16 %v1803, %v1801
      %v1820 = vpack.c.b16 %v1804, %v1802
      %1837 = vmatprep.subr.bf16.mxu0 %v1820
      %1838 = vmatpush1.bf16.msra.mxu0 %v1819
      %1839 = vmatprep.subr.bf16.mxu0 %v1818
      %1840 = vmatpush1.bf16.msra.mxu0 %v1817
      %1841 = vmatprep.subr.bf16.mxu0 %v1816
      %1842 = vmatpush1.bf16.msra.mxu0 %v1815
      %1843 = vmatprep.subr.bf16.mxu0 %v1814
      %1844 = vmatpush1.bf16.msra.mxu0 %v1813
      %1845 = vmatprep.subr.bf16.mxu0 %v1812
      %1846 = vmatpush1.bf16.msra.mxu0 %v1811
      %1847 = vmatprep.subr.bf16.mxu0 %v1810
      %1848 = vmatpush1.bf16.msra.mxu0 %v1809
      %1849 = vmatprep.subr.bf16.mxu0 %v1808
      %1850 = vmatpush1.bf16.msra.mxu0 %v1807
      %1851 = vmatprep.subr.bf16.mxu0 %v1806
      %1852 = vmatpush1.bf16.msra.mxu0 %v1805
      %1853 = vmatprep.subr.bf16.mxu0 0
      %1854 = vmatpush2.bf16.msra.mxu0 0
      %1855 = vmatprep.subr.bf16.mxu0 0
      %1856 = vmatpush2.bf16.msra.mxu0 0
      %1857 = vmatprep.subr.bf16.mxu0 0
      %1858 = vmatpush2.bf16.msra.mxu0 0
      %1859 = vmatprep.subr.bf16.mxu0 0
      %1860 = vmatpush2.bf16.msra.mxu0 0
      %1861 = vmatprep.subr.bf16.mxu0 0
      %1862 = vmatpush2.bf16.msra.mxu0 0
      %1863 = vmatprep.subr.bf16.mxu0 0
      %1864 = vmatpush2.bf16.msra.mxu0 0
      %1865 = vmatprep.subr.bf16.mxu0 0
      %1866 = vmatpush2.bf16.msra.mxu0 0
      %1867 = vmatprep.subr.bf16.mxu0 0
      %1868 = vmatpush2.bf16.msra.mxu0 0
      %1869 = vmatprep.mubr.bf16.mxu0 0
      %1870 = vmatmul.mubr.bf16.gmra.mxu0 %v1736
      %v1871 = vpop.f32.mrf.mxu0
      %v1872 = vadd.f32 0.0, %v1871
      %v1873 = vpop.f32.mrf.mxu0
      %v1874 = vadd.f32 0.0, %v1873
      %v1875 = vpop.f32.mrf.mxu0
      %v1876 = vadd.f32 0.0, %v1875
      %v1877 = vpop.f32.mrf.mxu0
      %v1878 = vadd.f32 0.0, %v1877
      %1879 = vmatprep.mubr.bf16.mxu0 0
      %1880 = vmatmul.mubr.bf16.gmra.mxu0 %v1737
      %v1881 = vpop.f32.mrf.mxu0
      %v1882 = vadd.f32 0.0, %v1881
      %v1883 = vpop.f32.mrf.mxu0
      %v1884 = vadd.f32 0.0, %v1883
      %v1885 = vpop.f32.mrf.mxu0
      %v1886 = vadd.f32 0.0, %v1885
      %v1887 = vpop.f32.mrf.mxu0
      %v1888 = vadd.f32 0.0, %v1887
      %1889 = vmatprep.mubr.bf16.mxu0 0
      %1890 = vmatmul.mubr.bf16.gmra.mxu0 %v1738
      %v1891 = vpop.f32.mrf.mxu0
      %v1892 = vadd.f32 0.0, %v1891
      %v1893 = vpop.f32.mrf.mxu0
      %v1894 = vadd.f32 0.0, %v1893
      %v1895 = vpop.f32.mrf.mxu0
      %v1896 = vadd.f32 0.0, %v1895
      %v1897 = vpop.f32.mrf.mxu0
      %v1898 = vadd.f32 0.0, %v1897
      %1899 = vmatprep.mubr.bf16.mxu0 0
      %1900 = vmatmul.mubr.bf16.gmra.mxu0 %v1739
      %v1901 = vpop.f32.mrf.mxu0
      %v1902 = vadd.f32 0.0, %v1901
      %v1903 = vpop.f32.mrf.mxu0
      %v1904 = vadd.f32 0.0, %v1903
      %v1905 = vpop.f32.mrf.mxu0
      %v1906 = vadd.f32 0.0, %v1905
      %v1907 = vpop.f32.mrf.mxu0
      %v1908 = vadd.f32 0.0, %v1907
      %1909 = vdwg.mxu0
      %v1910 = vadd.f32 %v1720, %v1872
      %v1911 = vadd.f32 %v1721, %v1874
      %v1912 = vadd.f32 %v1722, %v1876
      %v1913 = vadd.f32 %v1723, %v1878
      %v1914 = vadd.f32 %v1724, %v1882
      %v1915 = vadd.f32 %v1725, %v1884
      %v1916 = vadd.f32 %v1726, %v1886
      %v1917 = vadd.f32 %v1727, %v1888
      %v1918 = vadd.f32 %v1728, %v1892
      %v1919 = vadd.f32 %v1729, %v1894
      %v1920 = vadd.f32 %v1730, %v1896
      %v1921 = vadd.f32 %v1731, %v1898
      %v1922 = vadd.f32 %v1732, %v1902
      %v1923 = vadd.f32 %v1733, %v1904
      %v1924 = vadd.f32 %v1734, %v1906
      %v1925 = vadd.f32 %v1735, %v1908
      %v1926 = vpack.c.bf16 %v732, %v732
      %s1927 = scalar_lea.vmem %s2, 768
      %v1928 = vld [vmem:[%s1927] sm:$0xff]
      %v1929 = vld [vmem:[%s1927 + $0x8] sm:$0xff]
      %v1930 = vld [vmem:[%s1927 + $0x10] sm:$0xff]
      %v1931 = vld [vmem:[%s1927 + $0x18] sm:$0xff]
      %v1932 = vld [vmem:[%s1927 + $0x20] sm:$0xff]
      %v1933 = vld [vmem:[%s1927 + $0x28] sm:$0xff]
      %v1934 = vld [vmem:[%s1927 + $0x30] sm:$0xff]
      %v1935 = vld [vmem:[%s1927 + $0x38] sm:$0xff]
      %v1936 = vld [vmem:[%s1927 + $0x40] sm:$0xff]
      %v1937 = vld [vmem:[%s1927 + $0x48] sm:$0xff]
      %v1938 = vld [vmem:[%s1927 + $0x50] sm:$0xff]
      %v1939 = vld [vmem:[%s1927 + $0x58] sm:$0xff]
      %v1940 = vld [vmem:[%s1927 + $0x60] sm:$0xff]
      %v1941 = vld [vmem:[%s1927 + $0x68] sm:$0xff]
      %v1942 = vld [vmem:[%s1927 + $0x70] sm:$0xff]
      %v1943 = vld [vmem:[%s1927 + $0x78] sm:$0xff]
      %v1945 = vshrl.u32 %v1546, 16
      %v1947 = vshll.u32 %v1546, 16
      %v1949 = vrot.slane %v1947, 1
      %v1950 = vor.u32 %v1945, %v1949
      %v1952 = vshll.u32 %v1547, 16
      %v1954 = vrot.slane %v1952, 1
      %v1955 = vsel %vm1109, %v1950, %v1954
      %v1956 = vshrl.u32 %v1547, 16
      %v1958 = vor.u32 %v1956, %v1954
      %v1960 = vshll.u32 %v1548, 16
      %v1962 = vrot.slane %v1960, 1
      %v1963 = vsel %vm1109, %v1958, %v1962
      %v1964 = vshrl.u32 %v1548, 16
      %v1966 = vor.u32 %v1964, %v1962
      %v1968 = vshll.u32 %v1549, 16
      %v1970 = vrot.slane %v1968, 1
      %v1971 = vsel %vm1109, %v1966, %v1970
      %v1972 = vshrl.u32 %v1549, 16
      %v1974 = vor.u32 %v1972, %v1970
      %v1976 = vshll.u32 %v1926, 16
      %v1978 = vrot.slane %v1976, 1
      %v1979 = vsel %vm1109, %v1974, %v1978
      %v2000 = vunpack.c.l.b16 %v1928
      %v2001 = vunpack.c.h.b16 %v1928
      %v2002 = vunpack.c.l.b16 %v1929
      %v2003 = vunpack.c.h.b16 %v1929
      %v2004 = vunpack.c.l.b16 %v1930
      %v2005 = vunpack.c.h.b16 %v1930
      %v2006 = vunpack.c.l.b16 %v1931
      %v2007 = vunpack.c.h.b16 %v1931
      %v2008 = vunpack.c.l.b16 %v1932
      %v2009 = vunpack.c.h.b16 %v1932
      %v2010 = vunpack.c.l.b16 %v1933
      %v2011 = vunpack.c.h.b16 %v1933
      %v2012 = vunpack.c.l.b16 %v1934
      %v2013 = vunpack.c.h.b16 %v1934
      %v2014 = vunpack.c.l.b16 %v1935
      %v2015 = vunpack.c.h.b16 %v1935
      %v2016 = vunpack.c.l.b16 %v1936
      %v2017 = vunpack.c.h.b16 %v1936
      %v2018 = vunpack.c.l.b16 %v1937
      %v2019 = vunpack.c.h.b16 %v1937
      %v2020 = vunpack.c.l.b16 %v1938
      %v2021 = vunpack.c.h.b16 %v1938
      %v2022 = vunpack.c.l.b16 %v1939
      %v2023 = vunpack.c.h.b16 %v1939
      %v2024 = vunpack.c.l.b16 %v1940
      %v2025 = vunpack.c.h.b16 %v1940
      %v2026 = vunpack.c.l.b16 %v1941
      %v2027 = vunpack.c.h.b16 %v1941
      %v2028 = vunpack.c.l.b16 %v1942
      %v2029 = vunpack.c.h.b16 %v1942
      %v2030 = vunpack.c.l.b16 %v1943
      %v2031 = vunpack.c.h.b16 %v1943
      %v2032 = vpack.c.b16 %v2002, %v2000
      %v2033 = vpack.c.b16 %v2003, %v2001
      %v2034 = vpack.c.b16 %v2006, %v2004
      %v2035 = vpack.c.b16 %v2007, %v2005
      %v2036 = vpack.c.b16 %v2010, %v2008
      %v2037 = vpack.c.b16 %v2011, %v2009
      %v2038 = vpack.c.b16 %v2014, %v2012
      %v2039 = vpack.c.b16 %v2015, %v2013
      %v2040 = vpack.c.b16 %v2018, %v2016
      %v2041 = vpack.c.b16 %v2019, %v2017
      %v2042 = vpack.c.b16 %v2022, %v2020
      %v2043 = vpack.c.b16 %v2023, %v2021
      %v2044 = vpack.c.b16 %v2026, %v2024
      %v2045 = vpack.c.b16 %v2027, %v2025
      %v2046 = vpack.c.b16 %v2030, %v2028
      %v2047 = vpack.c.b16 %v2031, %v2029
      %2064 = vmatprep.subr.bf16.mxu0 %v2047
      %2065 = vmatpush1.bf16.msra.mxu0 %v2046
      %2066 = vmatprep.subr.bf16.mxu0 %v2045
      %2067 = vmatpush1.bf16.msra.mxu0 %v2044
      %2068 = vmatprep.subr.bf16.mxu0 %v2043
      %2069 = vmatpush1.bf16.msra.mxu0 %v2042
      %2070 = vmatprep.subr.bf16.mxu0 %v2041
      %2071 = vmatpush1.bf16.msra.mxu0 %v2040
      %2072 = vmatprep.subr.bf16.mxu0 %v2039
      %2073 = vmatpush1.bf16.msra.mxu0 %v2038
      %2074 = vmatprep.subr.bf16.mxu0 %v2037
      %2075 = vmatpush1.bf16.msra.mxu0 %v2036
      %2076 = vmatprep.subr.bf16.mxu0 %v2035
      %2077 = vmatpush1.bf16.msra.mxu0 %v2034
      %2078 = vmatprep.subr.bf16.mxu0 %v2033
      %2079 = vmatpush1.bf16.msra.mxu0 %v2032
      %2080 = vmatprep.subr.bf16.mxu0 0
      %2081 = vmatpush2.bf16.msra.mxu0 0
      %2082 = vmatprep.subr.bf16.mxu0 0
      %2083 = vmatpush2.bf16.msra.mxu0 0
      %2084 = vmatprep.subr.bf16.mxu0 0
      %2085 = vmatpush2.bf16.msra.mxu0 0
      %2086 = vmatprep.subr.bf16.mxu0 0
      %2087 = vmatpush2.bf16.msra.mxu0 0
      %2088 = vmatprep.subr.bf16.mxu0 0
      %2089 = vmatpush2.bf16.msra.mxu0 0
      %2090 = vmatprep.subr.bf16.mxu0 0
      %2091 = vmatpush2.bf16.msra.mxu0 0
      %2092 = vmatprep.subr.bf16.mxu0 0
      %2093 = vmatpush2.bf16.msra.mxu0 0
      %2094 = vmatprep.subr.bf16.mxu0 0
      %2095 = vmatpush2.bf16.msra.mxu0 0
      %2096 = vmatprep.mubr.bf16.mxu0 0
      %2097 = vmatmul.mubr.bf16.gmra.mxu0 %v1955
      %v2098 = vpop.f32.mrf.mxu0
      %v2099 = vadd.f32 0.0, %v2098
      %v2100 = vpop.f32.mrf.mxu0
      %v2101 = vadd.f32 0.0, %v2100
      %v2102 = vpop.f32.mrf.mxu0
      %v2103 = vadd.f32 0.0, %v2102
      %v2104 = vpop.f32.mrf.mxu0
      %v2105 = vadd.f32 0.0, %v2104
      %2106 = vmatprep.mubr.bf16.mxu0 0
      %2107 = vmatmul.mubr.bf16.gmra.mxu0 %v1963
      %v2108 = vpop.f32.mrf.mxu0
      %v2109 = vadd.f32 0.0, %v2108
      %v2110 = vpop.f32.mrf.mxu0
      %v2111 = vadd.f32 0.0, %v2110
      %v2112 = vpop.f32.mrf.mxu0
      %v2113 = vadd.f32 0.0, %v2112
      %v2114 = vpop.f32.mrf.mxu0
      %v2115 = vadd.f32 0.0, %v2114
      %2116 = vmatprep.mubr.bf16.mxu0 0
      %2117 = vmatmul.mubr.bf16.gmra.mxu0 %v1971
      %v2118 = vpop.f32.mrf.mxu0
      %v2119 = vadd.f32 0.0, %v2118
      %v2120 = vpop.f32.mrf.mxu0
      %v2121 = vadd.f32 0.0, %v2120
      %v2122 = vpop.f32.mrf.mxu0
      %v2123 = vadd.f32 0.0, %v2122
      %v2124 = vpop.f32.mrf.mxu0
      %v2125 = vadd.f32 0.0, %v2124
      %2126 = vmatprep.mubr.bf16.mxu0 0
      %2127 = vmatmul.mubr.bf16.gmra.mxu0 %v1979
      %v2128 = vpop.f32.mrf.mxu0
      %v2129 = vadd.f32 0.0, %v2128
      %v2130 = vpop.f32.mrf.mxu0
      %v2131 = vadd.f32 0.0, %v2130
      %v2132 = vpop.f32.mrf.mxu0
      %v2133 = vadd.f32 0.0, %v2132
      %v2134 = vpop.f32.mrf.mxu0
      %v2135 = vadd.f32 0.0, %v2134
      %2136 = vdwg.mxu0
      %v2137 = vadd.f32 %v1910, %v2099
      %v2138 = vadd.f32 %v1911, %v2101
      %v2139 = vadd.f32 %v1912, %v2103
      %v2140 = vadd.f32 %v1913, %v2105
      %v2141 = vadd.f32 %v1914, %v2109
      %v2142 = vadd.f32 %v1915, %v2111
      %v2143 = vadd.f32 %v1916, %v2113
      %v2144 = vadd.f32 %v1917, %v2115
      %v2145 = vadd.f32 %v1918, %v2119
      %v2146 = vadd.f32 %v1919, %v2121
      %v2147 = vadd.f32 %v1920, %v2123
      %v2148 = vadd.f32 %v1921, %v2125
      %v2149 = vadd.f32 %v1922, %v2129
      %v2150 = vadd.f32 %v1923, %v2131
      %v2151 = vadd.f32 %v1924, %v2133
      %v2152 = vadd.f32 %v1925, %v2135
      %v2153 = vpack.c.bf16 %v742, %v742
      %s2154 = scalar_lea.vmem %s2, 896
      %v2155 = vld [vmem:[%s2154] sm:$0xff]
      %v2156 = vld [vmem:[%s2154 + $0x8] sm:$0xff]
      %v2157 = vld [vmem:[%s2154 + $0x10] sm:$0xff]
      %v2158 = vld [vmem:[%s2154 + $0x18] sm:$0xff]
      %v2159 = vld [vmem:[%s2154 + $0x20] sm:$0xff]
      %v2160 = vld [vmem:[%s2154 + $0x28] sm:$0xff]
      %v2161 = vld [vmem:[%s2154 + $0x30] sm:$0xff]
      %v2162 = vld [vmem:[%s2154 + $0x38] sm:$0xff]
      %v2163 = vld [vmem:[%s2154 + $0x40] sm:$0xff]
      %v2164 = vld [vmem:[%s2154 + $0x48] sm:$0xff]
      %v2165 = vld [vmem:[%s2154 + $0x50] sm:$0xff]
      %v2166 = vld [vmem:[%s2154 + $0x58] sm:$0xff]
      %v2167 = vld [vmem:[%s2154 + $0x60] sm:$0xff]
      %v2168 = vld [vmem:[%s2154 + $0x68] sm:$0xff]
      %v2169 = vld [vmem:[%s2154 + $0x70] sm:$0xff]
      %v2170 = vld [vmem:[%s2154 + $0x78] sm:$0xff]
      %v2172 = vshrl.u32 %v1736, 16
      %v2174 = vshll.u32 %v1736, 16
      %v2176 = vrot.slane %v2174, 1
      %v2177 = vor.u32 %v2172, %v2176
      %v2179 = vshll.u32 %v1737, 16
      %v2181 = vrot.slane %v2179, 1
      %v2182 = vsel %vm1109, %v2177, %v2181
      %v2183 = vshrl.u32 %v1737, 16
      %v2185 = vor.u32 %v2183, %v2181
      %v2187 = vshll.u32 %v1738, 16
      %v2189 = vrot.slane %v2187, 1
      %v2190 = vsel %vm1109, %v2185, %v2189
      %v2191 = vshrl.u32 %v1738, 16
      %v2193 = vor.u32 %v2191, %v2189
      %v2195 = vshll.u32 %v1739, 16
      %v2197 = vrot.slane %v2195, 1
      %v2198 = vsel %vm1109, %v2193, %v2197
      %v2199 = vshrl.u32 %v1739, 16
      %v2201 = vor.u32 %v2199, %v2197
      %v2203 = vshll.u32 %v2153, 16
      %v2205 = vrot.slane %v2203, 1
      %v2206 = vsel %vm1109, %v2201, %v2205
      %v2227 = vunpack.c.l.b16 %v2155
      %v2228 = vunpack.c.h.b16 %v2155
      %v2229 = vunpack.c.l.b16 %v2156
      %v2230 = vunpack.c.h.b16 %v2156
      %v2231 = vunpack.c.l.b16 %v2157
      %v2232 = vunpack.c.h.b16 %v2157
      %v2233 = vunpack.c.l.b16 %v2158
      %v2234 = vunpack.c.h.b16 %v2158
      %v2235 = vunpack.c.l.b16 %v2159
      %v2236 = vunpack.c.h.b16 %v2159
      %v2237 = vunpack.c.l.b16 %v2160
      %v2238 = vunpack.c.h.b16 %v2160
      %v2239 = vunpack.c.l.b16 %v2161
      %v2240 = vunpack.c.h.b16 %v2161
      %v2241 = vunpack.c.l.b16 %v2162
      %v2242 = vunpack.c.h.b16 %v2162
      %v2243 = vunpack.c.l.b16 %v2163
      %v2244 = vunpack.c.h.b16 %v2163
      %v2245 = vunpack.c.l.b16 %v2164
      %v2246 = vunpack.c.h.b16 %v2164
      %v2247 = vunpack.c.l.b16 %v2165
      %v2248 = vunpack.c.h.b16 %v2165
      %v2249 = vunpack.c.l.b16 %v2166
      %v2250 = vunpack.c.h.b16 %v2166
      %v2251 = vunpack.c.l.b16 %v2167
      %v2252 = vunpack.c.h.b16 %v2167
      %v2253 = vunpack.c.l.b16 %v2168
      %v2254 = vunpack.c.h.b16 %v2168
      %v2255 = vunpack.c.l.b16 %v2169
      %v2256 = vunpack.c.h.b16 %v2169
      %v2257 = vunpack.c.l.b16 %v2170
      %v2258 = vunpack.c.h.b16 %v2170
      %v2259 = vpack.c.b16 %v2229, %v2227
      %v2260 = vpack.c.b16 %v2230, %v2228
      %v2261 = vpack.c.b16 %v2233, %v2231
      %v2262 = vpack.c.b16 %v2234, %v2232
      %v2263 = vpack.c.b16 %v2237, %v2235
      %v2264 = vpack.c.b16 %v2238, %v2236
      %v2265 = vpack.c.b16 %v2241, %v2239
      %v2266 = vpack.c.b16 %v2242, %v2240
      %v2267 = vpack.c.b16 %v2245, %v2243
      %v2268 = vpack.c.b16 %v2246, %v2244
      %v2269 = vpack.c.b16 %v2249, %v2247
      %v2270 = vpack.c.b16 %v2250, %v2248
      %v2271 = vpack.c.b16 %v2253, %v2251
      %v2272 = vpack.c.b16 %v2254, %v2252
      %v2273 = vpack.c.b16 %v2257, %v2255
      %v2274 = vpack.c.b16 %v2258, %v2256
      %2291 = vmatprep.subr.bf16.mxu0 %v2274
      %2292 = vmatpush1.bf16.msra.mxu0 %v2273
      %2293 = vmatprep.subr.bf16.mxu0 %v2272
      %2294 = vmatpush1.bf16.msra.mxu0 %v2271
      %2295 = vmatprep.subr.bf16.mxu0 %v2270
      %2296 = vmatpush1.bf16.msra.mxu0 %v2269
      %2297 = vmatprep.subr.bf16.mxu0 %v2268
      %2298 = vmatpush1.bf16.msra.mxu0 %v2267
      %2299 = vmatprep.subr.bf16.mxu0 %v2266
      %2300 = vmatpush1.bf16.msra.mxu0 %v2265
      %2301 = vmatprep.subr.bf16.mxu0 %v2264
      %2302 = vmatpush1.bf16.msra.mxu0 %v2263
      %2303 = vmatprep.subr.bf16.mxu0 %v2262
      %2304 = vmatpush1.bf16.msra.mxu0 %v2261
      %2305 = vmatprep.subr.bf16.mxu0 %v2260
      %2306 = vmatpush1.bf16.msra.mxu0 %v2259
      %2307 = vmatprep.subr.bf16.mxu0 0
      %2308 = vmatpush2.bf16.msra.mxu0 0
      %2309 = vmatprep.subr.bf16.mxu0 0
      %2310 = vmatpush2.bf16.msra.mxu0 0
      %2311 = vmatprep.subr.bf16.mxu0 0
      %2312 = vmatpush2.bf16.msra.mxu0 0
      %2313 = vmatprep.subr.bf16.mxu0 0
      %2314 = vmatpush2.bf16.msra.mxu0 0
      %2315 = vmatprep.subr.bf16.mxu0 0
      %2316 = vmatpush2.bf16.msra.mxu0 0
      %2317 = vmatprep.subr.bf16.mxu0 0
      %2318 = vmatpush2.bf16.msra.mxu0 0
      %2319 = vmatprep.subr.bf16.mxu0 0
      %2320 = vmatpush2.bf16.msra.mxu0 0
      %2321 = vmatprep.subr.bf16.mxu0 0
      %2322 = vmatpush2.bf16.msra.mxu0 0
      %2323 = vmatprep.mubr.bf16.mxu0 0
      %2324 = vmatmul.mubr.bf16.gmra.mxu0 %v2182
      %v2325 = vpop.f32.mrf.mxu0
      %v2326 = vadd.f32 0.0, %v2325
      %v2327 = vpop.f32.mrf.mxu0
      %v2328 = vadd.f32 0.0, %v2327
      %v2329 = vpop.f32.mrf.mxu0
      %v2330 = vadd.f32 0.0, %v2329
      %v2331 = vpop.f32.mrf.mxu0
      %v2332 = vadd.f32 0.0, %v2331
      %2333 = vmatprep.mubr.bf16.mxu0 0
      %2334 = vmatmul.mubr.bf16.gmra.mxu0 %v2190
      %v2335 = vpop.f32.mrf.mxu0
      %v2336 = vadd.f32 0.0, %v2335
      %v2337 = vpop.f32.mrf.mxu0
      %v2338 = vadd.f32 0.0, %v2337
      %v2339 = vpop.f32.mrf.mxu0
      %v2340 = vadd.f32 0.0, %v2339
      %v2341 = vpop.f32.mrf.mxu0
      %v2342 = vadd.f32 0.0, %v2341
      %2343 = vmatprep.mubr.bf16.mxu0 0
      %2344 = vmatmul.mubr.bf16.gmra.mxu0 %v2198
      %v2345 = vpop.f32.mrf.mxu0
      %v2346 = vadd.f32 0.0, %v2345
      %v2347 = vpop.f32.mrf.mxu0
      %v2348 = vadd.f32 0.0, %v2347
      %v2349 = vpop.f32.mrf.mxu0
      %v2350 = vadd.f32 0.0, %v2349
      %v2351 = vpop.f32.mrf.mxu0
      %v2352 = vadd.f32 0.0, %v2351
      %2353 = vmatprep.mubr.bf16.mxu0 0
      %2354 = vmatmul.mubr.bf16.gmra.mxu0 %v2206
      %v2355 = vpop.f32.mrf.mxu0
      %v2356 = vadd.f32 0.0, %v2355
      %v2357 = vpop.f32.mrf.mxu0
      %v2358 = vadd.f32 0.0, %v2357
      %v2359 = vpop.f32.mrf.mxu0
      %v2360 = vadd.f32 0.0, %v2359
      %v2361 = vpop.f32.mrf.mxu0
      %v2362 = vadd.f32 0.0, %v2361
      %2363 = vdwg.mxu0
      %v2364 = vadd.f32 %v2137, %v2326
      %v2365 = vadd.f32 %v2138, %v2328
      %v2366 = vadd.f32 %v2139, %v2330
      %v2367 = vadd.f32 %v2140, %v2332
      %v2368 = vadd.f32 %v2141, %v2336
      %v2369 = vadd.f32 %v2142, %v2338
      %v2370 = vadd.f32 %v2143, %v2340
      %v2371 = vadd.f32 %v2144, %v2342
      %v2372 = vadd.f32 %v2145, %v2346
      %v2373 = vadd.f32 %v2146, %v2348
      %v2374 = vadd.f32 %v2147, %v2350
      %v2375 = vadd.f32 %v2148, %v2352
      %v2376 = vadd.f32 %v2149, %v2356
      %v2377 = vadd.f32 %v2150, %v2358
      %v2378 = vadd.f32 %v2151, %v2360
      %v2379 = vadd.f32 %v2152, %v2362
      %v2380 = vpack.c.bf16 %v706, %v705
      %v2381 = vpack.c.bf16 %v708, %v707
      %v2382 = vpack.c.bf16 %v710, %v709
      %v2383 = vpack.c.bf16 %v712, %v711
      %s2384 = scalar_lea.vmem %s2, 1024
      %v2385 = vld [vmem:[%s2384] sm:$0xff]
      %v2386 = vld [vmem:[%s2384 + $0x8] sm:$0xff]
      %v2387 = vld [vmem:[%s2384 + $0x10] sm:$0xff]
      %v2388 = vld [vmem:[%s2384 + $0x18] sm:$0xff]
      %v2389 = vld [vmem:[%s2384 + $0x20] sm:$0xff]
      %v2390 = vld [vmem:[%s2384 + $0x28] sm:$0xff]
      %v2391 = vld [vmem:[%s2384 + $0x30] sm:$0xff]
      %v2392 = vld [vmem:[%s2384 + $0x38] sm:$0xff]
      %v2393 = vld [vmem:[%s2384 + $0x40] sm:$0xff]
      %v2394 = vld [vmem:[%s2384 + $0x48] sm:$0xff]
      %v2395 = vld [vmem:[%s2384 + $0x50] sm:$0xff]
      %v2396 = vld [vmem:[%s2384 + $0x58] sm:$0xff]
      %v2397 = vld [vmem:[%s2384 + $0x60] sm:$0xff]
      %v2398 = vld [vmem:[%s2384 + $0x68] sm:$0xff]
      %v2399 = vld [vmem:[%s2384 + $0x70] sm:$0xff]
      %v2400 = vld [vmem:[%s2384 + $0x78] sm:$0xff]
      %v2417 = vunpack.c.l.b16 %v2385
      %v2418 = vunpack.c.h.b16 %v2385
      %v2419 = vunpack.c.l.b16 %v2386
      %v2420 = vunpack.c.h.b16 %v2386
      %v2421 = vunpack.c.l.b16 %v2387
      %v2422 = vunpack.c.h.b16 %v2387
      %v2423 = vunpack.c.l.b16 %v2388
      %v2424 = vunpack.c.h.b16 %v2388
      %v2425 = vunpack.c.l.b16 %v2389
      %v2426 = vunpack.c.h.b16 %v2389
      %v2427 = vunpack.c.l.b16 %v2390
      %v2428 = vunpack.c.h.b16 %v2390
      %v2429 = vunpack.c.l.b16 %v2391
      %v2430 = vunpack.c.h.b16 %v2391
      %v2431 = vunpack.c.l.b16 %v2392
      %v2432 = vunpack.c.h.b16 %v2392
      %v2433 = vunpack.c.l.b16 %v2393
      %v2434 = vunpack.c.h.b16 %v2393
      %v2435 = vunpack.c.l.b16 %v2394
      %v2436 = vunpack.c.h.b16 %v2394
      %v2437 = vunpack.c.l.b16 %v2395
      %v2438 = vunpack.c.h.b16 %v2395
      %v2439 = vunpack.c.l.b16 %v2396
      %v2440 = vunpack.c.h.b16 %v2396
      %v2441 = vunpack.c.l.b16 %v2397
      %v2442 = vunpack.c.h.b16 %v2397
      %v2443 = vunpack.c.l.b16 %v2398
      %v2444 = vunpack.c.h.b16 %v2398
      %v2445 = vunpack.c.l.b16 %v2399
      %v2446 = vunpack.c.h.b16 %v2399
      %v2447 = vunpack.c.l.b16 %v2400
      %v2448 = vunpack.c.h.b16 %v2400
      %v2449 = vpack.c.b16 %v2419, %v2417
      %v2450 = vpack.c.b16 %v2420, %v2418
      %v2451 = vpack.c.b16 %v2423, %v2421
      %v2452 = vpack.c.b16 %v2424, %v2422
      %v2453 = vpack.c.b16 %v2427, %v2425
      %v2454 = vpack.c.b16 %v2428, %v2426
      %v2455 = vpack.c.b16 %v2431, %v2429
      %v2456 = vpack.c.b16 %v2432, %v2430
      %v2457 = vpack.c.b16 %v2435, %v2433
      %v2458 = vpack.c.b16 %v2436, %v2434
      %v2459 = vpack.c.b16 %v2439, %v2437
      %v2460 = vpack.c.b16 %v2440, %v2438
      %v2461 = vpack.c.b16 %v2443, %v2441
      %v2462 = vpack.c.b16 %v2444, %v2442
      %v2463 = vpack.c.b16 %v2447, %v2445
      %v2464 = vpack.c.b16 %v2448, %v2446
      %2481 = vmatprep.subr.bf16.mxu0 %v2464
      %2482 = vmatpush1.bf16.msra.mxu0 %v2463
      %2483 = vmatprep.subr.bf16.mxu0 %v2462
      %2484 = vmatpush1.bf16.msra.mxu0 %v2461
      %2485 = vmatprep.subr.bf16.mxu0 %v2460
      %2486 = vmatpush1.bf16.msra.mxu0 %v2459
      %2487 = vmatprep.subr.bf16.mxu0 %v2458
      %2488 = vmatpush1.bf16.msra.mxu0 %v2457
      %2489 = vmatprep.subr.bf16.mxu0 %v2456
      %2490 = vmatpush1.bf16.msra.mxu0 %v2455
      %2491 = vmatprep.subr.bf16.mxu0 %v2454
      %2492 = vmatpush1.bf16.msra.mxu0 %v2453
      %2493 = vmatprep.subr.bf16.mxu0 %v2452
      %2494 = vmatpush1.bf16.msra.mxu0 %v2451
      %2495 = vmatprep.subr.bf16.mxu0 %v2450
      %2496 = vmatpush1.bf16.msra.mxu0 %v2449
      %2497 = vmatprep.subr.bf16.mxu0 0
      %2498 = vmatpush2.bf16.msra.mxu0 0
      %2499 = vmatprep.subr.bf16.mxu0 0
      %2500 = vmatpush2.bf16.msra.mxu0 0
      %2501 = vmatprep.subr.bf16.mxu0 0
      %2502 = vmatpush2.bf16.msra.mxu0 0
      %2503 = vmatprep.subr.bf16.mxu0 0
      %2504 = vmatpush2.bf16.msra.mxu0 0
      %2505 = vmatprep.subr.bf16.mxu0 0
      %2506 = vmatpush2.bf16.msra.mxu0 0
      %2507 = vmatprep.subr.bf16.mxu0 0
      %2508 = vmatpush2.bf16.msra.mxu0 0
      %2509 = vmatprep.subr.bf16.mxu0 0
      %2510 = vmatpush2.bf16.msra.mxu0 0
      %2511 = vmatprep.subr.bf16.mxu0 0
      %2512 = vmatpush2.bf16.msra.mxu0 0
      %2513 = vmatprep.mubr.bf16.mxu0 0
      %2514 = vmatmul.mubr.bf16.gmra.mxu0 %v2380
      %v2515 = vpop.f32.mrf.mxu0
      %v2516 = vadd.f32 0.0, %v2515
      %v2517 = vpop.f32.mrf.mxu0
      %v2518 = vadd.f32 0.0, %v2517
      %v2519 = vpop.f32.mrf.mxu0
      %v2520 = vadd.f32 0.0, %v2519
      %v2521 = vpop.f32.mrf.mxu0
      %v2522 = vadd.f32 0.0, %v2521
      %2523 = vmatprep.mubr.bf16.mxu0 0
      %2524 = vmatmul.mubr.bf16.gmra.mxu0 %v2381
      %v2525 = vpop.f32.mrf.mxu0
      %v2526 = vadd.f32 0.0, %v2525
      %v2527 = vpop.f32.mrf.mxu0
      %v2528 = vadd.f32 0.0, %v2527
      %v2529 = vpop.f32.mrf.mxu0
      %v2530 = vadd.f32 0.0, %v2529
      %v2531 = vpop.f32.mrf.mxu0
      %v2532 = vadd.f32 0.0, %v2531
      %2533 = vmatprep.mubr.bf16.mxu0 0
      %2534 = vmatmul.mubr.bf16.gmra.mxu0 %v2382
      %v2535 = vpop.f32.mrf.mxu0
      %v2536 = vadd.f32 0.0, %v2535
      %v2537 = vpop.f32.mrf.mxu0
      %v2538 = vadd.f32 0.0, %v2537
      %v2539 = vpop.f32.mrf.mxu0
      %v2540 = vadd.f32 0.0, %v2539
      %v2541 = vpop.f32.mrf.mxu0
      %v2542 = vadd.f32 0.0, %v2541
      %2543 = vmatprep.mubr.bf16.mxu0 0
      %2544 = vmatmul.mubr.bf16.gmra.mxu0 %v2383
      %v2545 = vpop.f32.mrf.mxu0
      %v2546 = vadd.f32 0.0, %v2545
      %v2547 = vpop.f32.mrf.mxu0
      %v2548 = vadd.f32 0.0, %v2547
      %v2549 = vpop.f32.mrf.mxu0
      %v2550 = vadd.f32 0.0, %v2549
      %v2551 = vpop.f32.mrf.mxu0
      %v2552 = vadd.f32 0.0, %v2551
      %2553 = vdwg.mxu0
      %v2554 = vadd.f32 %v2364, %v2516
      %v2555 = vadd.f32 %v2365, %v2518
      %v2556 = vadd.f32 %v2366, %v2520
      %v2557 = vadd.f32 %v2367, %v2522
      %v2558 = vadd.f32 %v2368, %v2526
      %v2559 = vadd.f32 %v2369, %v2528
      %v2560 = vadd.f32 %v2370, %v2530
      %v2561 = vadd.f32 %v2371, %v2532
      %v2562 = vadd.f32 %v2372, %v2536
      %v2563 = vadd.f32 %v2373, %v2538
      %v2564 = vadd.f32 %v2374, %v2540
      %v2565 = vadd.f32 %v2375, %v2542
      %v2566 = vadd.f32 %v2376, %v2546
      %v2567 = vadd.f32 %v2377, %v2548
      %v2568 = vadd.f32 %v2378, %v2550
      %v2569 = vadd.f32 %v2379, %v2552
      %v2570 = vpack.c.bf16 %v716, %v715
      %v2571 = vpack.c.bf16 %v718, %v717
      %v2572 = vpack.c.bf16 %v720, %v719
      %v2573 = vpack.c.bf16 %v722, %v721
      %s2574 = scalar_lea.vmem %s2, 1152
      %v2575 = vld [vmem:[%s2574] sm:$0xff]
      %v2576 = vld [vmem:[%s2574 + $0x8] sm:$0xff]
      %v2577 = vld [vmem:[%s2574 + $0x10] sm:$0xff]
      %v2578 = vld [vmem:[%s2574 + $0x18] sm:$0xff]
      %v2579 = vld [vmem:[%s2574 + $0x20] sm:$0xff]
      %v2580 = vld [vmem:[%s2574 + $0x28] sm:$0xff]
      %v2581 = vld [vmem:[%s2574 + $0x30] sm:$0xff]
      %v2582 = vld [vmem:[%s2574 + $0x38] sm:$0xff]
      %v2583 = vld [vmem:[%s2574 + $0x40] sm:$0xff]
      %v2584 = vld [vmem:[%s2574 + $0x48] sm:$0xff]
      %v2585 = vld [vmem:[%s2574 + $0x50] sm:$0xff]
      %v2586 = vld [vmem:[%s2574 + $0x58] sm:$0xff]
      %v2587 = vld [vmem:[%s2574 + $0x60] sm:$0xff]
      %v2588 = vld [vmem:[%s2574 + $0x68] sm:$0xff]
      %v2589 = vld [vmem:[%s2574 + $0x70] sm:$0xff]
      %v2590 = vld [vmem:[%s2574 + $0x78] sm:$0xff]
      %v2607 = vunpack.c.l.b16 %v2575
      %v2608 = vunpack.c.h.b16 %v2575
      %v2609 = vunpack.c.l.b16 %v2576
      %v2610 = vunpack.c.h.b16 %v2576
      %v2611 = vunpack.c.l.b16 %v2577
      %v2612 = vunpack.c.h.b16 %v2577
      %v2613 = vunpack.c.l.b16 %v2578
      %v2614 = vunpack.c.h.b16 %v2578
      %v2615 = vunpack.c.l.b16 %v2579
      %v2616 = vunpack.c.h.b16 %v2579
      %v2617 = vunpack.c.l.b16 %v2580
      %v2618 = vunpack.c.h.b16 %v2580
      %v2619 = vunpack.c.l.b16 %v2581
      %v2620 = vunpack.c.h.b16 %v2581
      %v2621 = vunpack.c.l.b16 %v2582
      %v2622 = vunpack.c.h.b16 %v2582
      %v2623 = vunpack.c.l.b16 %v2583
      %v2624 = vunpack.c.h.b16 %v2583
      %v2625 = vunpack.c.l.b16 %v2584
      %v2626 = vunpack.c.h.b16 %v2584
      %v2627 = vunpack.c.l.b16 %v2585
      %v2628 = vunpack.c.h.b16 %v2585
      %v2629 = vunpack.c.l.b16 %v2586
      %v2630 = vunpack.c.h.b16 %v2586
      %v2631 = vunpack.c.l.b16 %v2587
      %v2632 = vunpack.c.h.b16 %v2587
      %v2633 = vunpack.c.l.b16 %v2588
      %v2634 = vunpack.c.h.b16 %v2588
      %v2635 = vunpack.c.l.b16 %v2589
      %v2636 = vunpack.c.h.b16 %v2589
      %v2637 = vunpack.c.l.b16 %v2590
      %v2638 = vunpack.c.h.b16 %v2590
      %v2639 = vpack.c.b16 %v2609, %v2607
      %v2640 = vpack.c.b16 %v2610, %v2608
      %v2641 = vpack.c.b16 %v2613, %v2611
      %v2642 = vpack.c.b16 %v2614, %v2612
      %v2643 = vpack.c.b16 %v2617, %v2615
      %v2644 = vpack.c.b16 %v2618, %v2616
      %v2645 = vpack.c.b16 %v2621, %v2619
      %v2646 = vpack.c.b16 %v2622, %v2620
      %v2647 = vpack.c.b16 %v2625, %v2623
      %v2648 = vpack.c.b16 %v2626, %v2624
      %v2649 = vpack.c.b16 %v2629, %v2627
      %v2650 = vpack.c.b16 %v2630, %v2628
      %v2651 = vpack.c.b16 %v2633, %v2631
      %v2652 = vpack.c.b16 %v2634, %v2632
      %v2653 = vpack.c.b16 %v2637, %v2635
      %v2654 = vpack.c.b16 %v2638, %v2636
      %2671 = vmatprep.subr.bf16.mxu0 %v2654
      %2672 = vmatpush1.bf16.msra.mxu0 %v2653
      %2673 = vmatprep.subr.bf16.mxu0 %v2652
      %2674 = vmatpush1.bf16.msra.mxu0 %v2651
      %2675 = vmatprep.subr.bf16.mxu0 %v2650
      %2676 = vmatpush1.bf16.msra.mxu0 %v2649
      %2677 = vmatprep.subr.bf16.mxu0 %v2648
      %2678 = vmatpush1.bf16.msra.mxu0 %v2647
      %2679 = vmatprep.subr.bf16.mxu0 %v2646
      %2680 = vmatpush1.bf16.msra.mxu0 %v2645
      %2681 = vmatprep.subr.bf16.mxu0 %v2644
      %2682 = vmatpush1.bf16.msra.mxu0 %v2643
      %2683 = vmatprep.subr.bf16.mxu0 %v2642
      %2684 = vmatpush1.bf16.msra.mxu0 %v2641
      %2685 = vmatprep.subr.bf16.mxu0 %v2640
      %2686 = vmatpush1.bf16.msra.mxu0 %v2639
      %2687 = vmatprep.subr.bf16.mxu0 0
      %2688 = vmatpush2.bf16.msra.mxu0 0
      %2689 = vmatprep.subr.bf16.mxu0 0
      %2690 = vmatpush2.bf16.msra.mxu0 0
      %2691 = vmatprep.subr.bf16.mxu0 0
      %2692 = vmatpush2.bf16.msra.mxu0 0
      %2693 = vmatprep.subr.bf16.mxu0 0
      %2694 = vmatpush2.bf16.msra.mxu0 0
      %2695 = vmatprep.subr.bf16.mxu0 0
      %2696 = vmatpush2.bf16.msra.mxu0 0
      %2697 = vmatprep.subr.bf16.mxu0 0
      %2698 = vmatpush2.bf16.msra.mxu0 0
      %2699 = vmatprep.subr.bf16.mxu0 0
      %2700 = vmatpush2.bf16.msra.mxu0 0
      %2701 = vmatprep.subr.bf16.mxu0 0
      %2702 = vmatpush2.bf16.msra.mxu0 0
      %2703 = vmatprep.mubr.bf16.mxu0 0
      %2704 = vmatmul.mubr.bf16.gmra.mxu0 %v2570
      %v2705 = vpop.f32.mrf.mxu0
      %v2706 = vadd.f32 0.0, %v2705
      %v2707 = vpop.f32.mrf.mxu0
      %v2708 = vadd.f32 0.0, %v2707
      %v2709 = vpop.f32.mrf.mxu0
      %v2710 = vadd.f32 0.0, %v2709
      %v2711 = vpop.f32.mrf.mxu0
      %v2712 = vadd.f32 0.0, %v2711
      %2713 = vmatprep.mubr.bf16.mxu0 0
      %2714 = vmatmul.mubr.bf16.gmra.mxu0 %v2571
      %v2715 = vpop.f32.mrf.mxu0
      %v2716 = vadd.f32 0.0, %v2715
      %v2717 = vpop.f32.mrf.mxu0
      %v2718 = vadd.f32 0.0, %v2717
      %v2719 = vpop.f32.mrf.mxu0
      %v2720 = vadd.f32 0.0, %v2719
      %v2721 = vpop.f32.mrf.mxu0
      %v2722 = vadd.f32 0.0, %v2721
      %2723 = vmatprep.mubr.bf16.mxu0 0
      %2724 = vmatmul.mubr.bf16.gmra.mxu0 %v2572
      %v2725 = vpop.f32.mrf.mxu0
      %v2726 = vadd.f32 0.0, %v2725
      %v2727 = vpop.f32.mrf.mxu0
      %v2728 = vadd.f32 0.0, %v2727
      %v2729 = vpop.f32.mrf.mxu0
      %v2730 = vadd.f32 0.0, %v2729
      %v2731 = vpop.f32.mrf.mxu0
      %v2732 = vadd.f32 0.0, %v2731
      %2733 = vmatprep.mubr.bf16.mxu0 0
      %2734 = vmatmul.mubr.bf16.gmra.mxu0 %v2573
      %v2735 = vpop.f32.mrf.mxu0
      %v2736 = vadd.f32 0.0, %v2735
      %v2737 = vpop.f32.mrf.mxu0
      %v2738 = vadd.f32 0.0, %v2737
      %v2739 = vpop.f32.mrf.mxu0
      %v2740 = vadd.f32 0.0, %v2739
      %v2741 = vpop.f32.mrf.mxu0
      %v2742 = vadd.f32 0.0, %v2741
      %2743 = vdwg.mxu0
      %v2744 = vadd.f32 %v2554, %v2706
      %v2745 = vadd.f32 %v2555, %v2708
      %v2746 = vadd.f32 %v2556, %v2710
      %v2747 = vadd.f32 %v2557, %v2712
      %v2748 = vadd.f32 %v2558, %v2716
      %v2749 = vadd.f32 %v2559, %v2718
      %v2750 = vadd.f32 %v2560, %v2720
      %v2751 = vadd.f32 %v2561, %v2722
      %v2752 = vadd.f32 %v2562, %v2726
      %v2753 = vadd.f32 %v2563, %v2728
      %v2754 = vadd.f32 %v2564, %v2730
      %v2755 = vadd.f32 %v2565, %v2732
      %v2756 = vadd.f32 %v2566, %v2736
      %v2757 = vadd.f32 %v2567, %v2738
      %v2758 = vadd.f32 %v2568, %v2740
      %v2759 = vadd.f32 %v2569, %v2742
      %v2760 = vpack.c.bf16 %v713, %v713
      %s2761 = scalar_lea.vmem %s2, 1280
      %v2762 = vld [vmem:[%s2761] sm:$0xff]
      %v2763 = vld [vmem:[%s2761 + $0x8] sm:$0xff]
      %v2764 = vld [vmem:[%s2761 + $0x10] sm:$0xff]
      %v2765 = vld [vmem:[%s2761 + $0x18] sm:$0xff]
      %v2766 = vld [vmem:[%s2761 + $0x20] sm:$0xff]
      %v2767 = vld [vmem:[%s2761 + $0x28] sm:$0xff]
      %v2768 = vld [vmem:[%s2761 + $0x30] sm:$0xff]
      %v2769 = vld [vmem:[%s2761 + $0x38] sm:$0xff]
      %v2770 = vld [vmem:[%s2761 + $0x40] sm:$0xff]
      %v2771 = vld [vmem:[%s2761 + $0x48] sm:$0xff]
      %v2772 = vld [vmem:[%s2761 + $0x50] sm:$0xff]
      %v2773 = vld [vmem:[%s2761 + $0x58] sm:$0xff]
      %v2774 = vld [vmem:[%s2761 + $0x60] sm:$0xff]
      %v2775 = vld [vmem:[%s2761 + $0x68] sm:$0xff]
      %v2776 = vld [vmem:[%s2761 + $0x70] sm:$0xff]
      %v2777 = vld [vmem:[%s2761 + $0x78] sm:$0xff]
      %v2779 = vshrl.u32 %v2380, 16
      %v2781 = vshll.u32 %v2380, 16
      %v2783 = vrot.slane %v2781, 1
      %v2784 = vor.u32 %v2779, %v2783
      %v2786 = vshll.u32 %v2381, 16
      %v2788 = vrot.slane %v2786, 1
      %v2789 = vsel %vm1109, %v2784, %v2788
      %v2790 = vshrl.u32 %v2381, 16
      %v2792 = vor.u32 %v2790, %v2788
      %v2794 = vshll.u32 %v2382, 16
      %v2796 = vrot.slane %v2794, 1
      %v2797 = vsel %vm1109, %v2792, %v2796
      %v2798 = vshrl.u32 %v2382, 16
      %v2800 = vor.u32 %v2798, %v2796
      %v2802 = vshll.u32 %v2383, 16
      %v2804 = vrot.slane %v2802, 1
      %v2805 = vsel %vm1109, %v2800, %v2804
      %v2806 = vshrl.u32 %v2383, 16
      %v2808 = vor.u32 %v2806, %v2804
      %v2810 = vshll.u32 %v2760, 16
      %v2812 = vrot.slane %v2810, 1
      %v2813 = vsel %vm1109, %v2808, %v2812
      %v2834 = vunpack.c.l.b16 %v2762
      %v2835 = vunpack.c.h.b16 %v2762
      %v2836 = vunpack.c.l.b16 %v2763
      %v2837 = vunpack.c.h.b16 %v2763
      %v2838 = vunpack.c.l.b16 %v2764
      %v2839 = vunpack.c.h.b16 %v2764
      %v2840 = vunpack.c.l.b16 %v2765
      %v2841 = vunpack.c.h.b16 %v2765
      %v2842 = vunpack.c.l.b16 %v2766
      %v2843 = vunpack.c.h.b16 %v2766
      %v2844 = vunpack.c.l.b16 %v2767
      %v2845 = vunpack.c.h.b16 %v2767
      %v2846 = vunpack.c.l.b16 %v2768
      %v2847 = vunpack.c.h.b16 %v2768
      %v2848 = vunpack.c.l.b16 %v2769
      %v2849 = vunpack.c.h.b16 %v2769
      %v2850 = vunpack.c.l.b16 %v2770
      %v2851 = vunpack.c.h.b16 %v2770
      %v2852 = vunpack.c.l.b16 %v2771
      %v2853 = vunpack.c.h.b16 %v2771
      %v2854 = vunpack.c.l.b16 %v2772
      %v2855 = vunpack.c.h.b16 %v2772
      %v2856 = vunpack.c.l.b16 %v2773
      %v2857 = vunpack.c.h.b16 %v2773
      %v2858 = vunpack.c.l.b16 %v2774
      %v2859 = vunpack.c.h.b16 %v2774
      %v2860 = vunpack.c.l.b16 %v2775
      %v2861 = vunpack.c.h.b16 %v2775
      %v2862 = vunpack.c.l.b16 %v2776
      %v2863 = vunpack.c.h.b16 %v2776
      %v2864 = vunpack.c.l.b16 %v2777
      %v2865 = vunpack.c.h.b16 %v2777
      %v2866 = vpack.c.b16 %v2836, %v2834
      %v2867 = vpack.c.b16 %v2837, %v2835
      %v2868 = vpack.c.b16 %v2840, %v2838
      %v2869 = vpack.c.b16 %v2841, %v2839
      %v2870 = vpack.c.b16 %v2844, %v2842
      %v2871 = vpack.c.b16 %v2845, %v2843
      %v2872 = vpack.c.b16 %v2848, %v2846
      %v2873 = vpack.c.b16 %v2849, %v2847
      %v2874 = vpack.c.b16 %v2852, %v2850
      %v2875 = vpack.c.b16 %v2853, %v2851
      %v2876 = vpack.c.b16 %v2856, %v2854
      %v2877 = vpack.c.b16 %v2857, %v2855
      %v2878 = vpack.c.b16 %v2860, %v2858
      %v2879 = vpack.c.b16 %v2861, %v2859
      %v2880 = vpack.c.b16 %v2864, %v2862
      %v2881 = vpack.c.b16 %v2865, %v2863
      %2898 = vmatprep.subr.bf16.mxu0 %v2881
      %2899 = vmatpush1.bf16.msra.mxu0 %v2880
      %2900 = vmatprep.subr.bf16.mxu0 %v2879
      %2901 = vmatpush1.bf16.msra.mxu0 %v2878
      %2902 = vmatprep.subr.bf16.mxu0 %v2877
      %2903 = vmatpush1.bf16.msra.mxu0 %v2876
      %2904 = vmatprep.subr.bf16.mxu0 %v2875
      %2905 = vmatpush1.bf16.msra.mxu0 %v2874
      %2906 = vmatprep.subr.bf16.mxu0 %v2873
      %2907 = vmatpush1.bf16.msra.mxu0 %v2872
      %2908 = vmatprep.subr.bf16.mxu0 %v2871
      %2909 = vmatpush1.bf16.msra.mxu0 %v2870
      %2910 = vmatprep.subr.bf16.mxu0 %v2869
      %2911 = vmatpush1.bf16.msra.mxu0 %v2868
      %2912 = vmatprep.subr.bf16.mxu0 %v2867
      %2913 = vmatpush1.bf16.msra.mxu0 %v2866
      %2914 = vmatprep.subr.bf16.mxu0 0
      %2915 = vmatpush2.bf16.msra.mxu0 0
      %2916 = vmatprep.subr.bf16.mxu0 0
      %2917 = vmatpush2.bf16.msra.mxu0 0
      %2918 = vmatprep.subr.bf16.mxu0 0
      %2919 = vmatpush2.bf16.msra.mxu0 0
      %2920 = vmatprep.subr.bf16.mxu0 0
      %2921 = vmatpush2.bf16.msra.mxu0 0
      %2922 = vmatprep.subr.bf16.mxu0 0
      %2923 = vmatpush2.bf16.msra.mxu0 0
      %2924 = vmatprep.subr.bf16.mxu0 0
      %2925 = vmatpush2.bf16.msra.mxu0 0
      %2926 = vmatprep.subr.bf16.mxu0 0
      %2927 = vmatpush2.bf16.msra.mxu0 0
      %2928 = vmatprep.subr.bf16.mxu0 0
      %2929 = vmatpush2.bf16.msra.mxu0 0
      %2930 = vmatprep.mubr.bf16.mxu0 0
      %2931 = vmatmul.mubr.bf16.gmra.mxu0 %v2789
      %v2932 = vpop.f32.mrf.mxu0
      %v2933 = vadd.f32 0.0, %v2932
      %v2934 = vpop.f32.mrf.mxu0
      %v2935 = vadd.f32 0.0, %v2934
      %v2936 = vpop.f32.mrf.mxu0
      %v2937 = vadd.f32 0.0, %v2936
      %v2938 = vpop.f32.mrf.mxu0
      %v2939 = vadd.f32 0.0, %v2938
      %2940 = vmatprep.mubr.bf16.mxu0 0
      %2941 = vmatmul.mubr.bf16.gmra.mxu0 %v2797
      %v2942 = vpop.f32.mrf.mxu0
      %v2943 = vadd.f32 0.0, %v2942
      %v2944 = vpop.f32.mrf.mxu0
      %v2945 = vadd.f32 0.0, %v2944
      %v2946 = vpop.f32.mrf.mxu0
      %v2947 = vadd.f32 0.0, %v2946
      %v2948 = vpop.f32.mrf.mxu0
      %v2949 = vadd.f32 0.0, %v2948
      %2950 = vmatprep.mubr.bf16.mxu0 0
      %2951 = vmatmul.mubr.bf16.gmra.mxu0 %v2805
      %v2952 = vpop.f32.mrf.mxu0
      %v2953 = vadd.f32 0.0, %v2952
      %v2954 = vpop.f32.mrf.mxu0
      %v2955 = vadd.f32 0.0, %v2954
      %v2956 = vpop.f32.mrf.mxu0
      %v2957 = vadd.f32 0.0, %v2956
      %v2958 = vpop.f32.mrf.mxu0
      %v2959 = vadd.f32 0.0, %v2958
      %2960 = vmatprep.mubr.bf16.mxu0 0
      %2961 = vmatmul.mubr.bf16.gmra.mxu0 %v2813
      %v2962 = vpop.f32.mrf.mxu0
      %v2963 = vadd.f32 0.0, %v2962
      %v2964 = vpop.f32.mrf.mxu0
      %v2965 = vadd.f32 0.0, %v2964
      %v2966 = vpop.f32.mrf.mxu0
      %v2967 = vadd.f32 0.0, %v2966
      %v2968 = vpop.f32.mrf.mxu0
      %v2969 = vadd.f32 0.0, %v2968
      %2970 = vdwg.mxu0
      %v2971 = vadd.f32 %v2744, %v2933
      %v2972 = vadd.f32 %v2745, %v2935
      %v2973 = vadd.f32 %v2746, %v2937
      %v2974 = vadd.f32 %v2747, %v2939
      %v2975 = vadd.f32 %v2748, %v2943
      %v2976 = vadd.f32 %v2749, %v2945
      %v2977 = vadd.f32 %v2750, %v2947
      %v2978 = vadd.f32 %v2751, %v2949
      %v2979 = vadd.f32 %v2752, %v2953
      %v2980 = vadd.f32 %v2753, %v2955
      %v2981 = vadd.f32 %v2754, %v2957
      %v2982 = vadd.f32 %v2755, %v2959
      %v2983 = vadd.f32 %v2756, %v2963
      %v2984 = vadd.f32 %v2757, %v2965
      %v2985 = vadd.f32 %v2758, %v2967
      %v2986 = vadd.f32 %v2759, %v2969
      %v2987 = vpack.c.bf16 %v723, %v723
      %s2988 = scalar_lea.vmem %s2, 1408
      %v2989 = vld [vmem:[%s2988] sm:$0xff]
      %v2990 = vld [vmem:[%s2988 + $0x8] sm:$0xff]
      %v2991 = vld [vmem:[%s2988 + $0x10] sm:$0xff]
      %v2992 = vld [vmem:[%s2988 + $0x18] sm:$0xff]
      %v2993 = vld [vmem:[%s2988 + $0x20] sm:$0xff]
      %v2994 = vld [vmem:[%s2988 + $0x28] sm:$0xff]
      %v2995 = vld [vmem:[%s2988 + $0x30] sm:$0xff]
      %v2996 = vld [vmem:[%s2988 + $0x38] sm:$0xff]
      %v2997 = vld [vmem:[%s2988 + $0x40] sm:$0xff]
      %v2998 = vld [vmem:[%s2988 + $0x48] sm:$0xff]
      %v2999 = vld [vmem:[%s2988 + $0x50] sm:$0xff]
      %v3000 = vld [vmem:[%s2988 + $0x58] sm:$0xff]
      %v3001 = vld [vmem:[%s2988 + $0x60] sm:$0xff]
      %v3002 = vld [vmem:[%s2988 + $0x68] sm:$0xff]
      %v3003 = vld [vmem:[%s2988 + $0x70] sm:$0xff]
      %v3004 = vld [vmem:[%s2988 + $0x78] sm:$0xff]
      %v3006 = vshrl.u32 %v2570, 16
      %v3008 = vshll.u32 %v2570, 16
      %v3010 = vrot.slane %v3008, 1
      %v3011 = vor.u32 %v3006, %v3010
      %v3013 = vshll.u32 %v2571, 16
      %v3015 = vrot.slane %v3013, 1
      %v3016 = vsel %vm1109, %v3011, %v3015
      %v3017 = vshrl.u32 %v2571, 16
      %v3019 = vor.u32 %v3017, %v3015
      %v3021 = vshll.u32 %v2572, 16
      %v3023 = vrot.slane %v3021, 1
      %v3024 = vsel %vm1109, %v3019, %v3023
      %v3025 = vshrl.u32 %v2572, 16
      %v3027 = vor.u32 %v3025, %v3023
      %v3029 = vshll.u32 %v2573, 16
      %v3031 = vrot.slane %v3029, 1
      %v3032 = vsel %vm1109, %v3027, %v3031
      %v3033 = vshrl.u32 %v2573, 16
      %v3035 = vor.u32 %v3033, %v3031
      %v3037 = vshll.u32 %v2987, 16
      %v3039 = vrot.slane %v3037, 1
      %v3040 = vsel %vm1109, %v3035, %v3039
      %v3061 = vunpack.c.l.b16 %v2989
      %v3062 = vunpack.c.h.b16 %v2989
      %v3063 = vunpack.c.l.b16 %v2990
      %v3064 = vunpack.c.h.b16 %v2990
      %v3065 = vunpack.c.l.b16 %v2991
      %v3066 = vunpack.c.h.b16 %v2991
      %v3067 = vunpack.c.l.b16 %v2992
      %v3068 = vunpack.c.h.b16 %v2992
      %v3069 = vunpack.c.l.b16 %v2993
      %v3070 = vunpack.c.h.b16 %v2993
      %v3071 = vunpack.c.l.b16 %v2994
      %v3072 = vunpack.c.h.b16 %v2994
      %v3073 = vunpack.c.l.b16 %v2995
      %v3074 = vunpack.c.h.b16 %v2995
      %v3075 = vunpack.c.l.b16 %v2996
      %v3076 = vunpack.c.h.b16 %v2996
      %v3077 = vunpack.c.l.b16 %v2997
      %v3078 = vunpack.c.h.b16 %v2997
      %v3079 = vunpack.c.l.b16 %v2998
      %v3080 = vunpack.c.h.b16 %v2998
      %v3081 = vunpack.c.l.b16 %v2999
      %v3082 = vunpack.c.h.b16 %v2999
      %v3083 = vunpack.c.l.b16 %v3000
      %v3084 = vunpack.c.h.b16 %v3000
      %v3085 = vunpack.c.l.b16 %v3001
      %v3086 = vunpack.c.h.b16 %v3001
      %v3087 = vunpack.c.l.b16 %v3002
      %v3088 = vunpack.c.h.b16 %v3002
      %v3089 = vunpack.c.l.b16 %v3003
      %v3090 = vunpack.c.h.b16 %v3003
      %v3091 = vunpack.c.l.b16 %v3004
      %v3092 = vunpack.c.h.b16 %v3004
      %v3093 = vpack.c.b16 %v3063, %v3061
      %v3094 = vpack.c.b16 %v3064, %v3062
      %v3095 = vpack.c.b16 %v3067, %v3065
      %v3096 = vpack.c.b16 %v3068, %v3066
      %v3097 = vpack.c.b16 %v3071, %v3069
      %v3098 = vpack.c.b16 %v3072, %v3070
      %v3099 = vpack.c.b16 %v3075, %v3073
      %v3100 = vpack.c.b16 %v3076, %v3074
      %v3101 = vpack.c.b16 %v3079, %v3077
      %v3102 = vpack.c.b16 %v3080, %v3078
      %v3103 = vpack.c.b16 %v3083, %v3081
      %v3104 = vpack.c.b16 %v3084, %v3082
      %v3105 = vpack.c.b16 %v3087, %v3085
      %v3106 = vpack.c.b16 %v3088, %v3086
      %v3107 = vpack.c.b16 %v3091, %v3089
      %v3108 = vpack.c.b16 %v3092, %v3090
      %3125 = vmatprep.subr.bf16.mxu0 %v3108
      %3126 = vmatpush1.bf16.msra.mxu0 %v3107
      %3127 = vmatprep.subr.bf16.mxu0 %v3106
      %3128 = vmatpush1.bf16.msra.mxu0 %v3105
      %3129 = vmatprep.subr.bf16.mxu0 %v3104
      %3130 = vmatpush1.bf16.msra.mxu0 %v3103
      %3131 = vmatprep.subr.bf16.mxu0 %v3102
      %3132 = vmatpush1.bf16.msra.mxu0 %v3101
      %3133 = vmatprep.subr.bf16.mxu0 %v3100
      %3134 = vmatpush1.bf16.msra.mxu0 %v3099
      %3135 = vmatprep.subr.bf16.mxu0 %v3098
      %3136 = vmatpush1.bf16.msra.mxu0 %v3097
      %3137 = vmatprep.subr.bf16.mxu0 %v3096
      %3138 = vmatpush1.bf16.msra.mxu0 %v3095
      %3139 = vmatprep.subr.bf16.mxu0 %v3094
      %3140 = vmatpush1.bf16.msra.mxu0 %v3093
      %3141 = vmatprep.subr.bf16.mxu0 0
      %3142 = vmatpush2.bf16.msra.mxu0 0
      %3143 = vmatprep.subr.bf16.mxu0 0
      %3144 = vmatpush2.bf16.msra.mxu0 0
      %3145 = vmatprep.subr.bf16.mxu0 0
      %3146 = vmatpush2.bf16.msra.mxu0 0
      %3147 = vmatprep.subr.bf16.mxu0 0
      %3148 = vmatpush2.bf16.msra.mxu0 0
      %3149 = vmatprep.subr.bf16.mxu0 0
      %3150 = vmatpush2.bf16.msra.mxu0 0
      %3151 = vmatprep.subr.bf16.mxu0 0
      %3152 = vmatpush2.bf16.msra.mxu0 0
      %3153 = vmatprep.subr.bf16.mxu0 0
      %3154 = vmatpush2.bf16.msra.mxu0 0
      %3155 = vmatprep.subr.bf16.mxu0 0
      %3156 = vmatpush2.bf16.msra.mxu0 0
      %3157 = vmatprep.mubr.bf16.mxu0 0
      %3158 = vmatmul.mubr.bf16.gmra.mxu0 %v3016
      %v3159 = vpop.f32.mrf.mxu0
      %v3160 = vadd.f32 0.0, %v3159
      %v3161 = vpop.f32.mrf.mxu0
      %v3162 = vadd.f32 0.0, %v3161
      %v3163 = vpop.f32.mrf.mxu0
      %v3164 = vadd.f32 0.0, %v3163
      %v3165 = vpop.f32.mrf.mxu0
      %v3166 = vadd.f32 0.0, %v3165
      %3167 = vmatprep.mubr.bf16.mxu0 0
      %3168 = vmatmul.mubr.bf16.gmra.mxu0 %v3024
      %v3169 = vpop.f32.mrf.mxu0
      %v3170 = vadd.f32 0.0, %v3169
      %v3171 = vpop.f32.mrf.mxu0
      %v3172 = vadd.f32 0.0, %v3171
      %v3173 = vpop.f32.mrf.mxu0
      %v3174 = vadd.f32 0.0, %v3173
      %v3175 = vpop.f32.mrf.mxu0
      %v3176 = vadd.f32 0.0, %v3175
      %3177 = vmatprep.mubr.bf16.mxu0 0
      %3178 = vmatmul.mubr.bf16.gmra.mxu0 %v3032
      %v3179 = vpop.f32.mrf.mxu0
      %v3180 = vadd.f32 0.0, %v3179
      %v3181 = vpop.f32.mrf.mxu0
      %v3182 = vadd.f32 0.0, %v3181
      %v3183 = vpop.f32.mrf.mxu0
      %v3184 = vadd.f32 0.0, %v3183
      %v3185 = vpop.f32.mrf.mxu0
      %v3186 = vadd.f32 0.0, %v3185
      %3187 = vmatprep.mubr.bf16.mxu0 0
      %3188 = vmatmul.mubr.bf16.gmra.mxu0 %v3040
      %v3189 = vpop.f32.mrf.mxu0
      %v3190 = vadd.f32 0.0, %v3189
      %v3191 = vpop.f32.mrf.mxu0
      %v3192 = vadd.f32 0.0, %v3191
      %v3193 = vpop.f32.mrf.mxu0
      %v3194 = vadd.f32 0.0, %v3193
      %v3195 = vpop.f32.mrf.mxu0
      %v3196 = vadd.f32 0.0, %v3195
      %3197 = vdwg.mxu0
      %v3198 = vadd.f32 %v2971, %v3160
      %v3199 = vadd.f32 %v2972, %v3162
      %v3200 = vadd.f32 %v2973, %v3164
      %v3201 = vadd.f32 %v2974, %v3166
      %v3202 = vadd.f32 %v2975, %v3170
      %v3203 = vadd.f32 %v2976, %v3172
      %v3204 = vadd.f32 %v2977, %v3174
      %v3205 = vadd.f32 %v2978, %v3176
      %v3206 = vadd.f32 %v2979, %v3180
      %v3207 = vadd.f32 %v2980, %v3182
      %v3208 = vadd.f32 %v2981, %v3184
      %v3209 = vadd.f32 %v2982, %v3186
      %v3210 = vadd.f32 %v2983, %v3190
      %v3211 = vadd.f32 %v2984, %v3192
      %v3212 = vadd.f32 %v2985, %v3194
      %v3213 = vadd.f32 %v2986, %v3196
      %v3214 = vpack.c.bf16 %v726, %v725
      %v3215 = vpack.c.bf16 %v728, %v727
      %v3216 = vpack.c.bf16 %v730, %v729
      %v3217 = vpack.c.bf16 %v732, %v731
      %s3218 = scalar_lea.vmem %s2, 1536
      %v3219 = vld [vmem:[%s3218] sm:$0xff]
      %v3220 = vld [vmem:[%s3218 + $0x8] sm:$0xff]
      %v3221 = vld [vmem:[%s3218 + $0x10] sm:$0xff]
      %v3222 = vld [vmem:[%s3218 + $0x18] sm:$0xff]
      %v3223 = vld [vmem:[%s3218 + $0x20] sm:$0xff]
      %v3224 = vld [vmem:[%s3218 + $0x28] sm:$0xff]
      %v3225 = vld [vmem:[%s3218 + $0x30] sm:$0xff]
      %v3226 = vld [vmem:[%s3218 + $0x38] sm:$0xff]
      %v3227 = vld [vmem:[%s3218 + $0x40] sm:$0xff]
      %v3228 = vld [vmem:[%s3218 + $0x48] sm:$0xff]
      %v3229 = vld [vmem:[%s3218 + $0x50] sm:$0xff]
      %v3230 = vld [vmem:[%s3218 + $0x58] sm:$0xff]
      %v3231 = vld [vmem:[%s3218 + $0x60] sm:$0xff]
      %v3232 = vld [vmem:[%s3218 + $0x68] sm:$0xff]
      %v3233 = vld [vmem:[%s3218 + $0x70] sm:$0xff]
      %v3234 = vld [vmem:[%s3218 + $0x78] sm:$0xff]
      %v3251 = vunpack.c.l.b16 %v3219
      %v3252 = vunpack.c.h.b16 %v3219
      %v3253 = vunpack.c.l.b16 %v3220
      %v3254 = vunpack.c.h.b16 %v3220
      %v3255 = vunpack.c.l.b16 %v3221
      %v3256 = vunpack.c.h.b16 %v3221
      %v3257 = vunpack.c.l.b16 %v3222
      %v3258 = vunpack.c.h.b16 %v3222
      %v3259 = vunpack.c.l.b16 %v3223
      %v3260 = vunpack.c.h.b16 %v3223
      %v3261 = vunpack.c.l.b16 %v3224
      %v3262 = vunpack.c.h.b16 %v3224
      %v3263 = vunpack.c.l.b16 %v3225
      %v3264 = vunpack.c.h.b16 %v3225
      %v3265 = vunpack.c.l.b16 %v3226
      %v3266 = vunpack.c.h.b16 %v3226
      %v3267 = vunpack.c.l.b16 %v3227
      %v3268 = vunpack.c.h.b16 %v3227
      %v3269 = vunpack.c.l.b16 %v3228
      %v3270 = vunpack.c.h.b16 %v3228
      %v3271 = vunpack.c.l.b16 %v3229
      %v3272 = vunpack.c.h.b16 %v3229
      %v3273 = vunpack.c.l.b16 %v3230
      %v3274 = vunpack.c.h.b16 %v3230
      %v3275 = vunpack.c.l.b16 %v3231
      %v3276 = vunpack.c.h.b16 %v3231
      %v3277 = vunpack.c.l.b16 %v3232
      %v3278 = vunpack.c.h.b16 %v3232
      %v3279 = vunpack.c.l.b16 %v3233
      %v3280 = vunpack.c.h.b16 %v3233
      %v3281 = vunpack.c.l.b16 %v3234
      %v3282 = vunpack.c.h.b16 %v3234
      %v3283 = vpack.c.b16 %v3253, %v3251
      %v3284 = vpack.c.b16 %v3254, %v3252
      %v3285 = vpack.c.b16 %v3257, %v3255
      %v3286 = vpack.c.b16 %v3258, %v3256
      %v3287 = vpack.c.b16 %v3261, %v3259
      %v3288 = vpack.c.b16 %v3262, %v3260
      %v3289 = vpack.c.b16 %v3265, %v3263
      %v3290 = vpack.c.b16 %v3266, %v3264
      %v3291 = vpack.c.b16 %v3269, %v3267
      %v3292 = vpack.c.b16 %v3270, %v3268
      %v3293 = vpack.c.b16 %v3273, %v3271
      %v3294 = vpack.c.b16 %v3274, %v3272
      %v3295 = vpack.c.b16 %v3277, %v3275
      %v3296 = vpack.c.b16 %v3278, %v3276
      %v3297 = vpack.c.b16 %v3281, %v3279
      %v3298 = vpack.c.b16 %v3282, %v3280
      %3315 = vmatprep.subr.bf16.mxu0 %v3298
      %3316 = vmatpush1.bf16.msra.mxu0 %v3297
      %3317 = vmatprep.subr.bf16.mxu0 %v3296
      %3318 = vmatpush1.bf16.msra.mxu0 %v3295
      %3319 = vmatprep.subr.bf16.mxu0 %v3294
      %3320 = vmatpush1.bf16.msra.mxu0 %v3293
      %3321 = vmatprep.subr.bf16.mxu0 %v3292
      %3322 = vmatpush1.bf16.msra.mxu0 %v3291
      %3323 = vmatprep.subr.bf16.mxu0 %v3290
      %3324 = vmatpush1.bf16.msra.mxu0 %v3289
      %3325 = vmatprep.subr.bf16.mxu0 %v3288
      %3326 = vmatpush1.bf16.msra.mxu0 %v3287
      %3327 = vmatprep.subr.bf16.mxu0 %v3286
      %3328 = vmatpush1.bf16.msra.mxu0 %v3285
      %3329 = vmatprep.subr.bf16.mxu0 %v3284
      %3330 = vmatpush1.bf16.msra.mxu0 %v3283
      %3331 = vmatprep.subr.bf16.mxu0 0
      %3332 = vmatpush2.bf16.msra.mxu0 0
      %3333 = vmatprep.subr.bf16.mxu0 0
      %3334 = vmatpush2.bf16.msra.mxu0 0
      %3335 = vmatprep.subr.bf16.mxu0 0
      %3336 = vmatpush2.bf16.msra.mxu0 0
      %3337 = vmatprep.subr.bf16.mxu0 0
      %3338 = vmatpush2.bf16.msra.mxu0 0
      %3339 = vmatprep.subr.bf16.mxu0 0
      %3340 = vmatpush2.bf16.msra.mxu0 0
      %3341 = vmatprep.subr.bf16.mxu0 0
      %3342 = vmatpush2.bf16.msra.mxu0 0
      %3343 = vmatprep.subr.bf16.mxu0 0
      %3344 = vmatpush2.bf16.msra.mxu0 0
      %3345 = vmatprep.subr.bf16.mxu0 0
      %3346 = vmatpush2.bf16.msra.mxu0 0
      %3347 = vmatprep.mubr.bf16.mxu0 0
      %3348 = vmatmul.mubr.bf16.gmra.mxu0 %v3214
      %v3349 = vpop.f32.mrf.mxu0
      %v3350 = vadd.f32 0.0, %v3349
      %v3351 = vpop.f32.mrf.mxu0
      %v3352 = vadd.f32 0.0, %v3351
      %v3353 = vpop.f32.mrf.mxu0
      %v3354 = vadd.f32 0.0, %v3353
      %v3355 = vpop.f32.mrf.mxu0
      %v3356 = vadd.f32 0.0, %v3355
      %3357 = vmatprep.mubr.bf16.mxu0 0
      %3358 = vmatmul.mubr.bf16.gmra.mxu0 %v3215
      %v3359 = vpop.f32.mrf.mxu0
      %v3360 = vadd.f32 0.0, %v3359
      %v3361 = vpop.f32.mrf.mxu0
      %v3362 = vadd.f32 0.0, %v3361
      %v3363 = vpop.f32.mrf.mxu0
      %v3364 = vadd.f32 0.0, %v3363
      %v3365 = vpop.f32.mrf.mxu0
      %v3366 = vadd.f32 0.0, %v3365
      %3367 = vmatprep.mubr.bf16.mxu0 0
      %3368 = vmatmul.mubr.bf16.gmra.mxu0 %v3216
      %v3369 = vpop.f32.mrf.mxu0
      %v3370 = vadd.f32 0.0, %v3369
      %v3371 = vpop.f32.mrf.mxu0
      %v3372 = vadd.f32 0.0, %v3371
      %v3373 = vpop.f32.mrf.mxu0
      %v3374 = vadd.f32 0.0, %v3373
      %v3375 = vpop.f32.mrf.mxu0
      %v3376 = vadd.f32 0.0, %v3375
      %3377 = vmatprep.mubr.bf16.mxu0 0
      %3378 = vmatmul.mubr.bf16.gmra.mxu0 %v3217
      %v3379 = vpop.f32.mrf.mxu0
      %v3380 = vadd.f32 0.0, %v3379
      %v3381 = vpop.f32.mrf.mxu0
      %v3382 = vadd.f32 0.0, %v3381
      %v3383 = vpop.f32.mrf.mxu0
      %v3384 = vadd.f32 0.0, %v3383
      %v3385 = vpop.f32.mrf.mxu0
      %v3386 = vadd.f32 0.0, %v3385
      %3387 = vdwg.mxu0
      %v3388 = vadd.f32 %v3198, %v3350
      %v3389 = vadd.f32 %v3199, %v3352
      %v3390 = vadd.f32 %v3200, %v3354
      %v3391 = vadd.f32 %v3201, %v3356
      %v3392 = vadd.f32 %v3202, %v3360
      %v3393 = vadd.f32 %v3203, %v3362
      %v3394 = vadd.f32 %v3204, %v3364
      %v3395 = vadd.f32 %v3205, %v3366
      %v3396 = vadd.f32 %v3206, %v3370
      %v3397 = vadd.f32 %v3207, %v3372
      %v3398 = vadd.f32 %v3208, %v3374
      %v3399 = vadd.f32 %v3209, %v3376
      %v3400 = vadd.f32 %v3210, %v3380
      %v3401 = vadd.f32 %v3211, %v3382
      %v3402 = vadd.f32 %v3212, %v3384
      %v3403 = vadd.f32 %v3213, %v3386
      %v3404 = vpack.c.bf16 %v736, %v735
      %v3405 = vpack.c.bf16 %v738, %v737
      %v3406 = vpack.c.bf16 %v740, %v739
      %v3407 = vpack.c.bf16 %v742, %v741
      %s3408 = scalar_lea.vmem %s2, 1664
      %v3409 = vld [vmem:[%s3408] sm:$0xff]
      %v3410 = vld [vmem:[%s3408 + $0x8] sm:$0xff]
      %v3411 = vld [vmem:[%s3408 + $0x10] sm:$0xff]
      %v3412 = vld [vmem:[%s3408 + $0x18] sm:$0xff]
      %v3413 = vld [vmem:[%s3408 + $0x20] sm:$0xff]
      %v3414 = vld [vmem:[%s3408 + $0x28] sm:$0xff]
      %v3415 = vld [vmem:[%s3408 + $0x30] sm:$0xff]
      %v3416 = vld [vmem:[%s3408 + $0x38] sm:$0xff]
      %v3417 = vld [vmem:[%s3408 + $0x40] sm:$0xff]
      %v3418 = vld [vmem:[%s3408 + $0x48] sm:$0xff]
      %v3419 = vld [vmem:[%s3408 + $0x50] sm:$0xff]
      %v3420 = vld [vmem:[%s3408 + $0x58] sm:$0xff]
      %v3421 = vld [vmem:[%s3408 + $0x60] sm:$0xff]
      %v3422 = vld [vmem:[%s3408 + $0x68] sm:$0xff]
      %v3423 = vld [vmem:[%s3408 + $0x70] sm:$0xff]
      %v3424 = vld [vmem:[%s3408 + $0x78] sm:$0xff]
      %v3441 = vunpack.c.l.b16 %v3409
      %v3442 = vunpack.c.h.b16 %v3409
      %v3443 = vunpack.c.l.b16 %v3410
      %v3444 = vunpack.c.h.b16 %v3410
      %v3445 = vunpack.c.l.b16 %v3411
      %v3446 = vunpack.c.h.b16 %v3411
      %v3447 = vunpack.c.l.b16 %v3412
      %v3448 = vunpack.c.h.b16 %v3412
      %v3449 = vunpack.c.l.b16 %v3413
      %v3450 = vunpack.c.h.b16 %v3413
      %v3451 = vunpack.c.l.b16 %v3414
      %v3452 = vunpack.c.h.b16 %v3414
      %v3453 = vunpack.c.l.b16 %v3415
      %v3454 = vunpack.c.h.b16 %v3415
      %v3455 = vunpack.c.l.b16 %v3416
      %v3456 = vunpack.c.h.b16 %v3416
      %v3457 = vunpack.c.l.b16 %v3417
      %v3458 = vunpack.c.h.b16 %v3417
      %v3459 = vunpack.c.l.b16 %v3418
      %v3460 = vunpack.c.h.b16 %v3418
      %v3461 = vunpack.c.l.b16 %v3419
      %v3462 = vunpack.c.h.b16 %v3419
      %v3463 = vunpack.c.l.b16 %v3420
      %v3464 = vunpack.c.h.b16 %v3420
      %v3465 = vunpack.c.l.b16 %v3421
      %v3466 = vunpack.c.h.b16 %v3421
      %v3467 = vunpack.c.l.b16 %v3422
      %v3468 = vunpack.c.h.b16 %v3422
      %v3469 = vunpack.c.l.b16 %v3423
      %v3470 = vunpack.c.h.b16 %v3423
      %v3471 = vunpack.c.l.b16 %v3424
      %v3472 = vunpack.c.h.b16 %v3424
      %v3473 = vpack.c.b16 %v3443, %v3441
      %v3474 = vpack.c.b16 %v3444, %v3442
      %v3475 = vpack.c.b16 %v3447, %v3445
      %v3476 = vpack.c.b16 %v3448, %v3446
      %v3477 = vpack.c.b16 %v3451, %v3449
      %v3478 = vpack.c.b16 %v3452, %v3450
      %v3479 = vpack.c.b16 %v3455, %v3453
      %v3480 = vpack.c.b16 %v3456, %v3454
      %v3481 = vpack.c.b16 %v3459, %v3457
      %v3482 = vpack.c.b16 %v3460, %v3458
      %v3483 = vpack.c.b16 %v3463, %v3461
      %v3484 = vpack.c.b16 %v3464, %v3462
      %v3485 = vpack.c.b16 %v3467, %v3465
      %v3486 = vpack.c.b16 %v3468, %v3466
      %v3487 = vpack.c.b16 %v3471, %v3469
      %v3488 = vpack.c.b16 %v3472, %v3470
      %3505 = vmatprep.subr.bf16.mxu0 %v3488
      %3506 = vmatpush1.bf16.msra.mxu0 %v3487
      %3507 = vmatprep.subr.bf16.mxu0 %v3486
      %3508 = vmatpush1.bf16.msra.mxu0 %v3485
      %3509 = vmatprep.subr.bf16.mxu0 %v3484
      %3510 = vmatpush1.bf16.msra.mxu0 %v3483
      %3511 = vmatprep.subr.bf16.mxu0 %v3482
      %3512 = vmatpush1.bf16.msra.mxu0 %v3481
      %3513 = vmatprep.subr.bf16.mxu0 %v3480
      %3514 = vmatpush1.bf16.msra.mxu0 %v3479
      %3515 = vmatprep.subr.bf16.mxu0 %v3478
      %3516 = vmatpush1.bf16.msra.mxu0 %v3477
      %3517 = vmatprep.subr.bf16.mxu0 %v3476
      %3518 = vmatpush1.bf16.msra.mxu0 %v3475
      %3519 = vmatprep.subr.bf16.mxu0 %v3474
      %3520 = vmatpush1.bf16.msra.mxu0 %v3473
      %3521 = vmatprep.subr.bf16.mxu0 0
      %3522 = vmatpush2.bf16.msra.mxu0 0
      %3523 = vmatprep.subr.bf16.mxu0 0
      %3524 = vmatpush2.bf16.msra.mxu0 0
      %3525 = vmatprep.subr.bf16.mxu0 0
      %3526 = vmatpush2.bf16.msra.mxu0 0
      %3527 = vmatprep.subr.bf16.mxu0 0
      %3528 = vmatpush2.bf16.msra.mxu0 0
      %3529 = vmatprep.subr.bf16.mxu0 0
      %3530 = vmatpush2.bf16.msra.mxu0 0
      %3531 = vmatprep.subr.bf16.mxu0 0
      %3532 = vmatpush2.bf16.msra.mxu0 0
      %3533 = vmatprep.subr.bf16.mxu0 0
      %3534 = vmatpush2.bf16.msra.mxu0 0
      %3535 = vmatprep.subr.bf16.mxu0 0
      %3536 = vmatpush2.bf16.msra.mxu0 0
      %3537 = vmatprep.mubr.bf16.mxu0 0
      %3538 = vmatmul.mubr.bf16.gmra.mxu0 %v3404
      %v3539 = vpop.f32.mrf.mxu0
      %v3540 = vadd.f32 0.0, %v3539
      %v3541 = vpop.f32.mrf.mxu0
      %v3542 = vadd.f32 0.0, %v3541
      %v3543 = vpop.f32.mrf.mxu0
      %v3544 = vadd.f32 0.0, %v3543
      %v3545 = vpop.f32.mrf.mxu0
      %v3546 = vadd.f32 0.0, %v3545
      %3547 = vmatprep.mubr.bf16.mxu0 0
      %3548 = vmatmul.mubr.bf16.gmra.mxu0 %v3405
      %v3549 = vpop.f32.mrf.mxu0
      %v3550 = vadd.f32 0.0, %v3549
      %v3551 = vpop.f32.mrf.mxu0
      %v3552 = vadd.f32 0.0, %v3551
      %v3553 = vpop.f32.mrf.mxu0
      %v3554 = vadd.f32 0.0, %v3553
      %v3555 = vpop.f32.mrf.mxu0
      %v3556 = vadd.f32 0.0, %v3555
      %3557 = vmatprep.mubr.bf16.mxu0 0
      %3558 = vmatmul.mubr.bf16.gmra.mxu0 %v3406
      %v3559 = vpop.f32.mrf.mxu0
      %v3560 = vadd.f32 0.0, %v3559
      %v3561 = vpop.f32.mrf.mxu0
      %v3562 = vadd.f32 0.0, %v3561
      %v3563 = vpop.f32.mrf.mxu0
      %v3564 = vadd.f32 0.0, %v3563
      %v3565 = vpop.f32.mrf.mxu0
      %v3566 = vadd.f32 0.0, %v3565
      %3567 = vmatprep.mubr.bf16.mxu0 0
      %3568 = vmatmul.mubr.bf16.gmra.mxu0 %v3407
      %v3569 = vpop.f32.mrf.mxu0
      %v3570 = vadd.f32 0.0, %v3569
      %v3571 = vpop.f32.mrf.mxu0
      %v3572 = vadd.f32 0.0, %v3571
      %v3573 = vpop.f32.mrf.mxu0
      %v3574 = vadd.f32 0.0, %v3573
      %v3575 = vpop.f32.mrf.mxu0
      %v3576 = vadd.f32 0.0, %v3575
      %3577 = vdwg.mxu0
      %v3578 = vadd.f32 %v3388, %v3540
      %v3579 = vadd.f32 %v3389, %v3542
      %v3580 = vadd.f32 %v3390, %v3544
      %v3581 = vadd.f32 %v3391, %v3546
      %v3582 = vadd.f32 %v3392, %v3550
      %v3583 = vadd.f32 %v3393, %v3552
      %v3584 = vadd.f32 %v3394, %v3554
      %v3585 = vadd.f32 %v3395, %v3556
      %v3586 = vadd.f32 %v3396, %v3560
      %v3587 = vadd.f32 %v3397, %v3562
      %v3588 = vadd.f32 %v3398, %v3564
      %v3589 = vadd.f32 %v3399, %v3566
      %v3590 = vadd.f32 %v3400, %v3570
      %v3591 = vadd.f32 %v3401, %v3572
      %v3592 = vadd.f32 %v3402, %v3574
      %v3593 = vadd.f32 %v3403, %v3576
      %v3594 = vpack.c.bf16 %v733, %v733
      %s3595 = scalar_lea.vmem %s2, 1792
      %v3596 = vld [vmem:[%s3595] sm:$0xff]
      %v3597 = vld [vmem:[%s3595 + $0x8] sm:$0xff]
      %v3598 = vld [vmem:[%s3595 + $0x10] sm:$0xff]
      %v3599 = vld [vmem:[%s3595 + $0x18] sm:$0xff]
      %v3600 = vld [vmem:[%s3595 + $0x20] sm:$0xff]
      %v3601 = vld [vmem:[%s3595 + $0x28] sm:$0xff]
      %v3602 = vld [vmem:[%s3595 + $0x30] sm:$0xff]
      %v3603 = vld [vmem:[%s3595 + $0x38] sm:$0xff]
      %v3604 = vld [vmem:[%s3595 + $0x40] sm:$0xff]
      %v3605 = vld [vmem:[%s3595 + $0x48] sm:$0xff]
      %v3606 = vld [vmem:[%s3595 + $0x50] sm:$0xff]
      %v3607 = vld [vmem:[%s3595 + $0x58] sm:$0xff]
      %v3608 = vld [vmem:[%s3595 + $0x60] sm:$0xff]
      %v3609 = vld [vmem:[%s3595 + $0x68] sm:$0xff]
      %v3610 = vld [vmem:[%s3595 + $0x70] sm:$0xff]
      %v3611 = vld [vmem:[%s3595 + $0x78] sm:$0xff]
      %v3613 = vshrl.u32 %v3214, 16
      %v3615 = vshll.u32 %v3214, 16
      %v3617 = vrot.slane %v3615, 1
      %v3618 = vor.u32 %v3613, %v3617
      %v3620 = vshll.u32 %v3215, 16
      %v3622 = vrot.slane %v3620, 1
      %v3623 = vsel %vm1109, %v3618, %v3622
      %v3624 = vshrl.u32 %v3215, 16
      %v3626 = vor.u32 %v3624, %v3622
      %v3628 = vshll.u32 %v3216, 16
      %v3630 = vrot.slane %v3628, 1
      %v3631 = vsel %vm1109, %v3626, %v3630
      %v3632 = vshrl.u32 %v3216, 16
      %v3634 = vor.u32 %v3632, %v3630
      %v3636 = vshll.u32 %v3217, 16
      %v3638 = vrot.slane %v3636, 1
      %v3639 = vsel %vm1109, %v3634, %v3638
      %v3640 = vshrl.u32 %v3217, 16
      %v3642 = vor.u32 %v3640, %v3638
      %v3644 = vshll.u32 %v3594, 16
      %v3646 = vrot.slane %v3644, 1
      %v3647 = vsel %vm1109, %v3642, %v3646
      %v3668 = vunpack.c.l.b16 %v3596
      %v3669 = vunpack.c.h.b16 %v3596
      %v3670 = vunpack.c.l.b16 %v3597
      %v3671 = vunpack.c.h.b16 %v3597
      %v3672 = vunpack.c.l.b16 %v3598
      %v3673 = vunpack.c.h.b16 %v3598
      %v3674 = vunpack.c.l.b16 %v3599
      %v3675 = vunpack.c.h.b16 %v3599
      %v3676 = vunpack.c.l.b16 %v3600
      %v3677 = vunpack.c.h.b16 %v3600
      %v3678 = vunpack.c.l.b16 %v3601
      %v3679 = vunpack.c.h.b16 %v3601
      %v3680 = vunpack.c.l.b16 %v3602
      %v3681 = vunpack.c.h.b16 %v3602
      %v3682 = vunpack.c.l.b16 %v3603
      %v3683 = vunpack.c.h.b16 %v3603
      %v3684 = vunpack.c.l.b16 %v3604
      %v3685 = vunpack.c.h.b16 %v3604
      %v3686 = vunpack.c.l.b16 %v3605
      %v3687 = vunpack.c.h.b16 %v3605
      %v3688 = vunpack.c.l.b16 %v3606
      %v3689 = vunpack.c.h.b16 %v3606
      %v3690 = vunpack.c.l.b16 %v3607
      %v3691 = vunpack.c.h.b16 %v3607
      %v3692 = vunpack.c.l.b16 %v3608
      %v3693 = vunpack.c.h.b16 %v3608
      %v3694 = vunpack.c.l.b16 %v3609
      %v3695 = vunpack.c.h.b16 %v3609
      %v3696 = vunpack.c.l.b16 %v3610
      %v3697 = vunpack.c.h.b16 %v3610
      %v3698 = vunpack.c.l.b16 %v3611
      %v3699 = vunpack.c.h.b16 %v3611
      %v3700 = vpack.c.b16 %v3670, %v3668
      %v3701 = vpack.c.b16 %v3671, %v3669
      %v3702 = vpack.c.b16 %v3674, %v3672
      %v3703 = vpack.c.b16 %v3675, %v3673
      %v3704 = vpack.c.b16 %v3678, %v3676
      %v3705 = vpack.c.b16 %v3679, %v3677
      %v3706 = vpack.c.b16 %v3682, %v3680
      %v3707 = vpack.c.b16 %v3683, %v3681
      %v3708 = vpack.c.b16 %v3686, %v3684
      %v3709 = vpack.c.b16 %v3687, %v3685
      %v3710 = vpack.c.b16 %v3690, %v3688
      %v3711 = vpack.c.b16 %v3691, %v3689
      %v3712 = vpack.c.b16 %v3694, %v3692
      %v3713 = vpack.c.b16 %v3695, %v3693
      %v3714 = vpack.c.b16 %v3698, %v3696
      %v3715 = vpack.c.b16 %v3699, %v3697
      %3732 = vmatprep.subr.bf16.mxu0 %v3715
      %3733 = vmatpush1.bf16.msra.mxu0 %v3714
      %3734 = vmatprep.subr.bf16.mxu0 %v3713
      %3735 = vmatpush1.bf16.msra.mxu0 %v3712
      %3736 = vmatprep.subr.bf16.mxu0 %v3711
      %3737 = vmatpush1.bf16.msra.mxu0 %v3710
      %3738 = vmatprep.subr.bf16.mxu0 %v3709
      %3739 = vmatpush1.bf16.msra.mxu0 %v3708
      %3740 = vmatprep.subr.bf16.mxu0 %v3707
      %3741 = vmatpush1.bf16.msra.mxu0 %v3706
      %3742 = vmatprep.subr.bf16.mxu0 %v3705
      %3743 = vmatpush1.bf16.msra.mxu0 %v3704
      %3744 = vmatprep.subr.bf16.mxu0 %v3703
      %3745 = vmatpush1.bf16.msra.mxu0 %v3702
      %3746 = vmatprep.subr.bf16.mxu0 %v3701
      %3747 = vmatpush1.bf16.msra.mxu0 %v3700
      %3748 = vmatprep.subr.bf16.mxu0 0
      %3749 = vmatpush2.bf16.msra.mxu0 0
      %3750 = vmatprep.subr.bf16.mxu0 0
      %3751 = vmatpush2.bf16.msra.mxu0 0
      %3752 = vmatprep.subr.bf16.mxu0 0
      %3753 = vmatpush2.bf16.msra.mxu0 0
      %3754 = vmatprep.subr.bf16.mxu0 0
      %3755 = vmatpush2.bf16.msra.mxu0 0
      %3756 = vmatprep.subr.bf16.mxu0 0
      %3757 = vmatpush2.bf16.msra.mxu0 0
      %3758 = vmatprep.subr.bf16.mxu0 0
      %3759 = vmatpush2.bf16.msra.mxu0 0
      %3760 = vmatprep.subr.bf16.mxu0 0
      %3761 = vmatpush2.bf16.msra.mxu0 0
      %3762 = vmatprep.subr.bf16.mxu0 0
      %3763 = vmatpush2.bf16.msra.mxu0 0
      %3764 = vmatprep.mubr.bf16.mxu0 0
      %3765 = vmatmul.mubr.bf16.gmra.mxu0 %v3623
      %v3766 = vpop.f32.mrf.mxu0
      %v3767 = vadd.f32 0.0, %v3766
      %v3768 = vpop.f32.mrf.mxu0
      %v3769 = vadd.f32 0.0, %v3768
      %v3770 = vpop.f32.mrf.mxu0
      %v3771 = vadd.f32 0.0, %v3770
      %v3772 = vpop.f32.mrf.mxu0
      %v3773 = vadd.f32 0.0, %v3772
      %3774 = vmatprep.mubr.bf16.mxu0 0
      %3775 = vmatmul.mubr.bf16.gmra.mxu0 %v3631
      %v3776 = vpop.f32.mrf.mxu0
      %v3777 = vadd.f32 0.0, %v3776
      %v3778 = vpop.f32.mrf.mxu0
      %v3779 = vadd.f32 0.0, %v3778
      %v3780 = vpop.f32.mrf.mxu0
      %v3781 = vadd.f32 0.0, %v3780
      %v3782 = vpop.f32.mrf.mxu0
      %v3783 = vadd.f32 0.0, %v3782
      %3784 = vmatprep.mubr.bf16.mxu0 0
      %3785 = vmatmul.mubr.bf16.gmra.mxu0 %v3639
      %v3786 = vpop.f32.mrf.mxu0
      %v3787 = vadd.f32 0.0, %v3786
      %v3788 = vpop.f32.mrf.mxu0
      %v3789 = vadd.f32 0.0, %v3788
      %v3790 = vpop.f32.mrf.mxu0
      %v3791 = vadd.f32 0.0, %v3790
      %v3792 = vpop.f32.mrf.mxu0
      %v3793 = vadd.f32 0.0, %v3792
      %3794 = vmatprep.mubr.bf16.mxu0 0
      %3795 = vmatmul.mubr.bf16.gmra.mxu0 %v3647
      %v3796 = vpop.f32.mrf.mxu0
      %v3797 = vadd.f32 0.0, %v3796
      %v3798 = vpop.f32.mrf.mxu0
      %v3799 = vadd.f32 0.0, %v3798
      %v3800 = vpop.f32.mrf.mxu0
      %v3801 = vadd.f32 0.0, %v3800
      %v3802 = vpop.f32.mrf.mxu0
      %v3803 = vadd.f32 0.0, %v3802
      %3804 = vdwg.mxu0
      %v3805 = vadd.f32 %v3578, %v3767
      %v3806 = vadd.f32 %v3579, %v3769
      %v3807 = vadd.f32 %v3580, %v3771
      %v3808 = vadd.f32 %v3581, %v3773
      %v3809 = vadd.f32 %v3582, %v3777
      %v3810 = vadd.f32 %v3583, %v3779
      %v3811 = vadd.f32 %v3584, %v3781
      %v3812 = vadd.f32 %v3585, %v3783
      %v3813 = vadd.f32 %v3586, %v3787
      %v3814 = vadd.f32 %v3587, %v3789
      %v3815 = vadd.f32 %v3588, %v3791
      %v3816 = vadd.f32 %v3589, %v3793
      %v3817 = vadd.f32 %v3590, %v3797
      %v3818 = vadd.f32 %v3591, %v3799
      %v3819 = vadd.f32 %v3592, %v3801
      %v3820 = vadd.f32 %v3593, %v3803
      %v3821 = vpack.c.bf16 %v743, %v743
      %s3822 = scalar_lea.vmem %s2, 1920
      %v3823 = vld [vmem:[%s3822] sm:$0xff]
      %v3824 = vld [vmem:[%s3822 + $0x8] sm:$0xff]
      %v3825 = vld [vmem:[%s3822 + $0x10] sm:$0xff]
      %v3826 = vld [vmem:[%s3822 + $0x18] sm:$0xff]
      %v3827 = vld [vmem:[%s3822 + $0x20] sm:$0xff]
      %v3828 = vld [vmem:[%s3822 + $0x28] sm:$0xff]
      %v3829 = vld [vmem:[%s3822 + $0x30] sm:$0xff]
      %v3830 = vld [vmem:[%s3822 + $0x38] sm:$0xff]
      %v3831 = vld [vmem:[%s3822 + $0x40] sm:$0xff]
      %v3832 = vld [vmem:[%s3822 + $0x48] sm:$0xff]
      %v3833 = vld [vmem:[%s3822 + $0x50] sm:$0xff]
      %v3834 = vld [vmem:[%s3822 + $0x58] sm:$0xff]
      %v3835 = vld [vmem:[%s3822 + $0x60] sm:$0xff]
      %v3836 = vld [vmem:[%s3822 + $0x68] sm:$0xff]
      %v3837 = vld [vmem:[%s3822 + $0x70] sm:$0xff]
      %v3838 = vld [vmem:[%s3822 + $0x78] sm:$0xff]
      %v3840 = vshrl.u32 %v3404, 16
      %v3842 = vshll.u32 %v3404, 16
      %v3844 = vrot.slane %v3842, 1
      %v3845 = vor.u32 %v3840, %v3844
      %v3847 = vshll.u32 %v3405, 16
      %v3849 = vrot.slane %v3847, 1
      %v3850 = vsel %vm1109, %v3845, %v3849
      %v3851 = vshrl.u32 %v3405, 16
      %v3853 = vor.u32 %v3851, %v3849
      %v3855 = vshll.u32 %v3406, 16
      %v3857 = vrot.slane %v3855, 1
      %v3858 = vsel %vm1109, %v3853, %v3857
      %v3859 = vshrl.u32 %v3406, 16
      %v3861 = vor.u32 %v3859, %v3857
      %v3863 = vshll.u32 %v3407, 16
      %v3865 = vrot.slane %v3863, 1
      %v3866 = vsel %vm1109, %v3861, %v3865
      %v3867 = vshrl.u32 %v3407, 16
      %v3869 = vor.u32 %v3867, %v3865
      %v3871 = vshll.u32 %v3821, 16
      %v3873 = vrot.slane %v3871, 1
      %v3874 = vsel %vm1109, %v3869, %v3873
      %v3895 = vunpack.c.l.b16 %v3823
      %v3896 = vunpack.c.h.b16 %v3823
      %v3897 = vunpack.c.l.b16 %v3824
      %v3898 = vunpack.c.h.b16 %v3824
      %v3899 = vunpack.c.l.b16 %v3825
      %v3900 = vunpack.c.h.b16 %v3825
      %v3901 = vunpack.c.l.b16 %v3826
      %v3902 = vunpack.c.h.b16 %v3826
      %v3903 = vunpack.c.l.b16 %v3827
      %v3904 = vunpack.c.h.b16 %v3827
      %v3905 = vunpack.c.l.b16 %v3828
      %v3906 = vunpack.c.h.b16 %v3828
      %v3907 = vunpack.c.l.b16 %v3829
      %v3908 = vunpack.c.h.b16 %v3829
      %v3909 = vunpack.c.l.b16 %v3830
      %v3910 = vunpack.c.h.b16 %v3830
      %v3911 = vunpack.c.l.b16 %v3831
      %v3912 = vunpack.c.h.b16 %v3831
      %v3913 = vunpack.c.l.b16 %v3832
      %v3914 = vunpack.c.h.b16 %v3832
      %v3915 = vunpack.c.l.b16 %v3833
      %v3916 = vunpack.c.h.b16 %v3833
      %v3917 = vunpack.c.l.b16 %v3834
      %v3918 = vunpack.c.h.b16 %v3834
      %v3919 = vunpack.c.l.b16 %v3835
      %v3920 = vunpack.c.h.b16 %v3835
      %v3921 = vunpack.c.l.b16 %v3836
      %v3922 = vunpack.c.h.b16 %v3836
      %v3923 = vunpack.c.l.b16 %v3837
      %v3924 = vunpack.c.h.b16 %v3837
      %v3925 = vunpack.c.l.b16 %v3838
      %v3926 = vunpack.c.h.b16 %v3838
      %v3927 = vpack.c.b16 %v3897, %v3895
      %v3928 = vpack.c.b16 %v3898, %v3896
      %v3929 = vpack.c.b16 %v3901, %v3899
      %v3930 = vpack.c.b16 %v3902, %v3900
      %v3931 = vpack.c.b16 %v3905, %v3903
      %v3932 = vpack.c.b16 %v3906, %v3904
      %v3933 = vpack.c.b16 %v3909, %v3907
      %v3934 = vpack.c.b16 %v3910, %v3908
      %v3935 = vpack.c.b16 %v3913, %v3911
      %v3936 = vpack.c.b16 %v3914, %v3912
      %v3937 = vpack.c.b16 %v3917, %v3915
      %v3938 = vpack.c.b16 %v3918, %v3916
      %v3939 = vpack.c.b16 %v3921, %v3919
      %v3940 = vpack.c.b16 %v3922, %v3920
      %v3941 = vpack.c.b16 %v3925, %v3923
      %v3942 = vpack.c.b16 %v3926, %v3924
      %3959 = vmatprep.subr.bf16.mxu0 %v3942
      %3960 = vmatpush1.bf16.msra.mxu0 %v3941
      %3961 = vmatprep.subr.bf16.mxu0 %v3940
      %3962 = vmatpush1.bf16.msra.mxu0 %v3939
      %3963 = vmatprep.subr.bf16.mxu0 %v3938
      %3964 = vmatpush1.bf16.msra.mxu0 %v3937
      %3965 = vmatprep.subr.bf16.mxu0 %v3936
      %3966 = vmatpush1.bf16.msra.mxu0 %v3935
      %3967 = vmatprep.subr.bf16.mxu0 %v3934
      %3968 = vmatpush1.bf16.msra.mxu0 %v3933
      %3969 = vmatprep.subr.bf16.mxu0 %v3932
      %3970 = vmatpush1.bf16.msra.mxu0 %v3931
      %3971 = vmatprep.subr.bf16.mxu0 %v3930
      %3972 = vmatpush1.bf16.msra.mxu0 %v3929
      %3973 = vmatprep.subr.bf16.mxu0 %v3928
      %3974 = vmatpush1.bf16.msra.mxu0 %v3927
      %3975 = vmatprep.subr.bf16.mxu0 0
      %3976 = vmatpush2.bf16.msra.mxu0 0
      %3977 = vmatprep.subr.bf16.mxu0 0
      %3978 = vmatpush2.bf16.msra.mxu0 0
      %3979 = vmatprep.subr.bf16.mxu0 0
      %3980 = vmatpush2.bf16.msra.mxu0 0
      %3981 = vmatprep.subr.bf16.mxu0 0
      %3982 = vmatpush2.bf16.msra.mxu0 0
      %3983 = vmatprep.subr.bf16.mxu0 0
      %3984 = vmatpush2.bf16.msra.mxu0 0
      %3985 = vmatprep.subr.bf16.mxu0 0
      %3986 = vmatpush2.bf16.msra.mxu0 0
      %3987 = vmatprep.subr.bf16.mxu0 0
      %3988 = vmatpush2.bf16.msra.mxu0 0
      %3989 = vmatprep.subr.bf16.mxu0 0
      %3990 = vmatpush2.bf16.msra.mxu0 0
      %3991 = vmatprep.mubr.bf16.mxu0 0
      %3992 = vmatmul.mubr.bf16.gmra.mxu0 %v3850
      %v3993 = vpop.f32.mrf.mxu0
      %v3994 = vadd.f32 0.0, %v3993
      %v3995 = vpop.f32.mrf.mxu0
      %v3996 = vadd.f32 0.0, %v3995
      %v3997 = vpop.f32.mrf.mxu0
      %v3998 = vadd.f32 0.0, %v3997
      %v3999 = vpop.f32.mrf.mxu0
      %v4000 = vadd.f32 0.0, %v3999
      %4001 = vmatprep.mubr.bf16.mxu0 0
      %4002 = vmatmul.mubr.bf16.gmra.mxu0 %v3858
      %v4003 = vpop.f32.mrf.mxu0
      %v4004 = vadd.f32 0.0, %v4003
      %v4005 = vpop.f32.mrf.mxu0
      %v4006 = vadd.f32 0.0, %v4005
      %v4007 = vpop.f32.mrf.mxu0
      %v4008 = vadd.f32 0.0, %v4007
      %v4009 = vpop.f32.mrf.mxu0
      %v4010 = vadd.f32 0.0, %v4009
      %4011 = vmatprep.mubr.bf16.mxu0 0
      %4012 = vmatmul.mubr.bf16.gmra.mxu0 %v3866
      %v4013 = vpop.f32.mrf.mxu0
      %v4014 = vadd.f32 0.0, %v4013
      %v4015 = vpop.f32.mrf.mxu0
      %v4016 = vadd.f32 0.0, %v4015
      %v4017 = vpop.f32.mrf.mxu0
      %v4018 = vadd.f32 0.0, %v4017
      %v4019 = vpop.f32.mrf.mxu0
      %v4020 = vadd.f32 0.0, %v4019
      %4021 = vmatprep.mubr.bf16.mxu0 0
      %4022 = vmatmul.mubr.bf16.gmra.mxu0 %v3874
      %v4023 = vpop.f32.mrf.mxu0
      %v4024 = vadd.f32 0.0, %v4023
      %v4025 = vpop.f32.mrf.mxu0
      %v4026 = vadd.f32 0.0, %v4025
      %v4027 = vpop.f32.mrf.mxu0
      %v4028 = vadd.f32 0.0, %v4027
      %v4029 = vpop.f32.mrf.mxu0
      %v4030 = vadd.f32 0.0, %v4029
      %4031 = vdwg.mxu0
      %v4032 = vadd.f32 %v3805, %v3994
      %v4033 = vadd.f32 %v3806, %v3996
      %v4034 = vadd.f32 %v3807, %v3998
      %v4035 = vadd.f32 %v3808, %v4000
      %v4036 = vadd.f32 %v3809, %v4004
      %v4037 = vadd.f32 %v3810, %v4006
      %v4038 = vadd.f32 %v3811, %v4008
      %v4039 = vadd.f32 %v3812, %v4010
      %v4040 = vadd.f32 %v3813, %v4014
      %v4041 = vadd.f32 %v3814, %v4016
      %v4042 = vadd.f32 %v3815, %v4018
      %v4043 = vadd.f32 %v3816, %v4020
      %v4044 = vadd.f32 %v3817, %v4024
      %v4045 = vadd.f32 %v3818, %v4026
      %v4046 = vadd.f32 %v3819, %v4028
      %v4047 = vadd.f32 %v3820, %v4030
      %v4048 = vld [vmem:[%s3] sm:$0x3]
      %v4050 = vlaneseq
      %v4051 = vshrl.u32 %v4050, 7
      %v4052 = vsub.s32 0, %v4051
      %v4053 = vrot.slane %v4048, %v4052
      %v4054 = vlaneseq
      %v4055 = vshrl.u32 %v4054, 7
      %v4056 = vsub.s32 1, %v4055
      %v4057 = vrot.slane %v4048, %v4056
      %v4060 = vadd.f32 %v4032, %v4053
      %v4061 = vadd.f32 %v4033, %v4057
      %v4062 = vadd.f32 %v4034, %v4053
      %v4063 = vadd.f32 %v4035, %v4057
      %v4064 = vadd.f32 %v4036, %v4053
      %v4065 = vadd.f32 %v4037, %v4057
      %v4066 = vadd.f32 %v4038, %v4053
      %v4067 = vadd.f32 %v4039, %v4057
      %v4068 = vadd.f32 %v4040, %v4053
      %v4069 = vadd.f32 %v4041, %v4057
      %v4070 = vadd.f32 %v4042, %v4053
      %v4071 = vadd.f32 %v4043, %v4057
      %v4072 = vadd.f32 %v4044, %v4053
      %v4073 = vadd.f32 %v4045, %v4057
      %v4074 = vadd.f32 %v4046, %v4053
      %v4075 = vadd.f32 %v4047, %v4057
      %vm4076 = vcmp.gt.f32.partialorder %v4060, 0.0
      %vm4077 = vcmp.gt.f32.partialorder %v4061, 0.0
      %vm4078 = vcmp.gt.f32.partialorder %v4062, 0.0
      %vm4079 = vcmp.gt.f32.partialorder %v4063, 0.0
      %vm4080 = vcmp.gt.f32.partialorder %v4064, 0.0
      %vm4081 = vcmp.gt.f32.partialorder %v4065, 0.0
      %vm4082 = vcmp.gt.f32.partialorder %v4066, 0.0
      %vm4083 = vcmp.gt.f32.partialorder %v4067, 0.0
      %vm4084 = vcmp.gt.f32.partialorder %v4068, 0.0
      %vm4085 = vcmp.gt.f32.partialorder %v4069, 0.0
      %vm4086 = vcmp.gt.f32.partialorder %v4070, 0.0
      %vm4087 = vcmp.gt.f32.partialorder %v4071, 0.0
      %vm4088 = vcmp.gt.f32.partialorder %v4072, 0.0
      %vm4089 = vcmp.gt.f32.partialorder %v4073, 0.0
      %vm4090 = vcmp.gt.f32.partialorder %v4074, 0.0
      %vm4091 = vcmp.gt.f32.partialorder %v4075, 0.0
      %v4092 = vmul.f32 %v4060, 0.2
      %v4093 = vmul.f32 %v4061, 0.2
      %v4094 = vmul.f32 %v4062, 0.2
      %v4095 = vmul.f32 %v4063, 0.2
      %v4096 = vmul.f32 %v4064, 0.2
      %v4097 = vmul.f32 %v4065, 0.2
      %v4098 = vmul.f32 %v4066, 0.2
      %v4099 = vmul.f32 %v4067, 0.2
      %v4100 = vmul.f32 %v4068, 0.2
      %v4101 = vmul.f32 %v4069, 0.2
      %v4102 = vmul.f32 %v4070, 0.2
      %v4103 = vmul.f32 %v4071, 0.2
      %v4104 = vmul.f32 %v4072, 0.2
      %v4105 = vmul.f32 %v4073, 0.2
      %v4106 = vmul.f32 %v4074, 0.2
      %v4107 = vmul.f32 %v4075, 0.2
      %v4108 = vsel %vm4076, %v4060, %v4092
      %v4109 = vsel %vm4077, %v4061, %v4093
      %v4110 = vsel %vm4078, %v4062, %v4094
      %v4111 = vsel %vm4079, %v4063, %v4095
      %v4112 = vsel %vm4080, %v4064, %v4096
      %v4113 = vsel %vm4081, %v4065, %v4097
      %v4114 = vsel %vm4082, %v4066, %v4098
      %v4115 = vsel %vm4083, %v4067, %v4099
      %v4116 = vsel %vm4084, %v4068, %v4100
      %v4117 = vsel %vm4085, %v4069, %v4101
      %v4118 = vsel %vm4086, %v4070, %v4102
      %v4119 = vsel %vm4087, %v4071, %v4103
      %v4120 = vsel %vm4088, %v4072, %v4104
      %v4121 = vsel %vm4089, %v4073, %v4105
      %v4122 = vsel %vm4090, %v4074, %v4106
      %v4123 = vsel %vm4091, %v4075, %v4107
      %v4124 = vld [vmem:[%s4] sm:$0xff]
      %v4125 = vld [vmem:[%s4 + $0x8] sm:$0xff]
      %v4126 = vld [vmem:[%s4 + $0x10] sm:$0xff]
      %v4127 = vld [vmem:[%s4 + $0x18] sm:$0xff]
      %v4128 = vld [vmem:[%s4 + $0x20] sm:$0xff]
      %v4129 = vld [vmem:[%s4 + $0x28] sm:$0xff]
      %v4130 = vld [vmem:[%s4 + $0x30] sm:$0xff]
      %v4131 = vld [vmem:[%s4 + $0x38] sm:$0xff]
      %v4132 = vld [vmem:[%s4 + $0x40] sm:$0xff]
      %v4133 = vld [vmem:[%s4 + $0x48] sm:$0xff]
      %v4134 = vld [vmem:[%s4 + $0x50] sm:$0xff]
      %v4135 = vld [vmem:[%s4 + $0x58] sm:$0xff]
      %v4136 = vld [vmem:[%s4 + $0x60] sm:$0xff]
      %v4137 = vld [vmem:[%s4 + $0x68] sm:$0xff]
      %v4138 = vld [vmem:[%s4 + $0x70] sm:$0xff]
      %v4139 = vld [vmem:[%s4 + $0x78] sm:$0xff]
      %v4140 = vmul.f32 %v4108, %v4124
      %v4141 = vmul.f32 %v4109, %v4125
      %v4142 = vmul.f32 %v4110, %v4126
      %v4143 = vmul.f32 %v4111, %v4127
      %v4144 = vmul.f32 %v4112, %v4128
      %v4145 = vmul.f32 %v4113, %v4129
      %v4146 = vmul.f32 %v4114, %v4130
      %v4147 = vmul.f32 %v4115, %v4131
      %v4148 = vmul.f32 %v4116, %v4132
      %v4149 = vmul.f32 %v4117, %v4133
      %v4150 = vmul.f32 %v4118, %v4134
      %v4151 = vmul.f32 %v4119, %v4135
      %v4152 = vmul.f32 %v4120, %v4136
      %v4153 = vmul.f32 %v4121, %v4137
      %v4154 = vmul.f32 %v4122, %v4138
      %v4155 = vmul.f32 %v4123, %v4139
      %v4156 = vadd.f32 %v4140, %v4141
      %4157 = vadd.xlane.f32.xlu0 %v4156
      %v4158 = vpop.xlane.xlu0 %4157
      %v4159 = vadd.f32 %v4142, %v4143
      %4160 = vadd.xlane.f32.xlu0 %v4159
      %v4161 = vpop.xlane.xlu0 %4160
      %v4162 = vadd.f32 %v4144, %v4145
      %4163 = vadd.xlane.f32.xlu0 %v4162
      %v4164 = vpop.xlane.xlu0 %4163
      %v4165 = vadd.f32 %v4146, %v4147
      %4166 = vadd.xlane.f32.xlu0 %v4165
      %v4167 = vpop.xlane.xlu0 %4166
      %v4168 = vadd.f32 %v4148, %v4149
      %4169 = vadd.xlane.f32.xlu0 %v4168
      %v4170 = vpop.xlane.xlu0 %4169
      %v4171 = vadd.f32 %v4150, %v4151
      %4172 = vadd.xlane.f32.xlu0 %v4171
      %v4173 = vpop.xlane.xlu0 %4172
      %v4174 = vadd.f32 %v4152, %v4153
      %4175 = vadd.xlane.f32.xlu0 %v4174
      %v4176 = vpop.xlane.xlu0 %4175
      %v4177 = vadd.f32 %v4154, %v4155
      %4178 = vadd.xlane.f32.xlu0 %v4177
      %v4179 = vpop.xlane.xlu0 %4178
      %v4180 = vadd.f32 %v4158, %v4161
      %v4181 = vadd.f32 %v4180, %v4164
      %v4182 = vadd.f32 %v4181, %v4167
      %v4183 = vadd.f32 %v4182, %v4170
      %v4184 = vadd.f32 %v4183, %v4173
      %v4185 = vadd.f32 %v4184, %v4176
      %v4186 = vadd.f32 %v4185, %v4179
      %v4187 = vrot.slane %v4186, 4
      %v4188 = vadd.f32 %v4186, %v4187
      %v4189 = vrot.slane %v4188, 2
      %v4190 = vadd.f32 %v4188, %v4189
      %v4191 = vrot.slane %v4190, 1
      %v4192 = vadd.f32 %v4190, %v4191
      %v4193 = vsub.f32 0.0, %v4192
      %v4194 = vmul.f32 %v4193, 1.442695
      %v4195 = vpow.pop %v4194
      %v4196 = vadd.f32 %v4195, 1.0
      %v4197 = vrcp.pop %v4196
      %v4198 = vmul.f32 1.0, %v4197
      %4199 = vst [vmem:[%s220] sm:$0x1] %v4198
      %p4200 = scmp.lt.s32.totalorder %s16, 1
      %s4201 = scalar_select %p4200, %s16, 1
      %s4202 = scalar_lea.vmem %s5, %s4201
      // Predicated region
      $region41: #{discriminator_forward.1} parent=39 // pred_check
        %p4203 = pneg %p144
      $region42: #{discriminator_forward.1} parent=39 // pred_check_branch
        %4205 = sbr.rel (%p4203) target = $region44
      $region43: #{discriminator_forward.1} parent=39 // pred_region
        _
      $region44: #{discriminator_forward.1} parent=39 // pred_fallthru
        _
    $region40: #{discriminator_forward.1} parent=5 // pred_fallthru
      _
    %p4206 = scmp.le.s32.totalorder 2, %s11
    // Predicated region
    $region45: #{discriminator_forward.1} parent=5 // pred_check
      %p4207 = pneg %p4206
    $region46: #{discriminator_forward.1} parent=5 // pred_check_branch
      %4209 = sbr.rel (%p4207) target = $region48
    $region47: #{discriminator_forward.1} parent=5 // pred_region
      %s4210 = ssub.s32 %s11, 2
      // Predicated region
      $region49: #{discriminator_forward.1} parent=47 // pred_check
        %p4211 = pneg %p150
      $region50: #{discriminator_forward.1} parent=47 // pred_check_branch
        %4213 = sbr.rel (%p4211) target = $region52
      $region51: #{discriminator_forward.1} parent=47 // pred_region
        %p4214 = scmp.lt.s32.totalorder %s17, 1
        %s4215 = scalar_select %p4214, %s17, 1
        %s4216 = scalar_lea.vmem %s5, %s4215
      $region52: #{discriminator_forward.1} parent=47 // pred_fallthru
        _
    $region48: #{discriminator_forward.1} parent=5 // pred_fallthru
      _
  $region6: #{discriminator_forward.1} parent=0 // loop_footer
    %s15 = sadd.s32 1, %s11
  $region7: #{discriminator_forward.1} parent=0 // loop_footer_branch
    %10 = sbr.rel target = $region3
  $region8: #{discriminator_forward.1} parent=0 // loop_exit
    _

</llo_original>
